<compile_context>
chip_gen: v7x
topology: tpu7x:2x2x1
jax: 0.10.0
libtpu: 0.0.40
codegen_flags: <defaults>
</compile_context>

<pallas_src>
import functools

import jax
import jax.numpy as jnp
from jax.experimental import pallas as pl
from jax.experimental.pallas import tpu as pltpu


_LANE = 128       # channel dims padded to this (lane-dense stores, MXU K/N fill)
_SUBLANE = 8      # flattened row stride (W) padded to this (sublane-aligned taps)
_ROW_TILE = 128   # max flattened rows per accumulator (~16K f32 at Cout_p=128,
                  # keeps the value-carried accumulator register-resident)


def _round_up(x: int, m: int) -> int:
    return (x + m - 1) // m * m


# ----------------------------------------------------------------------------
# Bilinear x2 upsample (align_corners=True) helpers -- plain XLA.
# ----------------------------------------------------------------------------
def _bilinear_matrix(in_size: int, out_size: int) -> jnp.ndarray:
    """Interpolation matrix M (out, in) with out = M @ in, align_corners=True."""
    if out_size == 1:
        src = jnp.zeros((1,), jnp.float32)
    else:
        src = jnp.arange(out_size, dtype=jnp.float32) * (in_size - 1) / (out_size - 1)
    i0 = jnp.clip(jnp.floor(src).astype(jnp.int32), 0, in_size - 1)
    i1 = jnp.clip(i0 + 1, 0, in_size - 1)
    frac = src - i0.astype(jnp.float32)
    rows = jnp.arange(out_size)
    m = jnp.zeros((out_size, in_size), jnp.float32)
    m = m.at[rows, i0].add(1.0 - frac)
    m = m.at[rows, i1].add(frac)
    return m


def _bilinear_upsample_x2_nhwc(x_nhwc: jnp.ndarray) -> jnp.ndarray:
    """x2 bilinear upsample (align_corners=True) as two small dense contractions.

    Kept in plain XLA: a per-(batch, channel)-plane Pallas grid spends ~0.35us of fixed
    per-step overhead on matmuls that take nanoseconds.
    """
    _, h, w, _ = x_nhwc.shape
    wh = _bilinear_matrix(h, 2 * h)          # (H, h)
    ww = _bilinear_matrix(w, 2 * w)          # (W, w)
    return jnp.einsum("Hh,bhwc,Ww->bHWc", wh, x_nhwc, ww,
                      precision=jax.lax.Precision.HIGHEST)


def _center_crop_nchw(x: jnp.ndarray, tgt_h: int, tgt_w: int) -> jnp.ndarray:
    """Exact-size center crop; fails loudly if the skip feature is too small."""
    Hd, Wd = x.shape[-2], x.shape[-1]
    assert Hd >= tgt_h and Wd >= tgt_w, (
        f"skip feature {Hd}x{Wd} smaller than upsampled feature {tgt_h}x{tgt_w}")
    top = (Hd - tgt_h) // 2
    left = (Wd - tgt_w) // 2
    return x[..., top:top + tgt_h, left:left + tgt_w]


def _vmem_limit_bytes() -> int:
    """Per-generation scoped-VMEM limit: ~48 MiB on v7x (64 MiB physical), up to
    ~100 MiB on v5e/v6e (128 MiB physical). Fallback is valid on every generation."""
    try:
        cap = int(getattr(pltpu.get_tpu_info(), "vmem_capacity_bytes", 64 << 20))
    except Exception:
        cap = 64 << 20
    return max(32 << 20, min(cap - (16 << 20), 100 << 20))


def _pick_h_tile(h2: int, wp: int) -> int:
    """Largest divisor of H2 whose conv1 accumulator ((d+2)*Wp-2 rows x 128 lanes f32)
    stays within the row-tile cap. Bounds accumulator live ranges (grid-axis boundary)
    and gives the grid enough steps for pipelining / both v7x TensorCores."""
    best = 1
    for d in range(1, h2 + 1):
        if h2 % d == 0 and (d + 2) * wp - 2 <= _ROW_TILE:
            best = d
    return best


# ----------------------------------------------------------------------------
# Fused conv3x3 -> conv3x3 Pallas kernel: one (batch, H-tile) per grid step.
# ----------------------------------------------------------------------------
def _fused_double_conv3x3_kernel(wp, x_ref, w1_ref, w2_ref, b_ref, o_ref, mid_ref):
    """Valid 3x3 conv (+bias) -> valid 3x3 conv (+bias); intermediate kept in VMEM.

    Activations are spatially flattened: an (H, Wp, C) NHWC image is an (H*Wp, C)
    matrix, so tap (ki, kj) of a "full-width" valid conv is the contiguous row slice
    [ki*Wp + kj : ki*Wp + kj + M), i.e. a single (M, Cin_p) @ (Cin_p, Cout_p) MXU
    matmul per tap. Columns >= W-2 (conv1) / >= W-4 (conv2) are garbage and are
    dropped by the wrapper's final slice.

      x_ref:   (1, H*Wp, Cin_p)  full (padded) image, VMEM-resident per batch
      w1_ref:  (9, Cin_p, Cout_p)   w2_ref: (9, Cout_p, Cout_p)   b_ref: (2, Cout_p) f32
      o_ref:   (1, TH*Wp, Cout_p)   this H-tile's flattened output rows
      mid_ref: VMEM scratch ((TH+2)*Wp, Cout_p) -- conv1 output never leaves VMEM
    """
    cout = o_ref.shape[-1]
    n_out = o_ref.shape[1]          # TH * Wp flat rows written per tile
    n_mid = mid_ref.shape[0]        # (TH + 2) * Wp
    m1 = n_mid - 2                  # conv1 rows actually computed per tile
    m2 = n_out - 2                  # conv2 rows actually computed per tile

    # First flattened input row of this H-tile; Wp is a multiple of 8, so row0 is
    # sublane aligned.
    row0 = pl.multiple_of(pl.program_id(1) * n_out, 8)

    # ---- conv1: merged (down || up) K reduction; bias folded into the accumulator ----
    acc1 = jnp.broadcast_to(b_ref[0:1, :], (m1, cout))
    for t in range(9):
        off = (t // 3) * wp + (t % 3)
        acc1 = acc1 + jnp.dot(x_ref[0, pl.ds(row0 + off, m1), :], w1_ref[t],
                              preferred_element_type=jnp.float32)
    mid_ref[0:m1, :] = acc1.astype(mid_ref.dtype)
    # The last 2 rows only ever feed garbage output columns; zero them so conv2 never
    # reads uninitialized VMEM.
    mid_ref[m1:, :] = jnp.zeros((2, cout), mid_ref.dtype)

    # ---- conv2, reading the VMEM-resident intermediate ----
    acc2 = jnp.broadcast_to(b_ref[1:2, :], (m2, cout))
    for t in range(9):
        off = (t // 3) * wp + (t % 3)
        acc2 = acc2 + jnp.dot(mid_ref[off:off + m2, :], w2_ref[t],
                              preferred_element_type=jnp.float32)
    o_ref[0, 0:m2, :] = acc2.astype(o_ref.dtype)
    # Last 2 flat rows of the tile are garbage columns: write zeros in-kernel (full
    # lane-dense tile store) so the wrapper needs no jnp.pad HBM pass.
    o_ref[0, m2:, :] = jnp.zeros((2, cout), o_ref.dtype)


# ----------------------------------------------------------------------------
# Decoder-block forward (NCHW in / NCHW out, matching PyTorch).
# ----------------------------------------------------------------------------
def up_path_forward(downfeats, upfeat, params, compute_dtype=jnp.float32):
    if isinstance(downfeats, (list, tuple)):
        downfeat = downfeats[0] if len(downfeats) == 1 else jnp.concatenate(
            list(downfeats), axis=1)
    else:
        downfeat = downfeats

    B, Cu, h, w = upfeat.shape
    H, W = 2 * h, 2 * w
    Cd = downfeat.shape[1]
    Cout = params["w1"].shape[0]
    assert params["w1"].shape[1] == Cd + Cu, "conv1 in_channels must equal Cd + Cu"
    assert H > 4 and W > 4
    assert downfeat.shape[2] >= H and downfeat.shape[3] >= W, (
        "skip feature must be at least as large as the upsampled feature")

    # Upsample (XLA) + exact center crop; one NCHW->NHWC layout change at the boundary.
    up_nhwc = _bilinear_upsample_x2_nhwc(jnp.transpose(upfeat, (0, 2, 3, 1)))   # (B,H,W,Cu)
    down_nhwc = jnp.transpose(_center_crop_nchw(downfeat, H, W), (0, 2, 3, 1))  # (B,H,W,Cd)

    # Merge the (down || up) channel concat once in the wrapper (one full-K dot per
    # tap instead of two half-filled ones) and pad to lane/sublane friendly sizes:
    #   channels -> multiple of 128 (lane-dense stores, MXU K/N fill)
    #   W (flattened row stride) -> multiple of 8 (sublane-aligned tap offsets)
    Cin = Cd + Cu
    Cin_p = _round_up(Cin, _LANE)
    Cout_p = _round_up(Cout, _LANE)
    Wp = _round_up(W, _SUBLANE)
    x = jnp.concatenate([down_nhwc, up_nhwc], axis=-1)
    x = jnp.pad(x, ((0, 0), (0, 0), (0, Wp - W), (0, Cin_p - Cin)))
    x_flat = x.reshape(B, H * Wp, Cin_p).astype(compute_dtype)   # free NHWC reshape

    # Weights -> (tap, Cin_p, Cout_p); zero-padded channels contribute exactly zero.
    w1 = jnp.transpose(params["w1"], (2, 3, 1, 0)).reshape(9, Cin, Cout)
    w1 = jnp.pad(w1, ((0, 0), (0, Cin_p - Cin), (0, Cout_p - Cout))).astype(compute_dtype)
    w2 = jnp.transpose(params["w2"], (2, 3, 1, 0)).reshape(9, Cout, Cout)
    w2 = jnp.pad(w2, ((0, 0), (0, Cout_p - Cout), (0, Cout_p - Cout))).astype(compute_dtype)
    bias = jnp.stack([params["b1"], params["b2"]], axis=0)                      # (2, Cout)
    bias = jnp.pad(bias, ((0, 0), (0, Cout_p - Cout))).astype(jnp.float32)      # (2, Cout_p)

    H2, W2 = H - 4, W - 4
    th = _pick_h_tile(H2, Wp)        # output rows per H-tile (divides H2)
    n_h = H2 // th
    n_out = th * Wp                  # flattened output rows per tile
    n_mid = (th + 2) * Wp            # conv1 rows held in VMEM per tile (incl. 2 zeroed)
    m1, m2 = n_mid - 2, n_out - 2

    flops = 2 * B * n_h * 9 * (m1 * Cin_p * Cout_p + m2 * Cout_p * Cout_p)
    itemsize = jnp.dtype(compute_dtype).itemsize
    bytes_accessed = int((x_flat.size + w1.size + w2.size) * itemsize
                         + bias.size * 4 + B * H2 * Wp * Cout_p * itemsize)

    out_flat = pl.pallas_call(
        functools.partial(_fused_double_conv3x3_kernel, Wp),
        out_shape=jax.ShapeDtypeStruct((B, H2 * Wp, Cout_p), compute_dtype),
        grid_spec=pltpu.PrefetchScalarGridSpec(
            num_scalar_prefetch=0,
            grid=(B, n_h),
            in_specs=[
                # Full (padded) image per batch; the block index is constant along the
                # H-tile axis so it is fetched once per batch and stays VMEM-resident.
                pl.BlockSpec((1, H * Wp, Cin_p), lambda b, t: (b, 0, 0)),
                # Weights / bias: constant block index -> fetched once.
                pl.BlockSpec((9, Cin_p, Cout_p), lambda b, t: (0, 0, 0)),
                pl.BlockSpec((9, Cout_p, Cout_p), lambda b, t: (0, 0, 0)),
                pl.BlockSpec((2, Cout_p), lambda b, t: (0, 0)),
            ],
            out_specs=pl.BlockSpec((1, n_out, Cout_p), lambda b, t: (b, t, 0)),
            scratch_shapes=[pltpu.VMEM((n_mid, Cout_p), compute_dtype)],
        ),
        compiler_params=pltpu.CompilerParams(
            # Both axes independent: lets v7x's two TensorCores split the H tiles even
            # at B=1; near-neutral on v5e/v6e.
            dimension_semantics=("parallel", "parallel"),
            vmem_limit_bytes=_vmem_limit_bytes(),
        ),
        cost_estimate=pl.CostEstimate(flops=flops, transcendentals=0,
                                      bytes_accessed=bytes_accessed),
    )(x_flat, w1, w2, bias)

    # Free reshape; one fused slice+transpose drops padded channels / garbage columns
    # and restores NCHW (no jnp.pad HBM pass).
    out = out_flat.reshape(B, H2, Wp, Cout_p)[:, :, :W2, :Cout]
    return jnp.transpose(out, (0, 3, 1, 2))


# ----------------------------------------------------------------------------
# Pure-JAX reference (for correctness check)
# ----------------------------------------------------------------------------
def _reference(downfeat, upfeat, params):
    _, _, h, w = upfeat.shape
    H, W = 2 * h, 2 * w
    wh = _bilinear_matrix(h, H)
    ww = _bilinear_matrix(w, W)
    up = jnp.einsum("Hh,bchw,Ww->bcHW", wh, upfeat, ww,
                    precision=jax.lax.Precision.HIGHEST)
    d = _center_crop_nchw(downfeat, H, W)
    x = jnp.concatenate([d, up], axis=1)

    def conv(x, wgt, b):
        y = jax.lax.conv_general_dilated(
            x, wgt, (1, 1), "VALID", dimension_numbers=("NCHW", "OIHW", "NCHW"),
            precision=jax.lax.Precision.HIGHEST)
        return y + b[None, :, None, None]

    return conv(conv(x, params["w1"], params["b1"]), params["w2"], params["b2"])


if __name__ == "__main__":
    key = jax.random.PRNGKey(0)
    k1, k2, k3, k4, k5, k6, k7 = jax.random.split(key, 7)

    B = 2
    Cd, Cu, out_chan = 4, 4, 4
    in_chan = Cd + Cu
    h, w = 8, 8          # upfeat spatial -> bilinear x2 -> 16x16
    Hd, Wd = 18, 18      # downfeat spatial (center-cropped to 16x16)

    downfeat = jax.random.normal(k1, (B, Cd, Hd, Wd), jnp.float32)
    upfeat = jax.random.normal(k2, (B, Cu, h, w), jnp.float32)
    params = {
        "w1": 0.1 * jax.random.normal(k3, (out_chan, in_chan, 3, 3), jnp.float32),
        "b1": 0.05 * jax.random.normal(k4, (out_chan,), jnp.float32),
        "w2": 0.1 * jax.random.normal(k5, (out_chan, out_chan, 3, 3), jnp.float32),
        "b2": 0.05 * jax.random.normal(k6, (out_chan,), jnp.float32),
    }

    ref = _reference(downfeat, upfeat, params)

    # f32 path (tight check).
    fwd = jax.jit(functools.partial(up_path_forward, params=params))
    out = fwd(downfeat, upfeat)
    jax.block_until_ready(out)
    assert out.shape == (B, out_chan, 12, 12), out.shape
    assert jnp.allclose(out, ref, atol=1e-3, rtol=1e-3), float(
        jnp.max(jnp.abs(out - ref)))

    # bf16 fast path (f32 MXU accumulation, bf16 activations/weights/output): halves
    # HBM/VMEM traffic, 2x MXU rate. Tolerance is loose because the conv1 intermediate
    # is stored in bf16 in the VMEM scratch.
    fwd_bf16 = jax.jit(functools.partial(up_path_forward, params=params,
                                         compute_dtype=jnp.bfloat16))
    out_bf16 = fwd_bf16(downfeat, upfeat)
    jax.block_until_ready(out_bf16)
    assert out_bf16.shape == (B, out_chan, 12, 12), out_bf16.shape
    assert jnp.allclose(out_bf16.astype(jnp.float32), ref, atol=5e-2, rtol=5e-2), float(
        jnp.max(jnp.abs(out_bf16.astype(jnp.float32) - ref)))

    # Odd crop-delta regression (19x19 skip feature -> 16x16): exercises the exact-size
    # center crop and the garbage-row zeroing path.
    downfeat_odd = jax.random.normal(k7, (B, Cd, 19, 19), jnp.float32)
    out_odd = jax.jit(functools.partial(up_path_forward, params=params))(
        downfeat_odd, upfeat)
    jax.block_until_ready(out_odd)
    ref_odd = _reference(downfeat_odd, upfeat, params)
    assert jnp.allclose(out_odd, ref_odd, atol=1e-3, rtol=1e-3), float(
        jnp.max(jnp.abs(out_odd - ref_odd)))

    print("KERNEL_OK")
</pallas_src>

<mosaic_0001>
module attributes {stable_mosaic.version = 11 : i64} {
  func.func private @main(%arg0: i32) attributes {dimension_semantics = [#tpu.dimension_semantics<core_parallel>], iteration_bounds = array<i64: 2>, tpu.core_type = #tpu.core_type<sc_scalar_subcore>, window_params = []} {
    return
  }
}

module attributes {stable_mosaic.version = 11 : i64} {
  func.func private @main(%arg0: i32) attributes {dimension_semantics = [#tpu.dimension_semantics<core_parallel>], iteration_bounds = array<i64: 2>, tpu.core_type = #tpu.core_type<sc_scalar_subcore>, window_params = []} {
    return
  }
}

module attributes {stable_mosaic.version = 11 : i64} {
  func.func @_fused_double_conv3x3_kernel(%arg0: i32, %arg1: i32, %arg2: memref<1x256x128xf32, #tpu.memory_space<vmem>>, %arg3: memref<9x128x128xf32, #tpu.memory_space<vmem>>, %arg4: memref<9x128x128xf32, #tpu.memory_space<vmem>>, %arg5: memref<2x128xf32, #tpu.memory_space<vmem>>, %arg6: memref<1x96x128xf32, #tpu.memory_space<vmem>>, %arg7: memref<128x128xf32, #tpu.memory_space<vmem>>) attributes {dimension_semantics = [#tpu.dimension_semantics<parallel>, #tpu.dimension_semantics<parallel>], iteration_bounds = array<i64: 2, 2>, scalar_prefetch = 0 : i64, scratch_operands = 1 : i64, tpu.core_type = #tpu.core_type<tc>, window_params = [{transform_indices = @transform_0, window_bounds = array<i64: 1, 256, 128>}, {pipeline_mode = #tpu.pipeline_mode<synchronous>, transform_indices = @transform_1, window_bounds = array<i64: 9, 128, 128>}, {pipeline_mode = #tpu.pipeline_mode<synchronous>, transform_indices = @transform_2, window_bounds = array<i64: 9, 128, 128>}, {pipeline_mode = #tpu.pipeline_mode<synchronous>, transform_indices = @transform_3, window_bounds = array<i64: 2, 128>}, {transform_indices = @transform_4, window_bounds = array<i64: 1, 96, 128>}]} {
    %c96_i32 = arith.constant 96 : i32
    %0 = arith.muli %arg1, %c96_i32 : i32
    %1 = tpu.assume_multiple %0, 8 : i32
    %c0 = arith.constant 0 : index
    %c0_0 = arith.constant 0 : index
    %2 = vector.load %arg5[%c0, %c0_0] : memref<2x128xf32, #tpu.memory_space<vmem>>, vector<1x128xf32>
    %3 = vector.shape_cast %2 : vector<1x128xf32> to vector<1x128xf32>
    %4 = vector.broadcast %3 : vector<1x128xf32> to vector<126x128xf32>
    %c0_i32 = arith.constant 0 : i32
    %5 = arith.addi %1, %c0_i32 : i32
    %c0_1 = arith.constant 0 : index
    %6 = arith.index_cast %5 : i32 to index
    %c0_2 = arith.constant 0 : index
    %7 = vector.load %arg2[%c0_1, %6, %c0_2] : memref<1x256x128xf32, #tpu.memory_space<vmem>>, vector<1x126x128xf32>
    %8 = vector.shape_cast %7 : vector<1x126x128xf32> to vector<126x128xf32>
    %c0_3 = arith.constant 0 : index
    %c0_4 = arith.constant 0 : index
    %c0_5 = arith.constant 0 : index
    %9 = vector.load %arg3[%c0_3, %c0_4, %c0_5] : memref<9x128x128xf32, #tpu.memory_space<vmem>>, vector<1x128x128xf32>
    %10 = vector.shape_cast %9 : vector<1x128x128xf32> to vector<128x128xf32>
    %cst = arith.constant dense<0.000000e+00> : vector<126x128xf32>
    %11 = tpu.matmul %8, %10, %cst {dimension_numbers = #tpu.dot_dimension_numbers<[1], [0], [0], [1], [0, 0, 1, 1], [], []>} : vector<126x128xf32>, vector<128x128xf32>, vector<126x128xf32> -> vector<126x128xf32>
    %12 = arith.addf %4, %11 : vector<126x128xf32>
    %c1_i32 = arith.constant 1 : i32
    %13 = arith.addi %1, %c1_i32 : i32
    %c0_6 = arith.constant 0 : index
    %14 = arith.index_cast %13 : i32 to index
    %c0_7 = arith.constant 0 : index
    %15 = vector.load %arg2[%c0_6, %14, %c0_7] : memref<1x256x128xf32, #tpu.memory_space<vmem>>, vector<1x126x128xf32>
    %16 = vector.shape_cast %15 : vector<1x126x128xf32> to vector<126x128xf32>
    %c1 = arith.constant 1 : index
    %c0_8 = arith.constant 0 : index
    %c0_9 = arith.constant 0 : index
    %17 = vector.load %arg3[%c1, %c0_8, %c0_9] : memref<9x128x128xf32, #tpu.memory_space<vmem>>, vector<1x128x128xf32>
    %18 = vector.shape_cast %17 : vector<1x128x128xf32> to vector<128x128xf32>
    %cst_10 = arith.constant dense<0.000000e+00> : vector<126x128xf32>
    %19 = tpu.matmul %16, %18, %cst_10 {dimension_numbers = #tpu.dot_dimension_numbers<[1], [0], [0], [1], [0, 0, 1, 1], [], []>} : vector<126x128xf32>, vector<128x128xf32>, vector<126x128xf32> -> vector<126x128xf32>
    %20 = arith.addf %12, %19 : vector<126x128xf32>
    %c2_i32 = arith.constant 2 : i32
    %21 = arith.addi %1, %c2_i32 : i32
    %c0_11 = arith.constant 0 : index
    %22 = arith.index_cast %21 : i32 to index
    %c0_12 = arith.constant 0 : index
    %23 = vector.load %arg2[%c0_11, %22, %c0_12] : memref<1x256x128xf32, #tpu.memory_space<vmem>>, vector<1x126x128xf32>
    %24 = vector.shape_cast %23 : vector<1x126x128xf32> to vector<126x128xf32>
    %c2 = arith.constant 2 : index
    %c0_13 = arith.constant 0 : index
    %c0_14 = arith.constant 0 : index
    %25 = vector.load %arg3[%c2, %c0_13, %c0_14] : memref<9x128x128xf32, #tpu.memory_space<vmem>>, vector<1x128x128xf32>
    %26 = vector.shape_cast %25 : vector<1x128x128xf32> to vector<128x128xf32>
    %cst_15 = arith.constant dense<0.000000e+00> : vector<126x128xf32>
    %27 = tpu.matmul %24, %26, %cst_15 {dimension_numbers = #tpu.dot_dimension_numbers<[1], [0], [0], [1], [0, 0, 1, 1], [], []>} : vector<126x128xf32>, vector<128x128xf32>, vector<126x128xf32> -> vector<126x128xf32>
    %28 = arith.addf %20, %27 : vector<126x128xf32>
    %c16_i32 = arith.constant 16 : i32
    %29 = arith.addi %1, %c16_i32 : i32
    %c0_16 = arith.constant 0 : index
    %30 = arith.index_cast %29 : i32 to index
    %c0_17 = arith.constant 0 : index
    %31 = vector.load %arg2[%c0_16, %30, %c0_17] : memref<1x256x128xf32, #tpu.memory_space<vmem>>, vector<1x126x128xf32>
    %32 = vector.shape_cast %31 : vector<1x126x128xf32> to vector<126x128xf32>
    %c3 = arith.constant 3 : index
    %c0_18 = arith.constant 0 : index
    %c0_19 = arith.constant 0 : index
    %33 = vector.load %arg3[%c3, %c0_18, %c0_19] : memref<9x128x128xf32, #tpu.memory_space<vmem>>, vector<1x128x128xf32>
    %34 = vector.shape_cast %33 : vector<1x128x128xf32> to vector<128x128xf32>
    %cst_20 = arith.constant dense<0.000000e+00> : vector<126x128xf32>
    %35 = tpu.matmul %32, %34, %cst_20 {dimension_numbers = #tpu.dot_dimension_numbers<[1], [0], [0], [1], [0, 0, 1, 1], [], []>} : vector<126x128xf32>, vector<128x128xf32>, vector<126x128xf32> -> vector<126x128xf32>
    %36 = arith.addf %28, %35 : vector<126x128xf32>
    %c17_i32 = arith.constant 17 : i32
    %37 = arith.addi %1, %c17_i32 : i32
    %c0_21 = arith.constant 0 : index
    %38 = arith.index_cast %37 : i32 to index
    %c0_22 = arith.constant 0 : index
    %39 = vector.load %arg2[%c0_21, %38, %c0_22] : memref<1x256x128xf32, #tpu.memory_space<vmem>>, vector<1x126x128xf32>
    %40 = vector.shape_cast %39 : vector<1x126x128xf32> to vector<126x128xf32>
    %c4 = arith.constant 4 : index
    %c0_23 = arith.constant 0 : index
    %c0_24 = arith.constant 0 : index
    %41 = vector.load %arg3[%c4, %c0_23, %c0_24] : memref<9x128x128xf32, #tpu.memory_space<vmem>>, vector<1x128x128xf32>
    %42 = vector.shape_cast %41 : vector<1x128x128xf32> to vector<128x128xf32>
    %cst_25 = arith.constant dense<0.000000e+00> : vector<126x128xf32>
    %43 = tpu.matmul %40, %42, %cst_25 {dimension_numbers = #tpu.dot_dimension_numbers<[1], [0], [0], [1], [0, 0, 1, 1], [], []>} : vector<126x128xf32>, vector<128x128xf32>, vector<126x128xf32> -> vector<126x128xf32>
    %44 = arith.addf %36, %43 : vector<126x128xf32>
    %c18_i32 = arith.constant 18 : i32
    %45 = arith.addi %1, %c18_i32 : i32
    %c0_26 = arith.constant 0 : index
    %46 = arith.index_cast %45 : i32 to index
    %c0_27 = arith.constant 0 : index
    %47 = vector.load %arg2[%c0_26, %46, %c0_27] : memref<1x256x128xf32, #tpu.memory_space<vmem>>, vector<1x126x128xf32>
    %48 = vector.shape_cast %47 : vector<1x126x128xf32> to vector<126x128xf32>
    %c5 = arith.constant 5 : index
    %c0_28 = arith.constant 0 : index
    %c0_29 = arith.constant 0 : index
    %49 = vector.load %arg3[%c5, %c0_28, %c0_29] : memref<9x128x128xf32, #tpu.memory_space<vmem>>, vector<1x128x128xf32>
    %50 = vector.shape_cast %49 : vector<1x128x128xf32> to vector<128x128xf32>
    %cst_30 = arith.constant dense<0.000000e+00> : vector<126x128xf32>
    %51 = tpu.matmul %48, %50, %cst_30 {dimension_numbers = #tpu.dot_dimension_numbers<[1], [0], [0], [1], [0, 0, 1, 1], [], []>} : vector<126x128xf32>, vector<128x128xf32>, vector<126x128xf32> -> vector<126x128xf32>
    %52 = arith.addf %44, %51 : vector<126x128xf32>
    %c32_i32 = arith.constant 32 : i32
    %53 = arith.addi %1, %c32_i32 : i32
    %c0_31 = arith.constant 0 : index
    %54 = arith.index_cast %53 : i32 to index
    %c0_32 = arith.constant 0 : index
    %55 = vector.load %arg2[%c0_31, %54, %c0_32] : memref<1x256x128xf32, #tpu.memory_space<vmem>>, vector<1x126x128xf32>
    %56 = vector.shape_cast %55 : vector<1x126x128xf32> to vector<126x128xf32>
    %c6 = arith.constant 6 : index
    %c0_33 = arith.constant 0 : index
    %c0_34 = arith.constant 0 : index
    %57 = vector.load %arg3[%c6, %c0_33, %c0_34] : memref<9x128x128xf32, #tpu.memory_space<vmem>>, vector<1x128x128xf32>
    %58 = vector.shape_cast %57 : vector<1x128x128xf32> to vector<128x128xf32>
    %cst_35 = arith.constant dense<0.000000e+00> : vector<126x128xf32>
    %59 = tpu.matmul %56, %58, %cst_35 {dimension_numbers = #tpu.dot_dimension_numbers<[1], [0], [0], [1], [0, 0, 1, 1], [], []>} : vector<126x128xf32>, vector<128x128xf32>, vector<126x128xf32> -> vector<126x128xf32>
    %60 = arith.addf %52, %59 : vector<126x128xf32>
    %c33_i32 = arith.constant 33 : i32
    %61 = arith.addi %1, %c33_i32 : i32
    %c0_36 = arith.constant 0 : index
    %62 = arith.index_cast %61 : i32 to index
    %c0_37 = arith.constant 0 : index
    %63 = vector.load %arg2[%c0_36, %62, %c0_37] : memref<1x256x128xf32, #tpu.memory_space<vmem>>, vector<1x126x128xf32>
    %64 = vector.shape_cast %63 : vector<1x126x128xf32> to vector<126x128xf32>
    %c7 = arith.constant 7 : index
    %c0_38 = arith.constant 0 : index
    %c0_39 = arith.constant 0 : index
    %65 = vector.load %arg3[%c7, %c0_38, %c0_39] : memref<9x128x128xf32, #tpu.memory_space<vmem>>, vector<1x128x128xf32>
    %66 = vector.shape_cast %65 : vector<1x128x128xf32> to vector<128x128xf32>
    %cst_40 = arith.constant dense<0.000000e+00> : vector<126x128xf32>
    %67 = tpu.matmul %64, %66, %cst_40 {dimension_numbers = #tpu.dot_dimension_numbers<[1], [0], [0], [1], [0, 0, 1, 1], [], []>} : vector<126x128xf32>, vector<128x128xf32>, vector<126x128xf32> -> vector<126x128xf32>
    %68 = arith.addf %60, %67 : vector<126x128xf32>
    %c34_i32 = arith.constant 34 : i32
    %69 = arith.addi %1, %c34_i32 : i32
    %c0_41 = arith.constant 0 : index
    %70 = arith.index_cast %69 : i32 to index
    %c0_42 = arith.constant 0 : index
    %71 = vector.load %arg2[%c0_41, %70, %c0_42] : memref<1x256x128xf32, #tpu.memory_space<vmem>>, vector<1x126x128xf32>
    %72 = vector.shape_cast %71 : vector<1x126x128xf32> to vector<126x128xf32>
    %c8 = arith.constant 8 : index
    %c0_43 = arith.constant 0 : index
    %c0_44 = arith.constant 0 : index
    %73 = vector.load %arg3[%c8, %c0_43, %c0_44] : memref<9x128x128xf32, #tpu.memory_space<vmem>>, vector<1x128x128xf32>
    %74 = vector.shape_cast %73 : vector<1x128x128xf32> to vector<128x128xf32>
    %cst_45 = arith.constant dense<0.000000e+00> : vector<126x128xf32>
    %75 = tpu.matmul %72, %74, %cst_45 {dimension_numbers = #tpu.dot_dimension_numbers<[1], [0], [0], [1], [0, 0, 1, 1], [], []>} : vector<126x128xf32>, vector<128x128xf32>, vector<126x128xf32> -> vector<126x128xf32>
    %76 = arith.addf %68, %75 : vector<126x128xf32>
    %c0_46 = arith.constant 0 : index
    %c0_47 = arith.constant 0 : index
    %77 = vector.load %arg7[%c0_46, %c0_47] : memref<128x128xf32, #tpu.memory_space<vmem>>, vector<126x128xf32>
    tpu.vector_store %arg7[%c0_46, %c0_47], %76 {strides = array<i32>} : memref<128x128xf32, #tpu.memory_space<vmem>>, vector<126x128xf32>,
    %cst_48 = arith.constant 0.000000e+00 : f32
    %78 = vector.broadcast %cst_48 : f32 to vector<2x128xf32>
    %c126 = arith.constant 126 : index
    %c0_49 = arith.constant 0 : index
    %79 = vector.load %arg7[%c126, %c0_49] : memref<128x128xf32, #tpu.memory_space<vmem>>, vector<2x128xf32>
    tpu.vector_store %arg7[%c126, %c0_49], %78 {strides = array<i32>} : memref<128x128xf32, #tpu.memory_space<vmem>>, vector<2x128xf32>,
    %c1_50 = arith.constant 1 : index
    %c0_51 = arith.constant 0 : index
    %80 = vector.load %arg5[%c1_50, %c0_51] : memref<2x128xf32, #tpu.memory_space<vmem>>, vector<1x128xf32>
    %81 = vector.shape_cast %80 : vector<1x128xf32> to vector<1x128xf32>
    %82 = vector.broadcast %81 : vector<1x128xf32> to vector<94x128xf32>
    %c0_52 = arith.constant 0 : index
    %c0_53 = arith.constant 0 : index
    %83 = vector.load %arg7[%c0_52, %c0_53] : memref<128x128xf32, #tpu.memory_space<vmem>>, vector<94x128xf32>
    %c0_54 = arith.constant 0 : index
    %c0_55 = arith.constant 0 : index
    %c0_56 = arith.constant 0 : index
    %84 = vector.load %arg4[%c0_54, %c0_55, %c0_56] : memref<9x128x128xf32, #tpu.memory_space<vmem>>, vector<1x128x128xf32>
    %85 = vector.shape_cast %84 : vector<1x128x128xf32> to vector<128x128xf32>
    %cst_57 = arith.constant dense<0.000000e+00> : vector<94x128xf32>
    %86 = tpu.matmul %83, %85, %cst_57 {dimension_numbers = #tpu.dot_dimension_numbers<[1], [0], [0], [1], [0, 0, 1, 1], [], []>} : vector<94x128xf32>, vector<128x128xf32>, vector<94x128xf32> -> vector<94x128xf32>
    %87 = arith.addf %82, %86 : vector<94x128xf32>
    %c1_58 = arith.constant 1 : index
    %c0_59 = arith.constant 0 : index
    %88 = vector.load %arg7[%c1_58, %c0_59] : memref<128x128xf32, #tpu.memory_space<vmem>>, vector<94x128xf32>
    %c1_60 = arith.constant 1 : index
    %c0_61 = arith.constant 0 : index
    %c0_62 = arith.constant 0 : index
    %89 = vector.load %arg4[%c1_60, %c0_61, %c0_62] : memref<9x128x128xf32, #tpu.memory_space<vmem>>, vector<1x128x128xf32>
    %90 = vector.shape_cast %89 : vector<1x128x128xf32> to vector<128x128xf32>
    %cst_63 = arith.constant dense<0.000000e+00> : vector<94x128xf32>
    %91 = tpu.matmul %88, %90, %cst_63 {dimension_numbers = #tpu.dot_dimension_numbers<[1], [0], [0], [1], [0, 0, 1, 1], [], []>} : vector<94x128xf32>, vector<128x128xf32>, vector<94x128xf32> -> vector<94x128xf32>
    %92 = arith.addf %87, %91 : vector<94x128xf32>
    %c2_64 = arith.constant 2 : index
    %c0_65 = arith.constant 0 : index
    %93 = vector.load %arg7[%c2_64, %c0_65] : memref<128x128xf32, #tpu.memory_space<vmem>>, vector<94x128xf32>
    %c2_66 = arith.constant 2 : index
    %c0_67 = arith.constant 0 : index
    %c0_68 = arith.constant 0 : index
    %94 = vector.load %arg4[%c2_66, %c0_67, %c0_68] : memref<9x128x128xf32, #tpu.memory_space<vmem>>, vector<1x128x128xf32>
    %95 = vector.shape_cast %94 : vector<1x128x128xf32> to vector<128x128xf32>
    %cst_69 = arith.constant dense<0.000000e+00> : vector<94x128xf32>
    %96 = tpu.matmul %93, %95, %cst_69 {dimension_numbers = #tpu.dot_dimension_numbers<[1], [0], [0], [1], [0, 0, 1, 1], [], []>} : vector<94x128xf32>, vector<128x128xf32>, vector<94x128xf32> -> vector<94x128xf32>
    %97 = arith.addf %92, %96 : vector<94x128xf32>
    %c16 = arith.constant 16 : index
    %c0_70 = arith.constant 0 : index
    %98 = vector.load %arg7[%c16, %c0_70] : memref<128x128xf32, #tpu.memory_space<vmem>>, vector<94x128xf32>
    %c3_71 = arith.constant 3 : index
    %c0_72 = arith.constant 0 : index
    %c0_73 = arith.constant 0 : index
    %99 = vector.load %arg4[%c3_71, %c0_72, %c0_73] : memref<9x128x128xf32, #tpu.memory_space<vmem>>, vector<1x128x128xf32>
    %100 = vector.shape_cast %99 : vector<1x128x128xf32> to vector<128x128xf32>
    %cst_74 = arith.constant dense<0.000000e+00> : vector<94x128xf32>
    %101 = tpu.matmul %98, %100, %cst_74 {dimension_numbers = #tpu.dot_dimension_numbers<[1], [0], [0], [1], [0, 0, 1, 1], [], []>} : vector<94x128xf32>, vector<128x128xf32>, vector<94x128xf32> -> vector<94x128xf32>
    %102 = arith.addf %97, %101 : vector<94x128xf32>
    %c17 = arith.constant 17 : index
    %c0_75 = arith.constant 0 : index
    %103 = vector.load %arg7[%c17, %c0_75] : memref<128x128xf32, #tpu.memory_space<vmem>>, vector<94x128xf32>
    %c4_76 = arith.constant 4 : index
    %c0_77 = arith.constant 0 : index
    %c0_78 = arith.constant 0 : index
    %104 = vector.load %arg4[%c4_76, %c0_77, %c0_78] : memref<9x128x128xf32, #tpu.memory_space<vmem>>, vector<1x128x128xf32>
    %105 = vector.shape_cast %104 : vector<1x128x128xf32> to vector<128x128xf32>
    %cst_79 = arith.constant dense<0.000000e+00> : vector<94x128xf32>
    %106 = tpu.matmul %103, %105, %cst_79 {dimension_numbers = #tpu.dot_dimension_numbers<[1], [0], [0], [1], [0, 0, 1, 1], [], []>} : vector<94x128xf32>, vector<128x128xf32>, vector<94x128xf32> -> vector<94x128xf32>
    %107 = arith.addf %102, %106 : vector<94x128xf32>
    %c18 = arith.constant 18 : index
    %c0_80 = arith.constant 0 : index
    %108 = vector.load %arg7[%c18, %c0_80] : memref<128x128xf32, #tpu.memory_space<vmem>>, vector<94x128xf32>
    %c5_81 = arith.constant 5 : index
    %c0_82 = arith.constant 0 : index
    %c0_83 = arith.constant 0 : index
    %109 = vector.load %arg4[%c5_81, %c0_82, %c0_83] : memref<9x128x128xf32, #tpu.memory_space<vmem>>, vector<1x128x128xf32>
    %110 = vector.shape_cast %109 : vector<1x128x128xf32> to vector<128x128xf32>
    %cst_84 = arith.constant dense<0.000000e+00> : vector<94x128xf32>
    %111 = tpu.matmul %108, %110, %cst_84 {dimension_numbers = #tpu.dot_dimension_numbers<[1], [0], [0], [1], [0, 0, 1, 1], [], []>} : vector<94x128xf32>, vector<128x128xf32>, vector<94x128xf32> -> vector<94x128xf32>
    %112 = arith.addf %107, %111 : vector<94x128xf32>
    %c32 = arith.constant 32 : index
    %c0_85 = arith.constant 0 : index
    %113 = vector.load %arg7[%c32, %c0_85] : memref<128x128xf32, #tpu.memory_space<vmem>>, vector<94x128xf32>
    %c6_86 = arith.constant 6 : index
    %c0_87 = arith.constant 0 : index
    %c0_88 = arith.constant 0 : index
    %114 = vector.load %arg4[%c6_86, %c0_87, %c0_88] : memref<9x128x128xf32, #tpu.memory_space<vmem>>, vector<1x128x128xf32>
    %115 = vector.shape_cast %114 : vector<1x128x128xf32> to vector<128x128xf32>
    %cst_89 = arith.constant dense<0.000000e+00> : vector<94x128xf32>
    %116 = tpu.matmul %113, %115, %cst_89 {dimension_numbers = #tpu.dot_dimension_numbers<[1], [0], [0], [1], [0, 0, 1, 1], [], []>} : vector<94x128xf32>, vector<128x128xf32>, vector<94x128xf32> -> vector<94x128xf32>
    %117 = arith.addf %112, %116 : vector<94x128xf32>
    %c33 = arith.constant 33 : index
    %c0_90 = arith.constant 0 : index
    %118 = vector.load %arg7[%c33, %c0_90] : memref<128x128xf32, #tpu.memory_space<vmem>>, vector<94x128xf32>
    %c7_91 = arith.constant 7 : index
    %c0_92 = arith.constant 0 : index
    %c0_93 = arith.constant 0 : index
    %119 = vector.load %arg4[%c7_91, %c0_92, %c0_93] : memref<9x128x128xf32, #tpu.memory_space<vmem>>, vector<1x128x128xf32>
    %120 = vector.shape_cast %119 : vector<1x128x128xf32> to vector<128x128xf32>
    %cst_94 = arith.constant dense<0.000000e+00> : vector<94x128xf32>
    %121 = tpu.matmul %118, %120, %cst_94 {dimension_numbers = #tpu.dot_dimension_numbers<[1], [0], [0], [1], [0, 0, 1, 1], [], []>} : vector<94x128xf32>, vector<128x128xf32>, vector<94x128xf32> -> vector<94x128xf32>
    %122 = arith.addf %117, %121 : vector<94x128xf32>
    %c34 = arith.constant 34 : index
    %c0_95 = arith.constant 0 : index
    %123 = vector.load %arg7[%c34, %c0_95] : memref<128x128xf32, #tpu.memory_space<vmem>>, vector<94x128xf32>
    %c8_96 = arith.constant 8 : index
    %c0_97 = arith.constant 0 : index
    %c0_98 = arith.constant 0 : index
    %124 = vector.load %arg4[%c8_96, %c0_97, %c0_98] : memref<9x128x128xf32, #tpu.memory_space<vmem>>, vector<1x128x128xf32>
    %125 = vector.shape_cast %124 : vector<1x128x128xf32> to vector<128x128xf32>
    %cst_99 = arith.constant dense<0.000000e+00> : vector<94x128xf32>
    %126 = tpu.matmul %123, %125, %cst_99 {dimension_numbers = #tpu.dot_dimension_numbers<[1], [0], [0], [1], [0, 0, 1, 1], [], []>} : vector<94x128xf32>, vector<128x128xf32>, vector<94x128xf32> -> vector<94x128xf32>
    %127 = arith.addf %122, %126 : vector<94x128xf32>
    %c0_100 = arith.constant 0 : index
    %c0_101 = arith.constant 0 : index
    %c0_102 = arith.constant 0 : index
    %128 = vector.load %arg6[%c0_100, %c0_101, %c0_102] : memref<1x96x128xf32, #tpu.memory_space<vmem>>, vector<1x94x128xf32>
    %129 = vector.shape_cast %128 : vector<1x94x128xf32> to vector<94x128xf32>
    %130 = vector.shape_cast %127 : vector<94x128xf32> to vector<1x94x128xf32>
    tpu.vector_store %arg6[%c0_100, %c0_101, %c0_102], %130 {strides = array<i32>} : memref<1x96x128xf32, #tpu.memory_space<vmem>>, vector<1x94x128xf32>,
    %cst_103 = arith.constant 0.000000e+00 : f32
    %131 = vector.broadcast %cst_103 : f32 to vector<2x128xf32>
    %c0_104 = arith.constant 0 : index
    %c94 = arith.constant 94 : index
    %c0_105 = arith.constant 0 : index
    %132 = vector.load %arg6[%c0_104, %c94, %c0_105] : memref<1x96x128xf32, #tpu.memory_space<vmem>>, vector<1x2x128xf32>
    %133 = vector.shape_cast %132 : vector<1x2x128xf32> to vector<2x128xf32>
    %134 = vector.shape_cast %131 : vector<2x128xf32> to vector<1x2x128xf32>
    tpu.vector_store %arg6[%c0_104, %c94, %c0_105], %134 {strides = array<i32>} : memref<1x96x128xf32, #tpu.memory_space<vmem>>, vector<1x2x128xf32>,
    return
  }
  func.func @transform_0(%arg0: i32, %arg1: i32) -> (i32, i32, i32) {
    %c0_i32 = arith.constant 0 : i32
    %c0_i32_0 = arith.constant 0 : i32
    %c0_i32_1 = arith.constant 0 : i32
    return %arg0, %c0_i32, %c0_i32_0 : i32, i32, i32
  }
  func.func @transform_1(%arg0: i32, %arg1: i32) -> (i32, i32, i32) {
    %c0_i32 = arith.constant 0 : i32
    %c0_i32_0 = arith.constant 0 : i32
    %c0_i32_1 = arith.constant 0 : i32
    %c0_i32_2 = arith.constant 0 : i32
    return %c0_i32, %c0_i32_0, %c0_i32_1 : i32, i32, i32
  }
  func.func @transform_2(%arg0: i32, %arg1: i32) -> (i32, i32, i32) {
    %c0_i32 = arith.constant 0 : i32
    %c0_i32_0 = arith.constant 0 : i32
    %c0_i32_1 = arith.constant 0 : i32
    %c0_i32_2 = arith.constant 0 : i32
    return %c0_i32, %c0_i32_0, %c0_i32_1 : i32, i32, i32
  }
  func.func @transform_3(%arg0: i32, %arg1: i32) -> (i32, i32) {
    %c0_i32 = arith.constant 0 : i32
    %c0_i32_0 = arith.constant 0 : i32
    %c0_i32_1 = arith.constant 0 : i32
    return %c0_i32, %c0_i32_0 : i32, i32
  }
  func.func @transform_4(%arg0: i32, %arg1: i32) -> (i32, i32, i32) {
    %c0_i32 = arith.constant 0 : i32
    %c0_i32_0 = arith.constant 0 : i32
    return %arg0, %arg1, %c0_i32 : i32, i32, i32
  }
}

</mosaic_0001>

<llo_original>
// kernel: up_path_forward.1
$region0: #{up_path_forward.1}
  #allocation0 [shape = 'u32[]', space=smem, size = 0x4, offset = 0x4, fixed_abs, tag = 'smem constant byte address 0x4 - core index']
  #allocation1 [shape = 'u32[144,128]{1,0:T(1,128)}', space=vmem, size = 0x12000, scoped, tag = 'internal scratch']
  #allocation2 [shape = 'f32[128,128]{1,0:T(8,128)}', space=vmem, size = 0x10000, scoped, tag = 'scratch operand']
  %s0 = inlined_call_operand.vmem [shape: f32[2,256,128], index: 0, kind: input, shape index: {}]
  %s1 = inlined_call_operand.vmem [shape: f32[9,128,128], index: 1, kind: input, shape index: {}]
  %s2 = inlined_call_operand.vmem [shape: f32[9,128,128], index: 2, kind: input, shape index: {}]
  %s3 = inlined_call_operand.vmem [shape: f32[2,128], index: 3, kind: input, shape index: {}]
  %s4 = inlined_call_operand.vmem [shape: f32[2,192,128], index: 4, kind: output, shape index: {}]
  %s5 = sld [smem:[#allocation0]]
  $region49: #{up_path_forward.1} parent=0
    _
  %s7 = ssub.s32 1, %s5
  %s8 = scalar_select 0, %s7, %s5
  loop: start=0, step=1, limit=6
  $region2: #{up_path_forward.1} parent=0 // loop_pre_header
    _
  $region3: #{up_path_forward.1} parent=0 // loop_header
    %s10 = sphi 0, %s14
    %p11 = scmp.ge.s32.totalorder %s10, 6
    %s17 = sphi 0, %s29
    %s18 = sphi 0, %s25
    %s19 = sphi 0, %s17
    %s20 = sphi 0, %s18
    %s21 = sphi 0, %s19
    %s22 = sphi 0, %s20
    %s32 = sphi 0, %s34
    %s35 = sphi 0, %s32
    %s36 = sphi 0, %s35
    %s52 = sphi 0, %s36
    %s56 = sphi 0, %s56
    %s58 = sphi 0, %s56
    %s59 = sphi 0, %s58
    %s73 = sphi 0, %s59
    %s77 = sphi 0, %s77
    %s79 = sphi 0, %s77
    %s80 = sphi 0, %s79
    %s94 = sphi 0, %s80
    %s98 = sphi 0, %s98
    %s100 = sphi 0, %s98
    %s101 = sphi 0, %s100
    %s115 = sphi 0, %s101
    %s123 = sphi 0, %s125
    %s126 = sphi 0, %s123
    %s127 = sphi 0, %s126
    %s143 = sphi 0, %s127
  $region4: #{up_path_forward.1} parent=0 // loop_header_branch
    %13 = sbr.rel (%p11) target = $region8
  $region5: #{up_path_forward.1} parent=0 // loop_body
    %s15 = ssub.s32 %s10, 1
    %s16 = ssub.s32 %s10, 2
    %s23 = sadd.s32 1, %s18
    %p24 = scmp.ge.s32.totalorder %s23, 2
    %s25 = scalar_select %p24, 0, %s23
    %s26 = sadd.s32 1, %s17
    %s27 = scalar_select %p24, %s26, %s17
    %p28 = scmp.ge.s32.totalorder %s27, 2
    %s29 = scalar_select %p28, 0, %s27
    %s30 = ssub.s32 %s17, %s29
    %p31 = scmp.eq.s32.totalorder %s30, 0
    %s33 = sadd.s32 %s32, 1
    %s34 = scalar_select %p31, %s32, %s33
    %p37 = pneg %p31
    %p38 = scmp.eq.s32.totalorder %s10, 3
    %p39 = por %p37, %p38
    %p40 = scmp.ne.s32.totalorder %s32, %s35
    %p41 = scmp.eq.s32.totalorder %s10, 0
    %p42 = por %p40, %p41
    %p43 = scmp.ne.s32.totalorder %s32, %s35
    %p44 = scmp.eq.s32.totalorder %s15, 3
    %p45 = por %p43, %p44
    %p46 = scmp.ne.s32.totalorder %s35, %s36
    %p47 = scmp.eq.s32.totalorder %s15, 0
    %p48 = por %p46, %p47
    %p49 = scmp.ne.s32.totalorder %s35, %s36
    %p50 = scmp.eq.s32.totalorder %s16, 3
    %p51 = por %p49, %p50
    %p53 = scmp.ne.s32.totalorder %s36, %s52
    %p54 = scmp.eq.s32.totalorder %s16, 0
    %p55 = por %p53, %p54
    %s57 = sadd.s32 %s56, 1
    %p60 = scmp.eq.s32.totalorder %s10, 3
    %p61 = scmp.ne.s32.totalorder %s56, %s58
    %p62 = scmp.eq.s32.totalorder %s10, 0
    %p63 = por %p61, %p62
    %p64 = scmp.ne.s32.totalorder %s56, %s58
    %p65 = scmp.eq.s32.totalorder %s15, 3
    %p66 = por %p64, %p65
    %p67 = scmp.ne.s32.totalorder %s58, %s59
    %p68 = scmp.eq.s32.totalorder %s15, 0
    %p69 = por %p67, %p68
    %p70 = scmp.ne.s32.totalorder %s58, %s59
    %p71 = scmp.eq.s32.totalorder %s16, 3
    %p72 = por %p70, %p71
    %p74 = scmp.ne.s32.totalorder %s59, %s73
    %p75 = scmp.eq.s32.totalorder %s16, 0
    %p76 = por %p74, %p75
    %s78 = sadd.s32 %s77, 1
    %p81 = scmp.eq.s32.totalorder %s10, 3
    %p82 = scmp.ne.s32.totalorder %s77, %s79
    %p83 = scmp.eq.s32.totalorder %s10, 0
    %p84 = por %p82, %p83
    %p85 = scmp.ne.s32.totalorder %s77, %s79
    %p86 = scmp.eq.s32.totalorder %s15, 3
    %p87 = por %p85, %p86
    %p88 = scmp.ne.s32.totalorder %s79, %s80
    %p89 = scmp.eq.s32.totalorder %s15, 0
    %p90 = por %p88, %p89
    %p91 = scmp.ne.s32.totalorder %s79, %s80
    %p92 = scmp.eq.s32.totalorder %s16, 3
    %p93 = por %p91, %p92
    %p95 = scmp.ne.s32.totalorder %s80, %s94
    %p96 = scmp.eq.s32.totalorder %s16, 0
    %p97 = por %p95, %p96
    %s99 = sadd.s32 %s98, 1
    %p102 = scmp.eq.s32.totalorder %s10, 3
    %p103 = scmp.ne.s32.totalorder %s98, %s100
    %p104 = scmp.eq.s32.totalorder %s10, 0
    %p105 = por %p103, %p104
    %p106 = scmp.ne.s32.totalorder %s98, %s100
    %p107 = scmp.eq.s32.totalorder %s15, 3
    %p108 = por %p106, %p107
    %p109 = scmp.ne.s32.totalorder %s100, %s101
    %p110 = scmp.eq.s32.totalorder %s15, 0
    %p111 = por %p109, %p110
    %p112 = scmp.ne.s32.totalorder %s100, %s101
    %p113 = scmp.eq.s32.totalorder %s16, 3
    %p114 = por %p112, %p113
    %p116 = scmp.ne.s32.totalorder %s101, %s115
    %p117 = scmp.eq.s32.totalorder %s16, 0
    %p118 = por %p116, %p117
    %s119 = ssub.s32 %s17, %s29
    %s120 = ssub.s32 %s18, %s25
    %s121 = sor.u32 %s119, %s120
    %p122 = scmp.eq.s32.totalorder %s121, 0
    %s124 = sadd.s32 %s123, 1
    %s125 = scalar_select %p122, %s123, %s124
    %p128 = pneg %p122
    %p129 = scmp.eq.s32.totalorder %s10, 3
    %p130 = por %p128, %p129
    %p131 = scmp.ne.s32.totalorder %s123, %s126
    %p132 = scmp.eq.s32.totalorder %s10, 0
    %p133 = por %p131, %p132
    %p134 = scmp.ne.s32.totalorder %s123, %s126
    %p135 = scmp.eq.s32.totalorder %s15, 3
    %p136 = por %p134, %p135
    %p137 = scmp.ne.s32.totalorder %s126, %s127
    %p138 = scmp.eq.s32.totalorder %s15, 0
    %p139 = por %p137, %p138
    %p140 = scmp.ne.s32.totalorder %s126, %s127
    %p141 = scmp.eq.s32.totalorder %s16, 3
    %p142 = por %p140, %p141
    %p144 = scmp.ne.s32.totalorder %s127, %s143
    %p145 = scmp.eq.s32.totalorder %s16, 0
    %p146 = por %p144, %p145
    %p147 = scmp.le.s32.totalorder 1, %s10
    %p148 = scmp.lt.s32.totalorder %s10, 5
    %p149 = pnand %p147, %p148
    %p150 = pneg %p149
    // Predicated region
    $region9: #{up_path_forward.1} parent=5 // pred_check
      _
    $region10: #{up_path_forward.1} parent=5 // pred_check_branch
      %152 = sbr.rel (%p149) target = $region12
    $region11: #{up_path_forward.1} parent=5 // pred_region
      %s153 = ssub.s32 %s10, 1
      // Predicated region
      $region13: #{up_path_forward.1} parent=11 // pred_check
        %p154 = pneg %p69
      $region14: #{up_path_forward.1} parent=11 // pred_check_branch
        %156 = sbr.rel (%p154) target = $region16
      $region15: #{up_path_forward.1} parent=11 // pred_region
        _
      $region16: #{up_path_forward.1} parent=11 // pred_fallthru
        _
      // Predicated region
      $region17: #{up_path_forward.1} parent=11 // pred_check
        %p157 = pneg %p90
      $region18: #{up_path_forward.1} parent=11 // pred_check_branch
        %159 = sbr.rel (%p157) target = $region20
      $region19: #{up_path_forward.1} parent=11 // pred_region
        _
      $region20: #{up_path_forward.1} parent=11 // pred_fallthru
        _
      // Predicated region
      $region21: #{up_path_forward.1} parent=11 // pred_check
        %p160 = pneg %p111
      $region22: #{up_path_forward.1} parent=11 // pred_check_branch
        %162 = sbr.rel (%p160) target = $region24
      $region23: #{up_path_forward.1} parent=11 // pred_region
        _
      $region24: #{up_path_forward.1} parent=11 // pred_fallthru
        _
    $region12: #{up_path_forward.1} parent=5 // pred_fallthru
      _
    %p163 = scmp.lt.s32.totalorder %s10, 4
    // Predicated region
    $region25: #{up_path_forward.1} parent=5 // pred_check
      %p164 = pneg %p163
    $region26: #{up_path_forward.1} parent=5 // pred_check_branch
      %166 = sbr.rel (%p164) target = $region28
    $region27: #{up_path_forward.1} parent=5 // pred_region
      // Predicated region
      $region29: #{up_path_forward.1} parent=27 // pred_check
        %p167 = pneg %p42
      $region30: #{up_path_forward.1} parent=27 // pred_check_branch
        %169 = sbr.rel (%p167) target = $region32
      $region31: #{up_path_forward.1} parent=27 // pred_region
        %p170 = scmp.lt.s32.totalorder %s17, 1
        %s171 = scalar_select %p170, %s17, 1
        %s172 = smul.addr %s171, 32
        %s173 = smul.addr %s172, 8
        %s174 = scalar_lea.vmem %s0, %s173
      $region32: #{up_path_forward.1} parent=27 // pred_fallthru
        _
    $region28: #{up_path_forward.1} parent=5 // pred_fallthru
      _
    %p175 = scmp.le.s32.totalorder 1, %s10
    %p176 = scmp.lt.s32.totalorder %s10, 5
    %p177 = pnand %p175, %p176
    %p178 = pneg %p177
    // Predicated region
    $region33: #{up_path_forward.1} parent=5 // pred_check
      _
    $region34: #{up_path_forward.1} parent=5 // pred_check_branch
      %180 = sbr.rel (%p177) target = $region36
    $region35: #{up_path_forward.1} parent=5 // pred_region
      %s181 = ssub.s32 %s10, 1
      %p182 = scmp.lt.s32.totalorder %s19, 1
      %s183 = scalar_select %p182, %s19, 1
      %s184 = smul.addr %s183, 32
      %s185 = smul.addr %s184, 8
      %s186 = scalar_lea.vmem %s0, %s185
      %p187 = pneg %p48
      %p188 = pneg %p45
      %p189 = pneg %p69
      %p190 = pneg %p66
      %p191 = pneg %p90
      %p192 = pneg %p87
      %p193 = pneg %p111
      %p194 = pneg %p108
      %p195 = pneg %p139
      %p196 = pneg %p136
      %s197 = smul.u32 12, %s20
      %p198 = scmp.lt.s32.totalorder %s19, 1
      %s199 = scalar_select %p198, %s19, 1
      %p200 = scmp.lt.s32.totalorder %s197, 23
      %s201 = scalar_select %p200, %s197, 23
      %s202 = smul.addr %s199, 24
      %s203 = sadd.s32 %s201, %s202
      %s204 = smul.addr %s203, 8
      %s205 = scalar_lea.vmem %s4, %s204
      %p206 = scmp.lt.s32.totalorder %s19, 1
      %s207 = scalar_select %p206, %s19, 1
      %s208 = smul.addr %s207, 32
      %s209 = smul.addr %s208, 8
      %s210 = scalar_lea.vmem %s0, %s209
      %s211 = smul.u32 12, %s20
      %p212 = scmp.lt.s32.totalorder %s19, 1
      %s213 = scalar_select %p212, %s19, 1
      %p214 = scmp.lt.s32.totalorder %s211, 23
      %s215 = scalar_select %p214, %s211, 23
      %s216 = smul.addr %s213, 24
      %s217 = sadd.s32 %s215, %s216
      %s218 = smul.addr %s217, 8
      %s219 = scalar_lea.vmem %s4, %s218
      %s220 = smul.u32 12, %s20
      %s221 = smul.u32 %s20, 96
      %v222 = vld [vmem:[%s3] sm:$0x1]
      %v223 = vlaneseq
      %v224 = vshrl.u32 %v223, 7
      %v225 = vsub.s32 0, %v224
      %v226 = vrot.slane %v222, %v225
      %s227 = scalar_lea.vmem %s210, %s221
      %v228 = vld [vmem:[%s227] sm:$0xff]
      %v229 = vld [vmem:[%s227 + $0x8] sm:$0xff]
      %v230 = vld [vmem:[%s227 + $0x10] sm:$0xff]
      %v231 = vld [vmem:[%s227 + $0x18] sm:$0xff]
      %v232 = vld [vmem:[%s227 + $0x20] sm:$0xff]
      %v233 = vld [vmem:[%s227 + $0x28] sm:$0xff]
      %v234 = vld [vmem:[%s227 + $0x30] sm:$0xff]
      %v235 = vld [vmem:[%s227 + $0x38] sm:$0xff]
      %v236 = vld [vmem:[%s227 + $0x40] sm:$0xff]
      %v237 = vld [vmem:[%s227 + $0x48] sm:$0xff]
      %v238 = vld [vmem:[%s227 + $0x50] sm:$0xff]
      %v239 = vld [vmem:[%s227 + $0x58] sm:$0xff]
      %v240 = vld [vmem:[%s227 + $0x60] sm:$0xff]
      %v241 = vld [vmem:[%s227 + $0x68] sm:$0xff]
      %v242 = vld [vmem:[%s227 + $0x70] sm:$0xff]
      %v243 = vld [vmem:[%s227 + $0x78] sm:$0x3f]
      %v244 = vld [vmem:[%s1] sm:$0xff]
      %v245 = vld [vmem:[%s1 + $0x8] sm:$0xff]
      %v246 = vld [vmem:[%s1 + $0x10] sm:$0xff]
      %v247 = vld [vmem:[%s1 + $0x18] sm:$0xff]
      %v248 = vld [vmem:[%s1 + $0x20] sm:$0xff]
      %v249 = vld [vmem:[%s1 + $0x28] sm:$0xff]
      %v250 = vld [vmem:[%s1 + $0x30] sm:$0xff]
      %v251 = vld [vmem:[%s1 + $0x38] sm:$0xff]
      %v252 = vld [vmem:[%s1 + $0x40] sm:$0xff]
      %v253 = vld [vmem:[%s1 + $0x48] sm:$0xff]
      %v254 = vld [vmem:[%s1 + $0x50] sm:$0xff]
      %v255 = vld [vmem:[%s1 + $0x58] sm:$0xff]
      %v256 = vld [vmem:[%s1 + $0x60] sm:$0xff]
      %v257 = vld [vmem:[%s1 + $0x68] sm:$0xff]
      %v258 = vld [vmem:[%s1 + $0x70] sm:$0xff]
      %v259 = vld [vmem:[%s1 + $0x78] sm:$0xff]
      %260 = vmatprep.subr.mxu0 0.0
      %261 = vmatpush1.msra.mxu0 %v244
      %262 = vmatprep.subr.mxu0 0.0
      %263 = vmatpush1.msra.mxu0 %v245
      %264 = vmatprep.subr.mxu0 0.0
      %265 = vmatpush1.msra.mxu0 %v246
      %266 = vmatprep.subr.mxu0 0.0
      %267 = vmatpush1.msra.mxu0 %v247
      %268 = vmatprep.subr.mxu0 0.0
      %269 = vmatpush1.msra.mxu0 %v248
      %270 = vmatprep.subr.mxu0 0.0
      %271 = vmatpush1.msra.mxu0 %v249
      %272 = vmatprep.subr.mxu0 0.0
      %273 = vmatpush1.msra.mxu0 %v250
      %274 = vmatprep.subr.mxu0 0.0
      %275 = vmatpush1.msra.mxu0 %v251
      %276 = vmatprep.subr.mxu0 0.0
      %277 = vmatpush1.msra.mxu0 %v252
      %278 = vmatprep.subr.mxu0 0.0
      %279 = vmatpush1.msra.mxu0 %v253
      %280 = vmatprep.subr.mxu0 0.0
      %281 = vmatpush1.msra.mxu0 %v254
      %282 = vmatprep.subr.mxu0 0.0
      %283 = vmatpush1.msra.mxu0 %v255
      %284 = vmatprep.subr.mxu0 0.0
      %285 = vmatpush1.msra.mxu0 %v256
      %286 = vmatprep.subr.mxu0 0.0
      %287 = vmatpush1.msra.mxu0 %v257
      %288 = vmatprep.subr.mxu0 0.0
      %289 = vmatpush1.msra.mxu0 %v258
      %290 = vmatprep.subr.mxu0 0.0
      %291 = vmatpush1.msra.mxu0 %v259
      %292 = vmatprep.subr.mxu0 0.0
      %293 = vmatpush1.msra.mxu0 0.0
      %294 = vmatprep.subr.mxu0 0.0
      %295 = vmatpush1.msra.mxu0 0.0
      %296 = vmatprep.subr.mxu0 0.0
      %297 = vmatpush1.msra.mxu0 0.0
      %298 = vmatprep.subr.mxu0 0.0
      %299 = vmatpush1.msra.mxu0 0.0
      %300 = vmatprep.subr.mxu0 0.0
      %301 = vmatpush1.msra.mxu0 0.0
      %302 = vmatprep.subr.mxu0 0.0
      %303 = vmatpush1.msra.mxu0 0.0
      %304 = vmatprep.subr.mxu0 0.0
      %305 = vmatpush1.msra.mxu0 0.0
      %306 = vmatprep.subr.mxu0 0.0
      %307 = vmatpush1.msra.mxu0 0.0
      %308 = vmatprep.subr.mxu0 0.0
      %309 = vmatpush1.msra.mxu0 0.0
      %310 = vmatprep.subr.mxu0 0.0
      %311 = vmatpush1.msra.mxu0 0.0
      %312 = vmatprep.subr.mxu0 0.0
      %313 = vmatpush1.msra.mxu0 0.0
      %314 = vmatprep.subr.mxu0 0.0
      %315 = vmatpush1.msra.mxu0 0.0
      %316 = vmatprep.subr.mxu0 0.0
      %317 = vmatpush1.msra.mxu0 0.0
      %318 = vmatprep.subr.mxu0 0.0
      %319 = vmatpush1.msra.mxu0 0.0
      %320 = vmatprep.subr.mxu0 0.0
      %321 = vmatpush1.msra.mxu0 0.0
      %322 = vmatprep.subr.mxu0 0.0
      %323 = vmatpush1.msra.mxu0 0.0
      %324 = vmatprep.mubr.f32.mxu0 0.0
      %325 = vmatmul.mubr.f32.gmra.mrb[0].mxu0 %v228
      %v326 = vpop.f32.mrb[0].mxu0
      %v327 = vadd.f32 0.0, %v326
      %v328 = vpop.f32.mrb[0].mxu0
      %329 = vmatprep.mubr.f32.mxu0 0.0
      %330 = vmatmul.mubr.f32.gmra.mrb[0].mxu0 %v229
      %v331 = vpop.f32.mrb[0].mxu0
      %v332 = vadd.f32 0.0, %v331
      %v333 = vpop.f32.mrb[0].mxu0
      %334 = vmatprep.mubr.f32.mxu0 0.0
      %335 = vmatmul.mubr.f32.gmra.mrb[0].mxu0 %v230
      %v336 = vpop.f32.mrb[0].mxu0
      %v337 = vadd.f32 0.0, %v336
      %v338 = vpop.f32.mrb[0].mxu0
      %339 = vmatprep.mubr.f32.mxu0 0.0
      %340 = vmatmul.mubr.f32.gmra.mrb[0].mxu0 %v231
      %v341 = vpop.f32.mrb[0].mxu0
      %v342 = vadd.f32 0.0, %v341
      %v343 = vpop.f32.mrb[0].mxu0
      %344 = vmatprep.mubr.f32.mxu0 0.0
      %345 = vmatmul.mubr.f32.gmra.mrb[0].mxu0 %v232
      %v346 = vpop.f32.mrb[0].mxu0
      %v347 = vadd.f32 0.0, %v346
      %v348 = vpop.f32.mrb[0].mxu0
      %349 = vmatprep.mubr.f32.mxu0 0.0
      %350 = vmatmul.mubr.f32.gmra.mrb[0].mxu0 %v233
      %v351 = vpop.f32.mrb[0].mxu0
      %v352 = vadd.f32 0.0, %v351
      %v353 = vpop.f32.mrb[0].mxu0
      %354 = vmatprep.mubr.f32.mxu0 0.0
      %355 = vmatmul.mubr.f32.gmra.mrb[0].mxu0 %v234
      %v356 = vpop.f32.mrb[0].mxu0
      %v357 = vadd.f32 0.0, %v356
      %v358 = vpop.f32.mrb[0].mxu0
      %359 = vmatprep.mubr.f32.mxu0 0.0
      %360 = vmatmul.mubr.f32.gmra.mrb[0].mxu0 %v235
      %v361 = vpop.f32.mrb[0].mxu0
      %v362 = vadd.f32 0.0, %v361
      %v363 = vpop.f32.mrb[0].mxu0
      %364 = vmatprep.mubr.f32.mxu0 0.0
      %365 = vmatmul.mubr.f32.gmra.mrb[0].mxu0 %v236
      %v366 = vpop.f32.mrb[0].mxu0
      %v367 = vadd.f32 0.0, %v366
      %v368 = vpop.f32.mrb[0].mxu0
      %369 = vmatprep.mubr.f32.mxu0 0.0
      %370 = vmatmul.mubr.f32.gmra.mrb[0].mxu0 %v237
      %v371 = vpop.f32.mrb[0].mxu0
      %v372 = vadd.f32 0.0, %v371
      %v373 = vpop.f32.mrb[0].mxu0
      %374 = vmatprep.mubr.f32.mxu0 0.0
      %375 = vmatmul.mubr.f32.gmra.mrb[0].mxu0 %v238
      %v376 = vpop.f32.mrb[0].mxu0
      %v377 = vadd.f32 0.0, %v376
      %v378 = vpop.f32.mrb[0].mxu0
      %379 = vmatprep.mubr.f32.mxu0 0.0
      %380 = vmatmul.mubr.f32.gmra.mrb[0].mxu0 %v239
      %v381 = vpop.f32.mrb[0].mxu0
      %v382 = vadd.f32 0.0, %v381
      %v383 = vpop.f32.mrb[0].mxu0
      %384 = vmatprep.mubr.f32.mxu0 0.0
      %385 = vmatmul.mubr.f32.gmra.mrb[0].mxu0 %v240
      %v386 = vpop.f32.mrb[0].mxu0
      %v387 = vadd.f32 0.0, %v386
      %v388 = vpop.f32.mrb[0].mxu0
      %389 = vmatprep.mubr.f32.mxu0 0.0
      %390 = vmatmul.mubr.f32.gmra.mrb[0].mxu0 %v241
      %v391 = vpop.f32.mrb[0].mxu0
      %v392 = vadd.f32 0.0, %v391
      %v393 = vpop.f32.mrb[0].mxu0
      %394 = vmatprep.mubr.f32.mxu0 0.0
      %395 = vmatmul.mubr.f32.gmra.mrb[0].mxu0 %v242
      %v396 = vpop.f32.mrb[0].mxu0
      %v397 = vadd.f32 0.0, %v396
      %v398 = vpop.f32.mrb[0].mxu0
      %399 = vmatprep.mubr.f32.mxu0 0.0
      %400 = vmatmul.mubr.f32.gmra.mrb[0].mxu0 %v243
      %v401 = vpop.f32.mrb[0].mxu0
      %v402 = vadd.f32 0.0, %v401
      %v403 = vpop.f32.mrb[0].mxu0
      %404 = vdwg.mxu0
      %v405 = vadd.f32 %v226, %v327
      %v406 = vadd.f32 %v226, %v332
      %v407 = vadd.f32 %v226, %v337
      %v408 = vadd.f32 %v226, %v342
      %v409 = vadd.f32 %v226, %v347
      %v410 = vadd.f32 %v226, %v352
      %v411 = vadd.f32 %v226, %v357
      %v412 = vadd.f32 %v226, %v362
      %v413 = vadd.f32 %v226, %v367
      %v414 = vadd.f32 %v226, %v372
      %v415 = vadd.f32 %v226, %v377
      %v416 = vadd.f32 %v226, %v382
      %v417 = vadd.f32 %v226, %v387
      %v418 = vadd.f32 %v226, %v392
      %v419 = vadd.f32 %v226, %v397
      %v420 = vadd.f32 %v226, %v402
      %s421 = sadd.s32 %s221, 1
      %s422 = scalar_lea.vmem %s210, %s421
      %v423 = vld [vmem:[%s422] sm:$0xff]
      %v424 = vld [vmem:[%s422 + $0x8] sm:$0xff]
      %v425 = vld [vmem:[%s422 + $0x10] sm:$0xff]
      %v426 = vld [vmem:[%s422 + $0x18] sm:$0xff]
      %v427 = vld [vmem:[%s422 + $0x20] sm:$0xff]
      %v428 = vld [vmem:[%s422 + $0x28] sm:$0xff]
      %v429 = vld [vmem:[%s422 + $0x30] sm:$0xff]
      %v430 = vld [vmem:[%s422 + $0x38] sm:$0xff]
      %v431 = vld [vmem:[%s422 + $0x40] sm:$0xff]
      %v432 = vld [vmem:[%s422 + $0x48] sm:$0xff]
      %v433 = vld [vmem:[%s422 + $0x50] sm:$0xff]
      %v434 = vld [vmem:[%s422 + $0x58] sm:$0xff]
      %v435 = vld [vmem:[%s422 + $0x60] sm:$0xff]
      %v436 = vld [vmem:[%s422 + $0x68] sm:$0xff]
      %v437 = vld [vmem:[%s422 + $0x70] sm:$0xff]
      %v438 = vld [vmem:[%s422 + $0x78] sm:$0x3f]
      %s439 = scalar_lea.vmem %s1, 128
      %v440 = vld [vmem:[%s439] sm:$0xff]
      %v441 = vld [vmem:[%s439 + $0x8] sm:$0xff]
      %v442 = vld [vmem:[%s439 + $0x10] sm:$0xff]
      %v443 = vld [vmem:[%s439 + $0x18] sm:$0xff]
      %v444 = vld [vmem:[%s439 + $0x20] sm:$0xff]
      %v445 = vld [vmem:[%s439 + $0x28] sm:$0xff]
      %v446 = vld [vmem:[%s439 + $0x30] sm:$0xff]
      %v447 = vld [vmem:[%s439 + $0x38] sm:$0xff]
      %v448 = vld [vmem:[%s439 + $0x40] sm:$0xff]
      %v449 = vld [vmem:[%s439 + $0x48] sm:$0xff]
      %v450 = vld [vmem:[%s439 + $0x50] sm:$0xff]
      %v451 = vld [vmem:[%s439 + $0x58] sm:$0xff]
      %v452 = vld [vmem:[%s439 + $0x60] sm:$0xff]
      %v453 = vld [vmem:[%s439 + $0x68] sm:$0xff]
      %v454 = vld [vmem:[%s439 + $0x70] sm:$0xff]
      %v455 = vld [vmem:[%s439 + $0x78] sm:$0xff]
      %456 = vmatprep.subr.mxu0 0.0
      %457 = vmatpush1.msra.mxu0 %v440
      %458 = vmatprep.subr.mxu0 0.0
      %459 = vmatpush1.msra.mxu0 %v441
      %460 = vmatprep.subr.mxu0 0.0
      %461 = vmatpush1.msra.mxu0 %v442
      %462 = vmatprep.subr.mxu0 0.0
      %463 = vmatpush1.msra.mxu0 %v443
      %464 = vmatprep.subr.mxu0 0.0
      %465 = vmatpush1.msra.mxu0 %v444
      %466 = vmatprep.subr.mxu0 0.0
      %467 = vmatpush1.msra.mxu0 %v445
      %468 = vmatprep.subr.mxu0 0.0
      %469 = vmatpush1.msra.mxu0 %v446
      %470 = vmatprep.subr.mxu0 0.0
      %471 = vmatpush1.msra.mxu0 %v447
      %472 = vmatprep.subr.mxu0 0.0
      %473 = vmatpush1.msra.mxu0 %v448
      %474 = vmatprep.subr.mxu0 0.0
      %475 = vmatpush1.msra.mxu0 %v449
      %476 = vmatprep.subr.mxu0 0.0
      %477 = vmatpush1.msra.mxu0 %v450
      %478 = vmatprep.subr.mxu0 0.0
      %479 = vmatpush1.msra.mxu0 %v451
      %480 = vmatprep.subr.mxu0 0.0
      %481 = vmatpush1.msra.mxu0 %v452
      %482 = vmatprep.subr.mxu0 0.0
      %483 = vmatpush1.msra.mxu0 %v453
      %484 = vmatprep.subr.mxu0 0.0
      %485 = vmatpush1.msra.mxu0 %v454
      %486 = vmatprep.subr.mxu0 0.0
      %487 = vmatpush1.msra.mxu0 %v455
      %488 = vmatprep.subr.mxu0 0.0
      %489 = vmatpush1.msra.mxu0 0.0
      %490 = vmatprep.subr.mxu0 0.0
      %491 = vmatpush1.msra.mxu0 0.0
      %492 = vmatprep.subr.mxu0 0.0
      %493 = vmatpush1.msra.mxu0 0.0
      %494 = vmatprep.subr.mxu0 0.0
      %495 = vmatpush1.msra.mxu0 0.0
      %496 = vmatprep.subr.mxu0 0.0
      %497 = vmatpush1.msra.mxu0 0.0
      %498 = vmatprep.subr.mxu0 0.0
      %499 = vmatpush1.msra.mxu0 0.0
      %500 = vmatprep.subr.mxu0 0.0
      %501 = vmatpush1.msra.mxu0 0.0
      %502 = vmatprep.subr.mxu0 0.0
      %503 = vmatpush1.msra.mxu0 0.0
      %504 = vmatprep.subr.mxu0 0.0
      %505 = vmatpush1.msra.mxu0 0.0
      %506 = vmatprep.subr.mxu0 0.0
      %507 = vmatpush1.msra.mxu0 0.0
      %508 = vmatprep.subr.mxu0 0.0
      %509 = vmatpush1.msra.mxu0 0.0
      %510 = vmatprep.subr.mxu0 0.0
      %511 = vmatpush1.msra.mxu0 0.0
      %512 = vmatprep.subr.mxu0 0.0
      %513 = vmatpush1.msra.mxu0 0.0
      %514 = vmatprep.subr.mxu0 0.0
      %515 = vmatpush1.msra.mxu0 0.0
      %516 = vmatprep.subr.mxu0 0.0
      %517 = vmatpush1.msra.mxu0 0.0
      %518 = vmatprep.subr.mxu0 0.0
      %519 = vmatpush1.msra.mxu0 0.0
      %520 = vmatprep.mubr.f32.mxu0 0.0
      %521 = vmatmul.mubr.f32.gmra.mrb[0].mxu0 %v423
      %v522 = vpop.f32.mrb[0].mxu0
      %v523 = vadd.f32 0.0, %v522
      %v524 = vpop.f32.mrb[0].mxu0
      %525 = vmatprep.mubr.f32.mxu0 0.0
      %526 = vmatmul.mubr.f32.gmra.mrb[0].mxu0 %v424
      %v527 = vpop.f32.mrb[0].mxu0
      %v528 = vadd.f32 0.0, %v527
      %v529 = vpop.f32.mrb[0].mxu0
      %530 = vmatprep.mubr.f32.mxu0 0.0
      %531 = vmatmul.mubr.f32.gmra.mrb[0].mxu0 %v425
      %v532 = vpop.f32.mrb[0].mxu0
      %v533 = vadd.f32 0.0, %v532
      %v534 = vpop.f32.mrb[0].mxu0
      %535 = vmatprep.mubr.f32.mxu0 0.0
      %536 = vmatmul.mubr.f32.gmra.mrb[0].mxu0 %v426
      %v537 = vpop.f32.mrb[0].mxu0
      %v538 = vadd.f32 0.0, %v537
      %v539 = vpop.f32.mrb[0].mxu0
      %540 = vmatprep.mubr.f32.mxu0 0.0
      %541 = vmatmul.mubr.f32.gmra.mrb[0].mxu0 %v427
      %v542 = vpop.f32.mrb[0].mxu0
      %v543 = vadd.f32 0.0, %v542
      %v544 = vpop.f32.mrb[0].mxu0
      %545 = vmatprep.mubr.f32.mxu0 0.0
      %546 = vmatmul.mubr.f32.gmra.mrb[0].mxu0 %v428
      %v547 = vpop.f32.mrb[0].mxu0
      %v548 = vadd.f32 0.0, %v547
      %v549 = vpop.f32.mrb[0].mxu0
      %550 = vmatprep.mubr.f32.mxu0 0.0
      %551 = vmatmul.mubr.f32.gmra.mrb[0].mxu0 %v429
      %v552 = vpop.f32.mrb[0].mxu0
      %v553 = vadd.f32 0.0, %v552
      %v554 = vpop.f32.mrb[0].mxu0
      %555 = vmatprep.mubr.f32.mxu0 0.0
      %556 = vmatmul.mubr.f32.gmra.mrb[0].mxu0 %v430
      %v557 = vpop.f32.mrb[0].mxu0
      %v558 = vadd.f32 0.0, %v557
      %v559 = vpop.f32.mrb[0].mxu0
      %560 = vmatprep.mubr.f32.mxu0 0.0
      %561 = vmatmul.mubr.f32.gmra.mrb[0].mxu0 %v431
      %v562 = vpop.f32.mrb[0].mxu0
      %v563 = vadd.f32 0.0, %v562
      %v564 = vpop.f32.mrb[0].mxu0
      %565 = vmatprep.mubr.f32.mxu0 0.0
      %566 = vmatmul.mubr.f32.gmra.mrb[0].mxu0 %v432
      %v567 = vpop.f32.mrb[0].mxu0
      %v568 = vadd.f32 0.0, %v567
      %v569 = vpop.f32.mrb[0].mxu0
      %570 = vmatprep.mubr.f32.mxu0 0.0
      %571 = vmatmul.mubr.f32.gmra.mrb[0].mxu0 %v433
      %v572 = vpop.f32.mrb[0].mxu0
      %v573 = vadd.f32 0.0, %v572
      %v574 = vpop.f32.mrb[0].mxu0
      %575 = vmatprep.mubr.f32.mxu0 0.0
      %576 = vmatmul.mubr.f32.gmra.mrb[0].mxu0 %v434
      %v577 = vpop.f32.mrb[0].mxu0
      %v578 = vadd.f32 0.0, %v577
      %v579 = vpop.f32.mrb[0].mxu0
      %580 = vmatprep.mubr.f32.mxu0 0.0
      %581 = vmatmul.mubr.f32.gmra.mrb[0].mxu0 %v435
      %v582 = vpop.f32.mrb[0].mxu0
      %v583 = vadd.f32 0.0, %v582
      %v584 = vpop.f32.mrb[0].mxu0
      %585 = vmatprep.mubr.f32.mxu0 0.0
      %586 = vmatmul.mubr.f32.gmra.mrb[0].mxu0 %v436
      %v587 = vpop.f32.mrb[0].mxu0
      %v588 = vadd.f32 0.0, %v587
      %v589 = vpop.f32.mrb[0].mxu0
      %590 = vmatprep.mubr.f32.mxu0 0.0
      %591 = vmatmul.mubr.f32.gmra.mrb[0].mxu0 %v437
      %v592 = vpop.f32.mrb[0].mxu0
      %v593 = vadd.f32 0.0, %v592
      %v594 = vpop.f32.mrb[0].mxu0
      %595 = vmatprep.mubr.f32.mxu0 0.0
      %596 = vmatmul.mubr.f32.gmra.mrb[0].mxu0 %v438
      %v597 = vpop.f32.mrb[0].mxu0
      %v598 = vadd.f32 0.0, %v597
      %v599 = vpop.f32.mrb[0].mxu0
      %600 = vdwg.mxu0
      %v601 = vadd.f32 %v405, %v523
      %v602 = vadd.f32 %v406, %v528
      %v603 = vadd.f32 %v407, %v533
      %v604 = vadd.f32 %v408, %v538
      %v605 = vadd.f32 %v409, %v543
      %v606 = vadd.f32 %v410, %v548
      %v607 = vadd.f32 %v411, %v553
      %v608 = vadd.f32 %v412, %v558
      %v609 = vadd.f32 %v413, %v563
      %v610 = vadd.f32 %v414, %v568
      %v611 = vadd.f32 %v415, %v573
      %v612 = vadd.f32 %v416, %v578
      %v613 = vadd.f32 %v417, %v583
      %v614 = vadd.f32 %v418, %v588
      %v615 = vadd.f32 %v419, %v593
      %v616 = vadd.f32 %v420, %v598
      %s617 = sadd.s32 %s221, 2
      %s618 = scalar_lea.vmem %s210, %s617
      %v619 = vld [vmem:[%s618] sm:$0xff]
      %v620 = vld [vmem:[%s618 + $0x8] sm:$0xff]
      %v621 = vld [vmem:[%s618 + $0x10] sm:$0xff]
      %v622 = vld [vmem:[%s618 + $0x18] sm:$0xff]
      %v623 = vld [vmem:[%s618 + $0x20] sm:$0xff]
      %v624 = vld [vmem:[%s618 + $0x28] sm:$0xff]
      %v625 = vld [vmem:[%s618 + $0x30] sm:$0xff]
      %v626 = vld [vmem:[%s618 + $0x38] sm:$0xff]
      %v627 = vld [vmem:[%s618 + $0x40] sm:$0xff]
      %v628 = vld [vmem:[%s618 + $0x48] sm:$0xff]
      %v629 = vld [vmem:[%s618 + $0x50] sm:$0xff]
      %v630 = vld [vmem:[%s618 + $0x58] sm:$0xff]
      %v631 = vld [vmem:[%s618 + $0x60] sm:$0xff]
      %v632 = vld [vmem:[%s618 + $0x68] sm:$0xff]
      %v633 = vld [vmem:[%s618 + $0x70] sm:$0xff]
      %v634 = vld [vmem:[%s618 + $0x78] sm:$0x3f]
      %s635 = scalar_lea.vmem %s1, 256
      %v636 = vld [vmem:[%s635] sm:$0xff]
      %v637 = vld [vmem:[%s635 + $0x8] sm:$0xff]
      %v638 = vld [vmem:[%s635 + $0x10] sm:$0xff]
      %v639 = vld [vmem:[%s635 + $0x18] sm:$0xff]
      %v640 = vld [vmem:[%s635 + $0x20] sm:$0xff]
      %v641 = vld [vmem:[%s635 + $0x28] sm:$0xff]
      %v642 = vld [vmem:[%s635 + $0x30] sm:$0xff]
      %v643 = vld [vmem:[%s635 + $0x38] sm:$0xff]
      %v644 = vld [vmem:[%s635 + $0x40] sm:$0xff]
      %v645 = vld [vmem:[%s635 + $0x48] sm:$0xff]
      %v646 = vld [vmem:[%s635 + $0x50] sm:$0xff]
      %v647 = vld [vmem:[%s635 + $0x58] sm:$0xff]
      %v648 = vld [vmem:[%s635 + $0x60] sm:$0xff]
      %v649 = vld [vmem:[%s635 + $0x68] sm:$0xff]
      %v650 = vld [vmem:[%s635 + $0x70] sm:$0xff]
      %v651 = vld [vmem:[%s635 + $0x78] sm:$0xff]
      %652 = vmatprep.subr.mxu0 0.0
      %653 = vmatpush1.msra.mxu0 %v636
      %654 = vmatprep.subr.mxu0 0.0
      %655 = vmatpush1.msra.mxu0 %v637
      %656 = vmatprep.subr.mxu0 0.0
      %657 = vmatpush1.msra.mxu0 %v638
      %658 = vmatprep.subr.mxu0 0.0
      %659 = vmatpush1.msra.mxu0 %v639
      %660 = vmatprep.subr.mxu0 0.0
      %661 = vmatpush1.msra.mxu0 %v640
      %662 = vmatprep.subr.mxu0 0.0
      %663 = vmatpush1.msra.mxu0 %v641
      %664 = vmatprep.subr.mxu0 0.0
      %665 = vmatpush1.msra.mxu0 %v642
      %666 = vmatprep.subr.mxu0 0.0
      %667 = vmatpush1.msra.mxu0 %v643
      %668 = vmatprep.subr.mxu0 0.0
      %669 = vmatpush1.msra.mxu0 %v644
      %670 = vmatprep.subr.mxu0 0.0
      %671 = vmatpush1.msra.mxu0 %v645
      %672 = vmatprep.subr.mxu0 0.0
      %673 = vmatpush1.msra.mxu0 %v646
      %674 = vmatprep.subr.mxu0 0.0
      %675 = vmatpush1.msra.mxu0 %v647
      %676 = vmatprep.subr.mxu0 0.0
      %677 = vmatpush1.msra.mxu0 %v648
      %678 = vmatprep.subr.mxu0 0.0
      %679 = vmatpush1.msra.mxu0 %v649
      %680 = vmatprep.subr.mxu0 0.0
      %681 = vmatpush1.msra.mxu0 %v650
      %682 = vmatprep.subr.mxu0 0.0
      %683 = vmatpush1.msra.mxu0 %v651
      %684 = vmatprep.subr.mxu0 0.0
      %685 = vmatpush1.msra.mxu0 0.0
      %686 = vmatprep.subr.mxu0 0.0
      %687 = vmatpush1.msra.mxu0 0.0
      %688 = vmatprep.subr.mxu0 0.0
      %689 = vmatpush1.msra.mxu0 0.0
      %690 = vmatprep.subr.mxu0 0.0
      %691 = vmatpush1.msra.mxu0 0.0
      %692 = vmatprep.subr.mxu0 0.0
      %693 = vmatpush1.msra.mxu0 0.0
      %694 = vmatprep.subr.mxu0 0.0
      %695 = vmatpush1.msra.mxu0 0.0
      %696 = vmatprep.subr.mxu0 0.0
      %697 = vmatpush1.msra.mxu0 0.0
      %698 = vmatprep.subr.mxu0 0.0
      %699 = vmatpush1.msra.mxu0 0.0
      %700 = vmatprep.subr.mxu0 0.0
      %701 = vmatpush1.msra.mxu0 0.0
      %702 = vmatprep.subr.mxu0 0.0
      %703 = vmatpush1.msra.mxu0 0.0
      %704 = vmatprep.subr.mxu0 0.0
      %705 = vmatpush1.msra.mxu0 0.0
      %706 = vmatprep.subr.mxu0 0.0
      %707 = vmatpush1.msra.mxu0 0.0
      %708 = vmatprep.subr.mxu0 0.0
      %709 = vmatpush1.msra.mxu0 0.0
      %710 = vmatprep.subr.mxu0 0.0
      %711 = vmatpush1.msra.mxu0 0.0
      %712 = vmatprep.subr.mxu0 0.0
      %713 = vmatpush1.msra.mxu0 0.0
      %714 = vmatprep.subr.mxu0 0.0
      %715 = vmatpush1.msra.mxu0 0.0
      %716 = vmatprep.mubr.f32.mxu0 0.0
      %717 = vmatmul.mubr.f32.gmra.mrb[0].mxu0 %v619
      %v718 = vpop.f32.mrb[0].mxu0
      %v719 = vadd.f32 0.0, %v718
      %v720 = vpop.f32.mrb[0].mxu0
      %721 = vmatprep.mubr.f32.mxu0 0.0
      %722 = vmatmul.mubr.f32.gmra.mrb[0].mxu0 %v620
      %v723 = vpop.f32.mrb[0].mxu0
      %v724 = vadd.f32 0.0, %v723
      %v725 = vpop.f32.mrb[0].mxu0
      %726 = vmatprep.mubr.f32.mxu0 0.0
      %727 = vmatmul.mubr.f32.gmra.mrb[0].mxu0 %v621
      %v728 = vpop.f32.mrb[0].mxu0
      %v729 = vadd.f32 0.0, %v728
      %v730 = vpop.f32.mrb[0].mxu0
      %731 = vmatprep.mubr.f32.mxu0 0.0
      %732 = vmatmul.mubr.f32.gmra.mrb[0].mxu0 %v622
      %v733 = vpop.f32.mrb[0].mxu0
      %v734 = vadd.f32 0.0, %v733
      %v735 = vpop.f32.mrb[0].mxu0
      %736 = vmatprep.mubr.f32.mxu0 0.0
      %737 = vmatmul.mubr.f32.gmra.mrb[0].mxu0 %v623
      %v738 = vpop.f32.mrb[0].mxu0
      %v739 = vadd.f32 0.0, %v738
      %v740 = vpop.f32.mrb[0].mxu0
      %741 = vmatprep.mubr.f32.mxu0 0.0
      %742 = vmatmul.mubr.f32.gmra.mrb[0].mxu0 %v624
      %v743 = vpop.f32.mrb[0].mxu0
      %v744 = vadd.f32 0.0, %v743
      %v745 = vpop.f32.mrb[0].mxu0
      %746 = vmatprep.mubr.f32.mxu0 0.0
      %747 = vmatmul.mubr.f32.gmra.mrb[0].mxu0 %v625
      %v748 = vpop.f32.mrb[0].mxu0
      %v749 = vadd.f32 0.0, %v748
      %v750 = vpop.f32.mrb[0].mxu0
      %751 = vmatprep.mubr.f32.mxu0 0.0
      %752 = vmatmul.mubr.f32.gmra.mrb[0].mxu0 %v626
      %v753 = vpop.f32.mrb[0].mxu0
      %v754 = vadd.f32 0.0, %v753
      %v755 = vpop.f32.mrb[0].mxu0
      %756 = vmatprep.mubr.f32.mxu0 0.0
      %757 = vmatmul.mubr.f32.gmra.mrb[0].mxu0 %v627
      %v758 = vpop.f32.mrb[0].mxu0
      %v759 = vadd.f32 0.0, %v758
      %v760 = vpop.f32.mrb[0].mxu0
      %761 = vmatprep.mubr.f32.mxu0 0.0
      %762 = vmatmul.mubr.f32.gmra.mrb[0].mxu0 %v628
      %v763 = vpop.f32.mrb[0].mxu0
      %v764 = vadd.f32 0.0, %v763
      %v765 = vpop.f32.mrb[0].mxu0
      %766 = vmatprep.mubr.f32.mxu0 0.0
      %767 = vmatmul.mubr.f32.gmra.mrb[0].mxu0 %v629
      %v768 = vpop.f32.mrb[0].mxu0
      %v769 = vadd.f32 0.0, %v768
      %v770 = vpop.f32.mrb[0].mxu0
      %771 = vmatprep.mubr.f32.mxu0 0.0
      %772 = vmatmul.mubr.f32.gmra.mrb[0].mxu0 %v630
      %v773 = vpop.f32.mrb[0].mxu0
      %v774 = vadd.f32 0.0, %v773
      %v775 = vpop.f32.mrb[0].mxu0
      %776 = vmatprep.mubr.f32.mxu0 0.0
      %777 = vmatmul.mubr.f32.gmra.mrb[0].mxu0 %v631
      %v778 = vpop.f32.mrb[0].mxu0
      %v779 = vadd.f32 0.0, %v778
      %v780 = vpop.f32.mrb[0].mxu0
      %781 = vmatprep.mubr.f32.mxu0 0.0
      %782 = vmatmul.mubr.f32.gmra.mrb[0].mxu0 %v632
      %v783 = vpop.f32.mrb[0].mxu0
      %v784 = vadd.f32 0.0, %v783
      %v785 = vpop.f32.mrb[0].mxu0
      %786 = vmatprep.mubr.f32.mxu0 0.0
      %787 = vmatmul.mubr.f32.gmra.mrb[0].mxu0 %v633
      %v788 = vpop.f32.mrb[0].mxu0
      %v789 = vadd.f32 0.0, %v788
      %v790 = vpop.f32.mrb[0].mxu0
      %791 = vmatprep.mubr.f32.mxu0 0.0
      %792 = vmatmul.mubr.f32.gmra.mrb[0].mxu0 %v634
      %v793 = vpop.f32.mrb[0].mxu0
      %v794 = vadd.f32 0.0, %v793
      %v795 = vpop.f32.mrb[0].mxu0
      %796 = vdwg.mxu0
      %v797 = vadd.f32 %v601, %v719
      %v798 = vadd.f32 %v602, %v724
      %v799 = vadd.f32 %v603, %v729
      %v800 = vadd.f32 %v604, %v734
      %v801 = vadd.f32 %v605, %v739
      %v802 = vadd.f32 %v606, %v744
      %v803 = vadd.f32 %v607, %v749
      %v804 = vadd.f32 %v608, %v754
      %v805 = vadd.f32 %v609, %v759
      %v806 = vadd.f32 %v610, %v764
      %v807 = vadd.f32 %v611, %v769
      %v808 = vadd.f32 %v612, %v774
      %v809 = vadd.f32 %v613, %v779
      %v810 = vadd.f32 %v614, %v784
      %v811 = vadd.f32 %v615, %v789
      %v812 = vadd.f32 %v616, %v794
      %s813 = sadd.s32 %s221, 16
      %s814 = scalar_lea.vmem %s210, %s813
      %v815 = vld [vmem:[%s814] sm:$0xff]
      %v816 = vld [vmem:[%s814 + $0x8] sm:$0xff]
      %v817 = vld [vmem:[%s814 + $0x10] sm:$0xff]
      %v818 = vld [vmem:[%s814 + $0x18] sm:$0xff]
      %v819 = vld [vmem:[%s814 + $0x20] sm:$0xff]
      %v820 = vld [vmem:[%s814 + $0x28] sm:$0xff]
      %v821 = vld [vmem:[%s814 + $0x30] sm:$0xff]
      %v822 = vld [vmem:[%s814 + $0x38] sm:$0xff]
      %v823 = vld [vmem:[%s814 + $0x40] sm:$0xff]
      %v824 = vld [vmem:[%s814 + $0x48] sm:$0xff]
      %v825 = vld [vmem:[%s814 + $0x50] sm:$0xff]
      %v826 = vld [vmem:[%s814 + $0x58] sm:$0xff]
      %v827 = vld [vmem:[%s814 + $0x60] sm:$0xff]
      %v828 = vld [vmem:[%s814 + $0x68] sm:$0xff]
      %v829 = vld [vmem:[%s814 + $0x70] sm:$0xff]
      %v830 = vld [vmem:[%s814 + $0x78] sm:$0x3f]
      %s831 = scalar_lea.vmem %s1, 384
      %v832 = vld [vmem:[%s831] sm:$0xff]
      %v833 = vld [vmem:[%s831 + $0x8] sm:$0xff]
      %v834 = vld [vmem:[%s831 + $0x10] sm:$0xff]
      %v835 = vld [vmem:[%s831 + $0x18] sm:$0xff]
      %v836 = vld [vmem:[%s831 + $0x20] sm:$0xff]
      %v837 = vld [vmem:[%s831 + $0x28] sm:$0xff]
      %v838 = vld [vmem:[%s831 + $0x30] sm:$0xff]
      %v839 = vld [vmem:[%s831 + $0x38] sm:$0xff]
      %v840 = vld [vmem:[%s831 + $0x40] sm:$0xff]
      %v841 = vld [vmem:[%s831 + $0x48] sm:$0xff]
      %v842 = vld [vmem:[%s831 + $0x50] sm:$0xff]
      %v843 = vld [vmem:[%s831 + $0x58] sm:$0xff]
      %v844 = vld [vmem:[%s831 + $0x60] sm:$0xff]
      %v845 = vld [vmem:[%s831 + $0x68] sm:$0xff]
      %v846 = vld [vmem:[%s831 + $0x70] sm:$0xff]
      %v847 = vld [vmem:[%s831 + $0x78] sm:$0xff]
      %848 = vmatprep.subr.mxu0 0.0
      %849 = vmatpush1.msra.mxu0 %v832
      %850 = vmatprep.subr.mxu0 0.0
      %851 = vmatpush1.msra.mxu0 %v833
      %852 = vmatprep.subr.mxu0 0.0
      %853 = vmatpush1.msra.mxu0 %v834
      %854 = vmatprep.subr.mxu0 0.0
      %855 = vmatpush1.msra.mxu0 %v835
      %856 = vmatprep.subr.mxu0 0.0
      %857 = vmatpush1.msra.mxu0 %v836
      %858 = vmatprep.subr.mxu0 0.0
      %859 = vmatpush1.msra.mxu0 %v837
      %860 = vmatprep.subr.mxu0 0.0
      %861 = vmatpush1.msra.mxu0 %v838
      %862 = vmatprep.subr.mxu0 0.0
      %863 = vmatpush1.msra.mxu0 %v839
      %864 = vmatprep.subr.mxu0 0.0
      %865 = vmatpush1.msra.mxu0 %v840
      %866 = vmatprep.subr.mxu0 0.0
      %867 = vmatpush1.msra.mxu0 %v841
      %868 = vmatprep.subr.mxu0 0.0
      %869 = vmatpush1.msra.mxu0 %v842
      %870 = vmatprep.subr.mxu0 0.0
      %871 = vmatpush1.msra.mxu0 %v843
      %872 = vmatprep.subr.mxu0 0.0
      %873 = vmatpush1.msra.mxu0 %v844
      %874 = vmatprep.subr.mxu0 0.0
      %875 = vmatpush1.msra.mxu0 %v845
      %876 = vmatprep.subr.mxu0 0.0
      %877 = vmatpush1.msra.mxu0 %v846
      %878 = vmatprep.subr.mxu0 0.0
      %879 = vmatpush1.msra.mxu0 %v847
      %880 = vmatprep.subr.mxu0 0.0
      %881 = vmatpush1.msra.mxu0 0.0
      %882 = vmatprep.subr.mxu0 0.0
      %883 = vmatpush1.msra.mxu0 0.0
      %884 = vmatprep.subr.mxu0 0.0
      %885 = vmatpush1.msra.mxu0 0.0
      %886 = vmatprep.subr.mxu0 0.0
      %887 = vmatpush1.msra.mxu0 0.0
      %888 = vmatprep.subr.mxu0 0.0
      %889 = vmatpush1.msra.mxu0 0.0
      %890 = vmatprep.subr.mxu0 0.0
      %891 = vmatpush1.msra.mxu0 0.0
      %892 = vmatprep.subr.mxu0 0.0
      %893 = vmatpush1.msra.mxu0 0.0
      %894 = vmatprep.subr.mxu0 0.0
      %895 = vmatpush1.msra.mxu0 0.0
      %896 = vmatprep.subr.mxu0 0.0
      %897 = vmatpush1.msra.mxu0 0.0
      %898 = vmatprep.subr.mxu0 0.0
      %899 = vmatpush1.msra.mxu0 0.0
      %900 = vmatprep.subr.mxu0 0.0
      %901 = vmatpush1.msra.mxu0 0.0
      %902 = vmatprep.subr.mxu0 0.0
      %903 = vmatpush1.msra.mxu0 0.0
      %904 = vmatprep.subr.mxu0 0.0
      %905 = vmatpush1.msra.mxu0 0.0
      %906 = vmatprep.subr.mxu0 0.0
      %907 = vmatpush1.msra.mxu0 0.0
      %908 = vmatprep.subr.mxu0 0.0
      %909 = vmatpush1.msra.mxu0 0.0
      %910 = vmatprep.subr.mxu0 0.0
      %911 = vmatpush1.msra.mxu0 0.0
      %912 = vmatprep.mubr.f32.mxu0 0.0
      %913 = vmatmul.mubr.f32.gmra.mrb[0].mxu0 %v815
      %v914 = vpop.f32.mrb[0].mxu0
      %v915 = vadd.f32 0.0, %v914
      %v916 = vpop.f32.mrb[0].mxu0
      %917 = vmatprep.mubr.f32.mxu0 0.0
      %918 = vmatmul.mubr.f32.gmra.mrb[0].mxu0 %v816
      %v919 = vpop.f32.mrb[0].mxu0
      %v920 = vadd.f32 0.0, %v919
      %v921 = vpop.f32.mrb[0].mxu0
      %922 = vmatprep.mubr.f32.mxu0 0.0
      %923 = vmatmul.mubr.f32.gmra.mrb[0].mxu0 %v817
      %v924 = vpop.f32.mrb[0].mxu0
      %v925 = vadd.f32 0.0, %v924
      %v926 = vpop.f32.mrb[0].mxu0
      %927 = vmatprep.mubr.f32.mxu0 0.0
      %928 = vmatmul.mubr.f32.gmra.mrb[0].mxu0 %v818
      %v929 = vpop.f32.mrb[0].mxu0
      %v930 = vadd.f32 0.0, %v929
      %v931 = vpop.f32.mrb[0].mxu0
      %932 = vmatprep.mubr.f32.mxu0 0.0
      %933 = vmatmul.mubr.f32.gmra.mrb[0].mxu0 %v819
      %v934 = vpop.f32.mrb[0].mxu0
      %v935 = vadd.f32 0.0, %v934
      %v936 = vpop.f32.mrb[0].mxu0
      %937 = vmatprep.mubr.f32.mxu0 0.0
      %938 = vmatmul.mubr.f32.gmra.mrb[0].mxu0 %v820
      %v939 = vpop.f32.mrb[0].mxu0
      %v940 = vadd.f32 0.0, %v939
      %v941 = vpop.f32.mrb[0].mxu0
      %942 = vmatprep.mubr.f32.mxu0 0.0
      %943 = vmatmul.mubr.f32.gmra.mrb[0].mxu0 %v821
      %v944 = vpop.f32.mrb[0].mxu0
      %v945 = vadd.f32 0.0, %v944
      %v946 = vpop.f32.mrb[0].mxu0
      %947 = vmatprep.mubr.f32.mxu0 0.0
      %948 = vmatmul.mubr.f32.gmra.mrb[0].mxu0 %v822
      %v949 = vpop.f32.mrb[0].mxu0
      %v950 = vadd.f32 0.0, %v949
      %v951 = vpop.f32.mrb[0].mxu0
      %952 = vmatprep.mubr.f32.mxu0 0.0
      %953 = vmatmul.mubr.f32.gmra.mrb[0].mxu0 %v823
      %v954 = vpop.f32.mrb[0].mxu0
      %v955 = vadd.f32 0.0, %v954
      %v956 = vpop.f32.mrb[0].mxu0
      %957 = vmatprep.mubr.f32.mxu0 0.0
      %958 = vmatmul.mubr.f32.gmra.mrb[0].mxu0 %v824
      %v959 = vpop.f32.mrb[0].mxu0
      %v960 = vadd.f32 0.0, %v959
      %v961 = vpop.f32.mrb[0].mxu0
      %962 = vmatprep.mubr.f32.mxu0 0.0
      %963 = vmatmul.mubr.f32.gmra.mrb[0].mxu0 %v825
      %v964 = vpop.f32.mrb[0].mxu0
      %v965 = vadd.f32 0.0, %v964
      %v966 = vpop.f32.mrb[0].mxu0
      %967 = vmatprep.mubr.f32.mxu0 0.0
      %968 = vmatmul.mubr.f32.gmra.mrb[0].mxu0 %v826
      %v969 = vpop.f32.mrb[0].mxu0
      %v970 = vadd.f32 0.0, %v969
      %v971 = vpop.f32.mrb[0].mxu0
      %972 = vmatprep.mubr.f32.mxu0 0.0
      %973 = vmatmul.mubr.f32.gmra.mrb[0].mxu0 %v827
      %v974 = vpop.f32.mrb[0].mxu0
      %v975 = vadd.f32 0.0, %v974
      %v976 = vpop.f32.mrb[0].mxu0
      %977 = vmatprep.mubr.f32.mxu0 0.0
      %978 = vmatmul.mubr.f32.gmra.mrb[0].mxu0 %v828
      %v979 = vpop.f32.mrb[0].mxu0
      %v980 = vadd.f32 0.0, %v979
      %v981 = vpop.f32.mrb[0].mxu0
      %982 = vmatprep.mubr.f32.mxu0 0.0
      %983 = vmatmul.mubr.f32.gmra.mrb[0].mxu0 %v829
      %v984 = vpop.f32.mrb[0].mxu0
      %v985 = vadd.f32 0.0, %v984
      %v986 = vpop.f32.mrb[0].mxu0
      %987 = vmatprep.mubr.f32.mxu0 0.0
      %988 = vmatmul.mubr.f32.gmra.mrb[0].mxu0 %v830
      %v989 = vpop.f32.mrb[0].mxu0
      %v990 = vadd.f32 0.0, %v989
      %v991 = vpop.f32.mrb[0].mxu0
      %992 = vdwg.mxu0
      %v993 = vadd.f32 %v797, %v915
      %v994 = vadd.f32 %v798, %v920
      %v995 = vadd.f32 %v799, %v925
      %v996 = vadd.f32 %v800, %v930
      %v997 = vadd.f32 %v801, %v935
      %v998 = vadd.f32 %v802, %v940
      %v999 = vadd.f32 %v803, %v945
      %v1000 = vadd.f32 %v804, %v950
      %v1001 = vadd.f32 %v805, %v955
      %v1002 = vadd.f32 %v806, %v960
      %v1003 = vadd.f32 %v807, %v965
      %v1004 = vadd.f32 %v808, %v970
      %v1005 = vadd.f32 %v809, %v975
      %v1006 = vadd.f32 %v810, %v980
      %v1007 = vadd.f32 %v811, %v985
      %v1008 = vadd.f32 %v812, %v990
      %s1009 = sadd.s32 %s221, 17
      %s1010 = scalar_lea.vmem %s210, %s1009
      %v1011 = vld [vmem:[%s1010] sm:$0xff]
      %v1012 = vld [vmem:[%s1010 + $0x8] sm:$0xff]
      %v1013 = vld [vmem:[%s1010 + $0x10] sm:$0xff]
      %v1014 = vld [vmem:[%s1010 + $0x18] sm:$0xff]
      %v1015 = vld [vmem:[%s1010 + $0x20] sm:$0xff]
      %v1016 = vld [vmem:[%s1010 + $0x28] sm:$0xff]
      %v1017 = vld [vmem:[%s1010 + $0x30] sm:$0xff]
      %v1018 = vld [vmem:[%s1010 + $0x38] sm:$0xff]
      %v1019 = vld [vmem:[%s1010 + $0x40] sm:$0xff]
      %v1020 = vld [vmem:[%s1010 + $0x48] sm:$0xff]
      %v1021 = vld [vmem:[%s1010 + $0x50] sm:$0xff]
      %v1022 = vld [vmem:[%s1010 + $0x58] sm:$0xff]
      %v1023 = vld [vmem:[%s1010 + $0x60] sm:$0xff]
      %v1024 = vld [vmem:[%s1010 + $0x68] sm:$0xff]
      %v1025 = vld [vmem:[%s1010 + $0x70] sm:$0xff]
      %v1026 = vld [vmem:[%s1010 + $0x78] sm:$0x3f]
      %s1027 = scalar_lea.vmem %s1, 512
      %v1028 = vld [vmem:[%s1027] sm:$0xff]
      %v1029 = vld [vmem:[%s1027 + $0x8] sm:$0xff]
      %v1030 = vld [vmem:[%s1027 + $0x10] sm:$0xff]
      %v1031 = vld [vmem:[%s1027 + $0x18] sm:$0xff]
      %v1032 = vld [vmem:[%s1027 + $0x20] sm:$0xff]
      %v1033 = vld [vmem:[%s1027 + $0x28] sm:$0xff]
      %v1034 = vld [vmem:[%s1027 + $0x30] sm:$0xff]
      %v1035 = vld [vmem:[%s1027 + $0x38] sm:$0xff]
      %v1036 = vld [vmem:[%s1027 + $0x40] sm:$0xff]
      %v1037 = vld [vmem:[%s1027 + $0x48] sm:$0xff]
      %v1038 = vld [vmem:[%s1027 + $0x50] sm:$0xff]
      %v1039 = vld [vmem:[%s1027 + $0x58] sm:$0xff]
      %v1040 = vld [vmem:[%s1027 + $0x60] sm:$0xff]
      %v1041 = vld [vmem:[%s1027 + $0x68] sm:$0xff]
      %v1042 = vld [vmem:[%s1027 + $0x70] sm:$0xff]
      %v1043 = vld [vmem:[%s1027 + $0x78] sm:$0xff]
      %1044 = vmatprep.subr.mxu0 0.0
      %1045 = vmatpush1.msra.mxu0 %v1028
      %1046 = vmatprep.subr.mxu0 0.0
      %1047 = vmatpush1.msra.mxu0 %v1029
      %1048 = vmatprep.subr.mxu0 0.0
      %1049 = vmatpush1.msra.mxu0 %v1030
      %1050 = vmatprep.subr.mxu0 0.0
      %1051 = vmatpush1.msra.mxu0 %v1031
      %1052 = vmatprep.subr.mxu0 0.0
      %1053 = vmatpush1.msra.mxu0 %v1032
      %1054 = vmatprep.subr.mxu0 0.0
      %1055 = vmatpush1.msra.mxu0 %v1033
      %1056 = vmatprep.subr.mxu0 0.0
      %1057 = vmatpush1.msra.mxu0 %v1034
      %1058 = vmatprep.subr.mxu0 0.0
      %1059 = vmatpush1.msra.mxu0 %v1035
      %1060 = vmatprep.subr.mxu0 0.0
      %1061 = vmatpush1.msra.mxu0 %v1036
      %1062 = vmatprep.subr.mxu0 0.0
      %1063 = vmatpush1.msra.mxu0 %v1037
      %1064 = vmatprep.subr.mxu0 0.0
      %1065 = vmatpush1.msra.mxu0 %v1038
      %1066 = vmatprep.subr.mxu0 0.0
      %1067 = vmatpush1.msra.mxu0 %v1039
      %1068 = vmatprep.subr.mxu0 0.0
      %1069 = vmatpush1.msra.mxu0 %v1040
      %1070 = vmatprep.subr.mxu0 0.0
      %1071 = vmatpush1.msra.mxu0 %v1041
      %1072 = vmatprep.subr.mxu0 0.0
      %1073 = vmatpush1.msra.mxu0 %v1042
      %1074 = vmatprep.subr.mxu0 0.0
      %1075 = vmatpush1.msra.mxu0 %v1043
      %1076 = vmatprep.subr.mxu0 0.0
      %1077 = vmatpush1.msra.mxu0 0.0
      %1078 = vmatprep.subr.mxu0 0.0
      %1079 = vmatpush1.msra.mxu0 0.0
      %1080 = vmatprep.subr.mxu0 0.0
      %1081 = vmatpush1.msra.mxu0 0.0
      %1082 = vmatprep.subr.mxu0 0.0
      %1083 = vmatpush1.msra.mxu0 0.0
      %1084 = vmatprep.subr.mxu0 0.0
      %1085 = vmatpush1.msra.mxu0 0.0
      %1086 = vmatprep.subr.mxu0 0.0
      %1087 = vmatpush1.msra.mxu0 0.0
      %1088 = vmatprep.subr.mxu0 0.0
      %1089 = vmatpush1.msra.mxu0 0.0
      %1090 = vmatprep.subr.mxu0 0.0
      %1091 = vmatpush1.msra.mxu0 0.0
      %1092 = vmatprep.subr.mxu0 0.0
      %1093 = vmatpush1.msra.mxu0 0.0
      %1094 = vmatprep.subr.mxu0 0.0
      %1095 = vmatpush1.msra.mxu0 0.0
      %1096 = vmatprep.subr.mxu0 0.0
      %1097 = vmatpush1.msra.mxu0 0.0
      %1098 = vmatprep.subr.mxu0 0.0
      %1099 = vmatpush1.msra.mxu0 0.0
      %1100 = vmatprep.subr.mxu0 0.0
      %1101 = vmatpush1.msra.mxu0 0.0
      %1102 = vmatprep.subr.mxu0 0.0
      %1103 = vmatpush1.msra.mxu0 0.0
      %1104 = vmatprep.subr.mxu0 0.0
      %1105 = vmatpush1.msra.mxu0 0.0
      %1106 = vmatprep.subr.mxu0 0.0
      %1107 = vmatpush1.msra.mxu0 0.0
      %1108 = vmatprep.mubr.f32.mxu0 0.0
      %1109 = vmatmul.mubr.f32.gmra.mrb[0].mxu0 %v1011
      %v1110 = vpop.f32.mrb[0].mxu0
      %v1111 = vadd.f32 0.0, %v1110
      %v1112 = vpop.f32.mrb[0].mxu0
      %1113 = vmatprep.mubr.f32.mxu0 0.0
      %1114 = vmatmul.mubr.f32.gmra.mrb[0].mxu0 %v1012
      %v1115 = vpop.f32.mrb[0].mxu0
      %v1116 = vadd.f32 0.0, %v1115
      %v1117 = vpop.f32.mrb[0].mxu0
      %1118 = vmatprep.mubr.f32.mxu0 0.0
      %1119 = vmatmul.mubr.f32.gmra.mrb[0].mxu0 %v1013
      %v1120 = vpop.f32.mrb[0].mxu0
      %v1121 = vadd.f32 0.0, %v1120
      %v1122 = vpop.f32.mrb[0].mxu0
      %1123 = vmatprep.mubr.f32.mxu0 0.0
      %1124 = vmatmul.mubr.f32.gmra.mrb[0].mxu0 %v1014
      %v1125 = vpop.f32.mrb[0].mxu0
      %v1126 = vadd.f32 0.0, %v1125
      %v1127 = vpop.f32.mrb[0].mxu0
      %1128 = vmatprep.mubr.f32.mxu0 0.0
      %1129 = vmatmul.mubr.f32.gmra.mrb[0].mxu0 %v1015
      %v1130 = vpop.f32.mrb[0].mxu0
      %v1131 = vadd.f32 0.0, %v1130
      %v1132 = vpop.f32.mrb[0].mxu0
      %1133 = vmatprep.mubr.f32.mxu0 0.0
      %1134 = vmatmul.mubr.f32.gmra.mrb[0].mxu0 %v1016
      %v1135 = vpop.f32.mrb[0].mxu0
      %v1136 = vadd.f32 0.0, %v1135
      %v1137 = vpop.f32.mrb[0].mxu0
      %1138 = vmatprep.mubr.f32.mxu0 0.0
      %1139 = vmatmul.mubr.f32.gmra.mrb[0].mxu0 %v1017
      %v1140 = vpop.f32.mrb[0].mxu0
      %v1141 = vadd.f32 0.0, %v1140
      %v1142 = vpop.f32.mrb[0].mxu0
      %1143 = vmatprep.mubr.f32.mxu0 0.0
      %1144 = vmatmul.mubr.f32.gmra.mrb[0].mxu0 %v1018
      %v1145 = vpop.f32.mrb[0].mxu0
      %v1146 = vadd.f32 0.0, %v1145
      %v1147 = vpop.f32.mrb[0].mxu0
      %1148 = vmatprep.mubr.f32.mxu0 0.0
      %1149 = vmatmul.mubr.f32.gmra.mrb[0].mxu0 %v1019
      %v1150 = vpop.f32.mrb[0].mxu0
      %v1151 = vadd.f32 0.0, %v1150
      %v1152 = vpop.f32.mrb[0].mxu0
      %1153 = vmatprep.mubr.f32.mxu0 0.0
      %1154 = vmatmul.mubr.f32.gmra.mrb[0].mxu0 %v1020
      %v1155 = vpop.f32.mrb[0].mxu0
      %v1156 = vadd.f32 0.0, %v1155
      %v1157 = vpop.f32.mrb[0].mxu0
      %1158 = vmatprep.mubr.f32.mxu0 0.0
      %1159 = vmatmul.mubr.f32.gmra.mrb[0].mxu0 %v1021
      %v1160 = vpop.f32.mrb[0].mxu0
      %v1161 = vadd.f32 0.0, %v1160
      %v1162 = vpop.f32.mrb[0].mxu0
      %1163 = vmatprep.mubr.f32.mxu0 0.0
      %1164 = vmatmul.mubr.f32.gmra.mrb[0].mxu0 %v1022
      %v1165 = vpop.f32.mrb[0].mxu0
      %v1166 = vadd.f32 0.0, %v1165
      %v1167 = vpop.f32.mrb[0].mxu0
      %1168 = vmatprep.mubr.f32.mxu0 0.0
      %1169 = vmatmul.mubr.f32.gmra.mrb[0].mxu0 %v1023
      %v1170 = vpop.f32.mrb[0].mxu0
      %v1171 = vadd.f32 0.0, %v1170
      %v1172 = vpop.f32.mrb[0].mxu0
      %1173 = vmatprep.mubr.f32.mxu0 0.0
      %1174 = vmatmul.mubr.f32.gmra.mrb[0].mxu0 %v1024
      %v1175 = vpop.f32.mrb[0].mxu0
      %v1176 = vadd.f32 0.0, %v1175
      %v1177 = vpop.f32.mrb[0].mxu0
      %1178 = vmatprep.mubr.f32.mxu0 0.0
      %1179 = vmatmul.mubr.f32.gmra.mrb[0].mxu0 %v1025
      %v1180 = vpop.f32.mrb[0].mxu0
      %v1181 = vadd.f32 0.0, %v1180
      %v1182 = vpop.f32.mrb[0].mxu0
      %1183 = vmatprep.mubr.f32.mxu0 0.0
      %1184 = vmatmul.mubr.f32.gmra.mrb[0].mxu0 %v1026
      %v1185 = vpop.f32.mrb[0].mxu0
      %v1186 = vadd.f32 0.0, %v1185
      %v1187 = vpop.f32.mrb[0].mxu0
      %1188 = vdwg.mxu0
      %v1189 = vadd.f32 %v993, %v1111
      %v1190 = vadd.f32 %v994, %v1116
      %v1191 = vadd.f32 %v995, %v1121
      %v1192 = vadd.f32 %v996, %v1126
      %v1193 = vadd.f32 %v997, %v1131
      %v1194 = vadd.f32 %v998, %v1136
      %v1195 = vadd.f32 %v999, %v1141
      %v1196 = vadd.f32 %v1000, %v1146
      %v1197 = vadd.f32 %v1001, %v1151
      %v1198 = vadd.f32 %v1002, %v1156
      %v1199 = vadd.f32 %v1003, %v1161
      %v1200 = vadd.f32 %v1004, %v1166
      %v1201 = vadd.f32 %v1005, %v1171
      %v1202 = vadd.f32 %v1006, %v1176
      %v1203 = vadd.f32 %v1007, %v1181
      %v1204 = vadd.f32 %v1008, %v1186
      %s1205 = sadd.s32 %s221, 18
      %s1206 = scalar_lea.vmem %s210, %s1205
      %v1207 = vld [vmem:[%s1206] sm:$0xff]
      %v1208 = vld [vmem:[%s1206 + $0x8] sm:$0xff]
      %v1209 = vld [vmem:[%s1206 + $0x10] sm:$0xff]
      %v1210 = vld [vmem:[%s1206 + $0x18] sm:$0xff]
      %v1211 = vld [vmem:[%s1206 + $0x20] sm:$0xff]
      %v1212 = vld [vmem:[%s1206 + $0x28] sm:$0xff]
      %v1213 = vld [vmem:[%s1206 + $0x30] sm:$0xff]
      %v1214 = vld [vmem:[%s1206 + $0x38] sm:$0xff]
      %v1215 = vld [vmem:[%s1206 + $0x40] sm:$0xff]
      %v1216 = vld [vmem:[%s1206 + $0x48] sm:$0xff]
      %v1217 = vld [vmem:[%s1206 + $0x50] sm:$0xff]
      %v1218 = vld [vmem:[%s1206 + $0x58] sm:$0xff]
      %v1219 = vld [vmem:[%s1206 + $0x60] sm:$0xff]
      %v1220 = vld [vmem:[%s1206 + $0x68] sm:$0xff]
      %v1221 = vld [vmem:[%s1206 + $0x70] sm:$0xff]
      %v1222 = vld [vmem:[%s1206 + $0x78] sm:$0x3f]
      %s1223 = scalar_lea.vmem %s1, 640
      %v1224 = vld [vmem:[%s1223] sm:$0xff]
      %v1225 = vld [vmem:[%s1223 + $0x8] sm:$0xff]
      %v1226 = vld [vmem:[%s1223 + $0x10] sm:$0xff]
      %v1227 = vld [vmem:[%s1223 + $0x18] sm:$0xff]
      %v1228 = vld [vmem:[%s1223 + $0x20] sm:$0xff]
      %v1229 = vld [vmem:[%s1223 + $0x28] sm:$0xff]
      %v1230 = vld [vmem:[%s1223 + $0x30] sm:$0xff]
      %v1231 = vld [vmem:[%s1223 + $0x38] sm:$0xff]
      %v1232 = vld [vmem:[%s1223 + $0x40] sm:$0xff]
      %v1233 = vld [vmem:[%s1223 + $0x48] sm:$0xff]
      %v1234 = vld [vmem:[%s1223 + $0x50] sm:$0xff]
      %v1235 = vld [vmem:[%s1223 + $0x58] sm:$0xff]
      %v1236 = vld [vmem:[%s1223 + $0x60] sm:$0xff]
      %v1237 = vld [vmem:[%s1223 + $0x68] sm:$0xff]
      %v1238 = vld [vmem:[%s1223 + $0x70] sm:$0xff]
      %v1239 = vld [vmem:[%s1223 + $0x78] sm:$0xff]
      %1240 = vmatprep.subr.mxu0 0.0
      %1241 = vmatpush1.msra.mxu0 %v1224
      %1242 = vmatprep.subr.mxu0 0.0
      %1243 = vmatpush1.msra.mxu0 %v1225
      %1244 = vmatprep.subr.mxu0 0.0
      %1245 = vmatpush1.msra.mxu0 %v1226
      %1246 = vmatprep.subr.mxu0 0.0
      %1247 = vmatpush1.msra.mxu0 %v1227
      %1248 = vmatprep.subr.mxu0 0.0
      %1249 = vmatpush1.msra.mxu0 %v1228
      %1250 = vmatprep.subr.mxu0 0.0
      %1251 = vmatpush1.msra.mxu0 %v1229
      %1252 = vmatprep.subr.mxu0 0.0
      %1253 = vmatpush1.msra.mxu0 %v1230
      %1254 = vmatprep.subr.mxu0 0.0
      %1255 = vmatpush1.msra.mxu0 %v1231
      %1256 = vmatprep.subr.mxu0 0.0
      %1257 = vmatpush1.msra.mxu0 %v1232
      %1258 = vmatprep.subr.mxu0 0.0
      %1259 = vmatpush1.msra.mxu0 %v1233
      %1260 = vmatprep.subr.mxu0 0.0
      %1261 = vmatpush1.msra.mxu0 %v1234
      %1262 = vmatprep.subr.mxu0 0.0
      %1263 = vmatpush1.msra.mxu0 %v1235
      %1264 = vmatprep.subr.mxu0 0.0
      %1265 = vmatpush1.msra.mxu0 %v1236
      %1266 = vmatprep.subr.mxu0 0.0
      %1267 = vmatpush1.msra.mxu0 %v1237
      %1268 = vmatprep.subr.mxu0 0.0
      %1269 = vmatpush1.msra.mxu0 %v1238
      %1270 = vmatprep.subr.mxu0 0.0
      %1271 = vmatpush1.msra.mxu0 %v1239
      %1272 = vmatprep.subr.mxu0 0.0
      %1273 = vmatpush1.msra.mxu0 0.0
      %1274 = vmatprep.subr.mxu0 0.0
      %1275 = vmatpush1.msra.mxu0 0.0
      %1276 = vmatprep.subr.mxu0 0.0
      %1277 = vmatpush1.msra.mxu0 0.0
      %1278 = vmatprep.subr.mxu0 0.0
      %1279 = vmatpush1.msra.mxu0 0.0
      %1280 = vmatprep.subr.mxu0 0.0
      %1281 = vmatpush1.msra.mxu0 0.0
      %1282 = vmatprep.subr.mxu0 0.0
      %1283 = vmatpush1.msra.mxu0 0.0
      %1284 = vmatprep.subr.mxu0 0.0
      %1285 = vmatpush1.msra.mxu0 0.0
      %1286 = vmatprep.subr.mxu0 0.0
      %1287 = vmatpush1.msra.mxu0 0.0
      %1288 = vmatprep.subr.mxu0 0.0
      %1289 = vmatpush1.msra.mxu0 0.0
      %1290 = vmatprep.subr.mxu0 0.0
      %1291 = vmatpush1.msra.mxu0 0.0
      %1292 = vmatprep.subr.mxu0 0.0
      %1293 = vmatpush1.msra.mxu0 0.0
      %1294 = vmatprep.subr.mxu0 0.0
      %1295 = vmatpush1.msra.mxu0 0.0
      %1296 = vmatprep.subr.mxu0 0.0
      %1297 = vmatpush1.msra.mxu0 0.0
      %1298 = vmatprep.subr.mxu0 0.0
      %1299 = vmatpush1.msra.mxu0 0.0
      %1300 = vmatprep.subr.mxu0 0.0
      %1301 = vmatpush1.msra.mxu0 0.0
      %1302 = vmatprep.subr.mxu0 0.0
      %1303 = vmatpush1.msra.mxu0 0.0
      %1304 = vmatprep.mubr.f32.mxu0 0.0
      %1305 = vmatmul.mubr.f32.gmra.mrb[0].mxu0 %v1207
      %v1306 = vpop.f32.mrb[0].mxu0
      %v1307 = vadd.f32 0.0, %v1306
      %v1308 = vpop.f32.mrb[0].mxu0
      %1309 = vmatprep.mubr.f32.mxu0 0.0
      %1310 = vmatmul.mubr.f32.gmra.mrb[0].mxu0 %v1208
      %v1311 = vpop.f32.mrb[0].mxu0
      %v1312 = vadd.f32 0.0, %v1311
      %v1313 = vpop.f32.mrb[0].mxu0
      %1314 = vmatprep.mubr.f32.mxu0 0.0
      %1315 = vmatmul.mubr.f32.gmra.mrb[0].mxu0 %v1209
      %v1316 = vpop.f32.mrb[0].mxu0
      %v1317 = vadd.f32 0.0, %v1316
      %v1318 = vpop.f32.mrb[0].mxu0
      %1319 = vmatprep.mubr.f32.mxu0 0.0
      %1320 = vmatmul.mubr.f32.gmra.mrb[0].mxu0 %v1210
      %v1321 = vpop.f32.mrb[0].mxu0
      %v1322 = vadd.f32 0.0, %v1321
      %v1323 = vpop.f32.mrb[0].mxu0
      %1324 = vmatprep.mubr.f32.mxu0 0.0
      %1325 = vmatmul.mubr.f32.gmra.mrb[0].mxu0 %v1211
      %v1326 = vpop.f32.mrb[0].mxu0
      %v1327 = vadd.f32 0.0, %v1326
      %v1328 = vpop.f32.mrb[0].mxu0
      %1329 = vmatprep.mubr.f32.mxu0 0.0
      %1330 = vmatmul.mubr.f32.gmra.mrb[0].mxu0 %v1212
      %v1331 = vpop.f32.mrb[0].mxu0
      %v1332 = vadd.f32 0.0, %v1331
      %v1333 = vpop.f32.mrb[0].mxu0
      %1334 = vmatprep.mubr.f32.mxu0 0.0
      %1335 = vmatmul.mubr.f32.gmra.mrb[0].mxu0 %v1213
      %v1336 = vpop.f32.mrb[0].mxu0
      %v1337 = vadd.f32 0.0, %v1336
      %v1338 = vpop.f32.mrb[0].mxu0
      %1339 = vmatprep.mubr.f32.mxu0 0.0
      %1340 = vmatmul.mubr.f32.gmra.mrb[0].mxu0 %v1214
      %v1341 = vpop.f32.mrb[0].mxu0
      %v1342 = vadd.f32 0.0, %v1341
      %v1343 = vpop.f32.mrb[0].mxu0
      %1344 = vmatprep.mubr.f32.mxu0 0.0
      %1345 = vmatmul.mubr.f32.gmra.mrb[0].mxu0 %v1215
      %v1346 = vpop.f32.mrb[0].mxu0
      %v1347 = vadd.f32 0.0, %v1346
      %v1348 = vpop.f32.mrb[0].mxu0
      %1349 = vmatprep.mubr.f32.mxu0 0.0
      %1350 = vmatmul.mubr.f32.gmra.mrb[0].mxu0 %v1216
      %v1351 = vpop.f32.mrb[0].mxu0
      %v1352 = vadd.f32 0.0, %v1351
      %v1353 = vpop.f32.mrb[0].mxu0
      %1354 = vmatprep.mubr.f32.mxu0 0.0
      %1355 = vmatmul.mubr.f32.gmra.mrb[0].mxu0 %v1217
      %v1356 = vpop.f32.mrb[0].mxu0
      %v1357 = vadd.f32 0.0, %v1356
      %v1358 = vpop.f32.mrb[0].mxu0
      %1359 = vmatprep.mubr.f32.mxu0 0.0
      %1360 = vmatmul.mubr.f32.gmra.mrb[0].mxu0 %v1218
      %v1361 = vpop.f32.mrb[0].mxu0
      %v1362 = vadd.f32 0.0, %v1361
      %v1363 = vpop.f32.mrb[0].mxu0
      %1364 = vmatprep.mubr.f32.mxu0 0.0
      %1365 = vmatmul.mubr.f32.gmra.mrb[0].mxu0 %v1219
      %v1366 = vpop.f32.mrb[0].mxu0
      %v1367 = vadd.f32 0.0, %v1366
      %v1368 = vpop.f32.mrb[0].mxu0
      %1369 = vmatprep.mubr.f32.mxu0 0.0
      %1370 = vmatmul.mubr.f32.gmra.mrb[0].mxu0 %v1220
      %v1371 = vpop.f32.mrb[0].mxu0
      %v1372 = vadd.f32 0.0, %v1371
      %v1373 = vpop.f32.mrb[0].mxu0
      %1374 = vmatprep.mubr.f32.mxu0 0.0
      %1375 = vmatmul.mubr.f32.gmra.mrb[0].mxu0 %v1221
      %v1376 = vpop.f32.mrb[0].mxu0
      %v1377 = vadd.f32 0.0, %v1376
      %v1378 = vpop.f32.mrb[0].mxu0
      %1379 = vmatprep.mubr.f32.mxu0 0.0
      %1380 = vmatmul.mubr.f32.gmra.mrb[0].mxu0 %v1222
      %v1381 = vpop.f32.mrb[0].mxu0
      %v1382 = vadd.f32 0.0, %v1381
      %v1383 = vpop.f32.mrb[0].mxu0
      %1384 = vdwg.mxu0
      %v1385 = vadd.f32 %v1189, %v1307
      %v1386 = vadd.f32 %v1190, %v1312
      %v1387 = vadd.f32 %v1191, %v1317
      %v1388 = vadd.f32 %v1192, %v1322
      %v1389 = vadd.f32 %v1193, %v1327
      %v1390 = vadd.f32 %v1194, %v1332
      %v1391 = vadd.f32 %v1195, %v1337
      %v1392 = vadd.f32 %v1196, %v1342
      %v1393 = vadd.f32 %v1197, %v1347
      %v1394 = vadd.f32 %v1198, %v1352
      %v1395 = vadd.f32 %v1199, %v1357
      %v1396 = vadd.f32 %v1200, %v1362
      %v1397 = vadd.f32 %v1201, %v1367
      %v1398 = vadd.f32 %v1202, %v1372
      %v1399 = vadd.f32 %v1203, %v1377
      %v1400 = vadd.f32 %v1204, %v1382
      %s1401 = sadd.s32 %s221, 32
      %s1402 = scalar_lea.vmem %s210, %s1401
      %v1403 = vld [vmem:[%s1402] sm:$0xff]
      %v1404 = vld [vmem:[%s1402 + $0x8] sm:$0xff]
      %v1405 = vld [vmem:[%s1402 + $0x10] sm:$0xff]
      %v1406 = vld [vmem:[%s1402 + $0x18] sm:$0xff]
      %v1407 = vld [vmem:[%s1402 + $0x20] sm:$0xff]
      %v1408 = vld [vmem:[%s1402 + $0x28] sm:$0xff]
      %v1409 = vld [vmem:[%s1402 + $0x30] sm:$0xff]
      %v1410 = vld [vmem:[%s1402 + $0x38] sm:$0xff]
      %v1411 = vld [vmem:[%s1402 + $0x40] sm:$0xff]
      %v1412 = vld [vmem:[%s1402 + $0x48] sm:$0xff]
      %v1413 = vld [vmem:[%s1402 + $0x50] sm:$0xff]
      %v1414 = vld [vmem:[%s1402 + $0x58] sm:$0xff]
      %v1415 = vld [vmem:[%s1402 + $0x60] sm:$0xff]
      %v1416 = vld [vmem:[%s1402 + $0x68] sm:$0xff]
      %v1417 = vld [vmem:[%s1402 + $0x70] sm:$0xff]
      %v1418 = vld [vmem:[%s1402 + $0x78] sm:$0x3f]
      %s1419 = scalar_lea.vmem %s1, 768
      %v1420 = vld [vmem:[%s1419] sm:$0xff]
      %v1421 = vld [vmem:[%s1419 + $0x8] sm:$0xff]
      %v1422 = vld [vmem:[%s1419 + $0x10] sm:$0xff]
      %v1423 = vld [vmem:[%s1419 + $0x18] sm:$0xff]
      %v1424 = vld [vmem:[%s1419 + $0x20] sm:$0xff]
      %v1425 = vld [vmem:[%s1419 + $0x28] sm:$0xff]
      %v1426 = vld [vmem:[%s1419 + $0x30] sm:$0xff]
      %v1427 = vld [vmem:[%s1419 + $0x38] sm:$0xff]
      %v1428 = vld [vmem:[%s1419 + $0x40] sm:$0xff]
      %v1429 = vld [vmem:[%s1419 + $0x48] sm:$0xff]
      %v1430 = vld [vmem:[%s1419 + $0x50] sm:$0xff]
      %v1431 = vld [vmem:[%s1419 + $0x58] sm:$0xff]
      %v1432 = vld [vmem:[%s1419 + $0x60] sm:$0xff]
      %v1433 = vld [vmem:[%s1419 + $0x68] sm:$0xff]
      %v1434 = vld [vmem:[%s1419 + $0x70] sm:$0xff]
      %v1435 = vld [vmem:[%s1419 + $0x78] sm:$0xff]
      %1436 = vmatprep.subr.mxu0 0.0
      %1437 = vmatpush1.msra.mxu0 %v1420
      %1438 = vmatprep.subr.mxu0 0.0
      %1439 = vmatpush1.msra.mxu0 %v1421
      %1440 = vmatprep.subr.mxu0 0.0
      %1441 = vmatpush1.msra.mxu0 %v1422
      %1442 = vmatprep.subr.mxu0 0.0
      %1443 = vmatpush1.msra.mxu0 %v1423
      %1444 = vmatprep.subr.mxu0 0.0
      %1445 = vmatpush1.msra.mxu0 %v1424
      %1446 = vmatprep.subr.mxu0 0.0
      %1447 = vmatpush1.msra.mxu0 %v1425
      %1448 = vmatprep.subr.mxu0 0.0
      %1449 = vmatpush1.msra.mxu0 %v1426
      %1450 = vmatprep.subr.mxu0 0.0
      %1451 = vmatpush1.msra.mxu0 %v1427
      %1452 = vmatprep.subr.mxu0 0.0
      %1453 = vmatpush1.msra.mxu0 %v1428
      %1454 = vmatprep.subr.mxu0 0.0
      %1455 = vmatpush1.msra.mxu0 %v1429
      %1456 = vmatprep.subr.mxu0 0.0
      %1457 = vmatpush1.msra.mxu0 %v1430
      %1458 = vmatprep.subr.mxu0 0.0
      %1459 = vmatpush1.msra.mxu0 %v1431
      %1460 = vmatprep.subr.mxu0 0.0
      %1461 = vmatpush1.msra.mxu0 %v1432
      %1462 = vmatprep.subr.mxu0 0.0
      %1463 = vmatpush1.msra.mxu0 %v1433
      %1464 = vmatprep.subr.mxu0 0.0
      %1465 = vmatpush1.msra.mxu0 %v1434
      %1466 = vmatprep.subr.mxu0 0.0
      %1467 = vmatpush1.msra.mxu0 %v1435
      %1468 = vmatprep.subr.mxu0 0.0
      %1469 = vmatpush1.msra.mxu0 0.0
      %1470 = vmatprep.subr.mxu0 0.0
      %1471 = vmatpush1.msra.mxu0 0.0
      %1472 = vmatprep.subr.mxu0 0.0
      %1473 = vmatpush1.msra.mxu0 0.0
      %1474 = vmatprep.subr.mxu0 0.0
      %1475 = vmatpush1.msra.mxu0 0.0
      %1476 = vmatprep.subr.mxu0 0.0
      %1477 = vmatpush1.msra.mxu0 0.0
      %1478 = vmatprep.subr.mxu0 0.0
      %1479 = vmatpush1.msra.mxu0 0.0
      %1480 = vmatprep.subr.mxu0 0.0
      %1481 = vmatpush1.msra.mxu0 0.0
      %1482 = vmatprep.subr.mxu0 0.0
      %1483 = vmatpush1.msra.mxu0 0.0
      %1484 = vmatprep.subr.mxu0 0.0
      %1485 = vmatpush1.msra.mxu0 0.0
      %1486 = vmatprep.subr.mxu0 0.0
      %1487 = vmatpush1.msra.mxu0 0.0
      %1488 = vmatprep.subr.mxu0 0.0
      %1489 = vmatpush1.msra.mxu0 0.0
      %1490 = vmatprep.subr.mxu0 0.0
      %1491 = vmatpush1.msra.mxu0 0.0
      %1492 = vmatprep.subr.mxu0 0.0
      %1493 = vmatpush1.msra.mxu0 0.0
      %1494 = vmatprep.subr.mxu0 0.0
      %1495 = vmatpush1.msra.mxu0 0.0
      %1496 = vmatprep.subr.mxu0 0.0
      %1497 = vmatpush1.msra.mxu0 0.0
      %1498 = vmatprep.subr.mxu0 0.0
      %1499 = vmatpush1.msra.mxu0 0.0
      %1500 = vmatprep.mubr.f32.mxu0 0.0
      %1501 = vmatmul.mubr.f32.gmra.mrb[0].mxu0 %v1403
      %v1502 = vpop.f32.mrb[0].mxu0
      %v1503 = vadd.f32 0.0, %v1502
      %v1504 = vpop.f32.mrb[0].mxu0
      %1505 = vmatprep.mubr.f32.mxu0 0.0
      %1506 = vmatmul.mubr.f32.gmra.mrb[0].mxu0 %v1404
      %v1507 = vpop.f32.mrb[0].mxu0
      %v1508 = vadd.f32 0.0, %v1507
      %v1509 = vpop.f32.mrb[0].mxu0
      %1510 = vmatprep.mubr.f32.mxu0 0.0
      %1511 = vmatmul.mubr.f32.gmra.mrb[0].mxu0 %v1405
      %v1512 = vpop.f32.mrb[0].mxu0
      %v1513 = vadd.f32 0.0, %v1512
      %v1514 = vpop.f32.mrb[0].mxu0
      %1515 = vmatprep.mubr.f32.mxu0 0.0
      %1516 = vmatmul.mubr.f32.gmra.mrb[0].mxu0 %v1406
      %v1517 = vpop.f32.mrb[0].mxu0
      %v1518 = vadd.f32 0.0, %v1517
      %v1519 = vpop.f32.mrb[0].mxu0
      %1520 = vmatprep.mubr.f32.mxu0 0.0
      %1521 = vmatmul.mubr.f32.gmra.mrb[0].mxu0 %v1407
      %v1522 = vpop.f32.mrb[0].mxu0
      %v1523 = vadd.f32 0.0, %v1522
      %v1524 = vpop.f32.mrb[0].mxu0
      %1525 = vmatprep.mubr.f32.mxu0 0.0
      %1526 = vmatmul.mubr.f32.gmra.mrb[0].mxu0 %v1408
      %v1527 = vpop.f32.mrb[0].mxu0
      %v1528 = vadd.f32 0.0, %v1527
      %v1529 = vpop.f32.mrb[0].mxu0
      %1530 = vmatprep.mubr.f32.mxu0 0.0
      %1531 = vmatmul.mubr.f32.gmra.mrb[0].mxu0 %v1409
      %v1532 = vpop.f32.mrb[0].mxu0
      %v1533 = vadd.f32 0.0, %v1532
      %v1534 = vpop.f32.mrb[0].mxu0
      %1535 = vmatprep.mubr.f32.mxu0 0.0
      %1536 = vmatmul.mubr.f32.gmra.mrb[0].mxu0 %v1410
      %v1537 = vpop.f32.mrb[0].mxu0
      %v1538 = vadd.f32 0.0, %v1537
      %v1539 = vpop.f32.mrb[0].mxu0
      %1540 = vmatprep.mubr.f32.mxu0 0.0
      %1541 = vmatmul.mubr.f32.gmra.mrb[0].mxu0 %v1411
      %v1542 = vpop.f32.mrb[0].mxu0
      %v1543 = vadd.f32 0.0, %v1542
      %v1544 = vpop.f32.mrb[0].mxu0
      %1545 = vmatprep.mubr.f32.mxu0 0.0
      %1546 = vmatmul.mubr.f32.gmra.mrb[0].mxu0 %v1412
      %v1547 = vpop.f32.mrb[0].mxu0
      %v1548 = vadd.f32 0.0, %v1547
      %v1549 = vpop.f32.mrb[0].mxu0
      %1550 = vmatprep.mubr.f32.mxu0 0.0
      %1551 = vmatmul.mubr.f32.gmra.mrb[0].mxu0 %v1413
      %v1552 = vpop.f32.mrb[0].mxu0
      %v1553 = vadd.f32 0.0, %v1552
      %v1554 = vpop.f32.mrb[0].mxu0
      %1555 = vmatprep.mubr.f32.mxu0 0.0
      %1556 = vmatmul.mubr.f32.gmra.mrb[0].mxu0 %v1414
      %v1557 = vpop.f32.mrb[0].mxu0
      %v1558 = vadd.f32 0.0, %v1557
      %v1559 = vpop.f32.mrb[0].mxu0
      %1560 = vmatprep.mubr.f32.mxu0 0.0
      %1561 = vmatmul.mubr.f32.gmra.mrb[0].mxu0 %v1415
      %v1562 = vpop.f32.mrb[0].mxu0
      %v1563 = vadd.f32 0.0, %v1562
      %v1564 = vpop.f32.mrb[0].mxu0
      %1565 = vmatprep.mubr.f32.mxu0 0.0
      %1566 = vmatmul.mubr.f32.gmra.mrb[0].mxu0 %v1416
      %v1567 = vpop.f32.mrb[0].mxu0
      %v1568 = vadd.f32 0.0, %v1567
      %v1569 = vpop.f32.mrb[0].mxu0
      %1570 = vmatprep.mubr.f32.mxu0 0.0
      %1571 = vmatmul.mubr.f32.gmra.mrb[0].mxu0 %v1417
      %v1572 = vpop.f32.mrb[0].mxu0
      %v1573 = vadd.f32 0.0, %v1572
      %v1574 = vpop.f32.mrb[0].mxu0
      %1575 = vmatprep.mubr.f32.mxu0 0.0
      %1576 = vmatmul.mubr.f32.gmra.mrb[0].mxu0 %v1418
      %v1577 = vpop.f32.mrb[0].mxu0
      %v1578 = vadd.f32 0.0, %v1577
      %v1579 = vpop.f32.mrb[0].mxu0
      %1580 = vdwg.mxu0
      %v1581 = vadd.f32 %v1385, %v1503
      %v1582 = vadd.f32 %v1386, %v1508
      %v1583 = vadd.f32 %v1387, %v1513
      %v1584 = vadd.f32 %v1388, %v1518
      %v1585 = vadd.f32 %v1389, %v1523
      %v1586 = vadd.f32 %v1390, %v1528
      %v1587 = vadd.f32 %v1391, %v1533
      %v1588 = vadd.f32 %v1392, %v1538
      %v1589 = vadd.f32 %v1393, %v1543
      %v1590 = vadd.f32 %v1394, %v1548
      %v1591 = vadd.f32 %v1395, %v1553
      %v1592 = vadd.f32 %v1396, %v1558
      %v1593 = vadd.f32 %v1397, %v1563
      %v1594 = vadd.f32 %v1398, %v1568
      %v1595 = vadd.f32 %v1399, %v1573
      %v1596 = vadd.f32 %v1400, %v1578
      %s1597 = sadd.s32 %s221, 33
      %s1598 = scalar_lea.vmem %s210, %s1597
      %v1599 = vld [vmem:[%s1598] sm:$0xff]
      %v1600 = vld [vmem:[%s1598 + $0x8] sm:$0xff]
      %v1601 = vld [vmem:[%s1598 + $0x10] sm:$0xff]
      %v1602 = vld [vmem:[%s1598 + $0x18] sm:$0xff]
      %v1603 = vld [vmem:[%s1598 + $0x20] sm:$0xff]
      %v1604 = vld [vmem:[%s1598 + $0x28] sm:$0xff]
      %v1605 = vld [vmem:[%s1598 + $0x30] sm:$0xff]
      %v1606 = vld [vmem:[%s1598 + $0x38] sm:$0xff]
      %v1607 = vld [vmem:[%s1598 + $0x40] sm:$0xff]
      %v1608 = vld [vmem:[%s1598 + $0x48] sm:$0xff]
      %v1609 = vld [vmem:[%s1598 + $0x50] sm:$0xff]
      %v1610 = vld [vmem:[%s1598 + $0x58] sm:$0xff]
      %v1611 = vld [vmem:[%s1598 + $0x60] sm:$0xff]
      %v1612 = vld [vmem:[%s1598 + $0x68] sm:$0xff]
      %v1613 = vld [vmem:[%s1598 + $0x70] sm:$0xff]
      %v1614 = vld [vmem:[%s1598 + $0x78] sm:$0x3f]
      %s1615 = scalar_lea.vmem %s1, 896
      %v1616 = vld [vmem:[%s1615] sm:$0xff]
      %v1617 = vld [vmem:[%s1615 + $0x8] sm:$0xff]
      %v1618 = vld [vmem:[%s1615 + $0x10] sm:$0xff]
      %v1619 = vld [vmem:[%s1615 + $0x18] sm:$0xff]
      %v1620 = vld [vmem:[%s1615 + $0x20] sm:$0xff]
      %v1621 = vld [vmem:[%s1615 + $0x28] sm:$0xff]
      %v1622 = vld [vmem:[%s1615 + $0x30] sm:$0xff]
      %v1623 = vld [vmem:[%s1615 + $0x38] sm:$0xff]
      %v1624 = vld [vmem:[%s1615 + $0x40] sm:$0xff]
      %v1625 = vld [vmem:[%s1615 + $0x48] sm:$0xff]
      %v1626 = vld [vmem:[%s1615 + $0x50] sm:$0xff]
      %v1627 = vld [vmem:[%s1615 + $0x58] sm:$0xff]
      %v1628 = vld [vmem:[%s1615 + $0x60] sm:$0xff]
      %v1629 = vld [vmem:[%s1615 + $0x68] sm:$0xff]
      %v1630 = vld [vmem:[%s1615 + $0x70] sm:$0xff]
      %v1631 = vld [vmem:[%s1615 + $0x78] sm:$0xff]
      %1632 = vmatprep.subr.mxu0 0.0
      %1633 = vmatpush1.msra.mxu0 %v1616
      %1634 = vmatprep.subr.mxu0 0.0
      %1635 = vmatpush1.msra.mxu0 %v1617
      %1636 = vmatprep.subr.mxu0 0.0
      %1637 = vmatpush1.msra.mxu0 %v1618
      %1638 = vmatprep.subr.mxu0 0.0
      %1639 = vmatpush1.msra.mxu0 %v1619
      %1640 = vmatprep.subr.mxu0 0.0
      %1641 = vmatpush1.msra.mxu0 %v1620
      %1642 = vmatprep.subr.mxu0 0.0
      %1643 = vmatpush1.msra.mxu0 %v1621
      %1644 = vmatprep.subr.mxu0 0.0
      %1645 = vmatpush1.msra.mxu0 %v1622
      %1646 = vmatprep.subr.mxu0 0.0
      %1647 = vmatpush1.msra.mxu0 %v1623
      %1648 = vmatprep.subr.mxu0 0.0
      %1649 = vmatpush1.msra.mxu0 %v1624
      %1650 = vmatprep.subr.mxu0 0.0
      %1651 = vmatpush1.msra.mxu0 %v1625
      %1652 = vmatprep.subr.mxu0 0.0
      %1653 = vmatpush1.msra.mxu0 %v1626
      %1654 = vmatprep.subr.mxu0 0.0
      %1655 = vmatpush1.msra.mxu0 %v1627
      %1656 = vmatprep.subr.mxu0 0.0
      %1657 = vmatpush1.msra.mxu0 %v1628
      %1658 = vmatprep.subr.mxu0 0.0
      %1659 = vmatpush1.msra.mxu0 %v1629
      %1660 = vmatprep.subr.mxu0 0.0
      %1661 = vmatpush1.msra.mxu0 %v1630
      %1662 = vmatprep.subr.mxu0 0.0
      %1663 = vmatpush1.msra.mxu0 %v1631
      %1664 = vmatprep.subr.mxu0 0.0
      %1665 = vmatpush1.msra.mxu0 0.0
      %1666 = vmatprep.subr.mxu0 0.0
      %1667 = vmatpush1.msra.mxu0 0.0
      %1668 = vmatprep.subr.mxu0 0.0
      %1669 = vmatpush1.msra.mxu0 0.0
      %1670 = vmatprep.subr.mxu0 0.0
      %1671 = vmatpush1.msra.mxu0 0.0
      %1672 = vmatprep.subr.mxu0 0.0
      %1673 = vmatpush1.msra.mxu0 0.0
      %1674 = vmatprep.subr.mxu0 0.0
      %1675 = vmatpush1.msra.mxu0 0.0
      %1676 = vmatprep.subr.mxu0 0.0
      %1677 = vmatpush1.msra.mxu0 0.0
      %1678 = vmatprep.subr.mxu0 0.0
      %1679 = vmatpush1.msra.mxu0 0.0
      %1680 = vmatprep.subr.mxu0 0.0
      %1681 = vmatpush1.msra.mxu0 0.0
      %1682 = vmatprep.subr.mxu0 0.0
      %1683 = vmatpush1.msra.mxu0 0.0
      %1684 = vmatprep.subr.mxu0 0.0
      %1685 = vmatpush1.msra.mxu0 0.0
      %1686 = vmatprep.subr.mxu0 0.0
      %1687 = vmatpush1.msra.mxu0 0.0
      %1688 = vmatprep.subr.mxu0 0.0
      %1689 = vmatpush1.msra.mxu0 0.0
      %1690 = vmatprep.subr.mxu0 0.0
      %1691 = vmatpush1.msra.mxu0 0.0
      %1692 = vmatprep.subr.mxu0 0.0
      %1693 = vmatpush1.msra.mxu0 0.0
      %1694 = vmatprep.subr.mxu0 0.0
      %1695 = vmatpush1.msra.mxu0 0.0
      %1696 = vmatprep.mubr.f32.mxu0 0.0
      %1697 = vmatmul.mubr.f32.gmra.mrb[0].mxu0 %v1599
      %v1698 = vpop.f32.mrb[0].mxu0
      %v1699 = vadd.f32 0.0, %v1698
      %v1700 = vpop.f32.mrb[0].mxu0
      %1701 = vmatprep.mubr.f32.mxu0 0.0
      %1702 = vmatmul.mubr.f32.gmra.mrb[0].mxu0 %v1600
      %v1703 = vpop.f32.mrb[0].mxu0
      %v1704 = vadd.f32 0.0, %v1703
      %v1705 = vpop.f32.mrb[0].mxu0
      %1706 = vmatprep.mubr.f32.mxu0 0.0
      %1707 = vmatmul.mubr.f32.gmra.mrb[0].mxu0 %v1601
      %v1708 = vpop.f32.mrb[0].mxu0
      %v1709 = vadd.f32 0.0, %v1708
      %v1710 = vpop.f32.mrb[0].mxu0
      %1711 = vmatprep.mubr.f32.mxu0 0.0
      %1712 = vmatmul.mubr.f32.gmra.mrb[0].mxu0 %v1602
      %v1713 = vpop.f32.mrb[0].mxu0
      %v1714 = vadd.f32 0.0, %v1713
      %v1715 = vpop.f32.mrb[0].mxu0
      %1716 = vmatprep.mubr.f32.mxu0 0.0
      %1717 = vmatmul.mubr.f32.gmra.mrb[0].mxu0 %v1603
      %v1718 = vpop.f32.mrb[0].mxu0
      %v1719 = vadd.f32 0.0, %v1718
      %v1720 = vpop.f32.mrb[0].mxu0
      %1721 = vmatprep.mubr.f32.mxu0 0.0
      %1722 = vmatmul.mubr.f32.gmra.mrb[0].mxu0 %v1604
      %v1723 = vpop.f32.mrb[0].mxu0
      %v1724 = vadd.f32 0.0, %v1723
      %v1725 = vpop.f32.mrb[0].mxu0
      %1726 = vmatprep.mubr.f32.mxu0 0.0
      %1727 = vmatmul.mubr.f32.gmra.mrb[0].mxu0 %v1605
      %v1728 = vpop.f32.mrb[0].mxu0
      %v1729 = vadd.f32 0.0, %v1728
      %v1730 = vpop.f32.mrb[0].mxu0
      %1731 = vmatprep.mubr.f32.mxu0 0.0
      %1732 = vmatmul.mubr.f32.gmra.mrb[0].mxu0 %v1606
      %v1733 = vpop.f32.mrb[0].mxu0
      %v1734 = vadd.f32 0.0, %v1733
      %v1735 = vpop.f32.mrb[0].mxu0
      %1736 = vmatprep.mubr.f32.mxu0 0.0
      %1737 = vmatmul.mubr.f32.gmra.mrb[0].mxu0 %v1607
      %v1738 = vpop.f32.mrb[0].mxu0
      %v1739 = vadd.f32 0.0, %v1738
      %v1740 = vpop.f32.mrb[0].mxu0
      %1741 = vmatprep.mubr.f32.mxu0 0.0
      %1742 = vmatmul.mubr.f32.gmra.mrb[0].mxu0 %v1608
      %v1743 = vpop.f32.mrb[0].mxu0
      %v1744 = vadd.f32 0.0, %v1743
      %v1745 = vpop.f32.mrb[0].mxu0
      %1746 = vmatprep.mubr.f32.mxu0 0.0
      %1747 = vmatmul.mubr.f32.gmra.mrb[0].mxu0 %v1609
      %v1748 = vpop.f32.mrb[0].mxu0
      %v1749 = vadd.f32 0.0, %v1748
      %v1750 = vpop.f32.mrb[0].mxu0
      %1751 = vmatprep.mubr.f32.mxu0 0.0
      %1752 = vmatmul.mubr.f32.gmra.mrb[0].mxu0 %v1610
      %v1753 = vpop.f32.mrb[0].mxu0
      %v1754 = vadd.f32 0.0, %v1753
      %v1755 = vpop.f32.mrb[0].mxu0
      %1756 = vmatprep.mubr.f32.mxu0 0.0
      %1757 = vmatmul.mubr.f32.gmra.mrb[0].mxu0 %v1611
      %v1758 = vpop.f32.mrb[0].mxu0
      %v1759 = vadd.f32 0.0, %v1758
      %v1760 = vpop.f32.mrb[0].mxu0
      %1761 = vmatprep.mubr.f32.mxu0 0.0
      %1762 = vmatmul.mubr.f32.gmra.mrb[0].mxu0 %v1612
      %v1763 = vpop.f32.mrb[0].mxu0
      %v1764 = vadd.f32 0.0, %v1763
      %v1765 = vpop.f32.mrb[0].mxu0
      %1766 = vmatprep.mubr.f32.mxu0 0.0
      %1767 = vmatmul.mubr.f32.gmra.mrb[0].mxu0 %v1613
      %v1768 = vpop.f32.mrb[0].mxu0
      %v1769 = vadd.f32 0.0, %v1768
      %v1770 = vpop.f32.mrb[0].mxu0
      %1771 = vmatprep.mubr.f32.mxu0 0.0
      %1772 = vmatmul.mubr.f32.gmra.mrb[0].mxu0 %v1614
      %v1773 = vpop.f32.mrb[0].mxu0
      %v1774 = vadd.f32 0.0, %v1773
      %v1775 = vpop.f32.mrb[0].mxu0
      %1776 = vdwg.mxu0
      %v1777 = vadd.f32 %v1581, %v1699
      %v1778 = vadd.f32 %v1582, %v1704
      %v1779 = vadd.f32 %v1583, %v1709
      %v1780 = vadd.f32 %v1584, %v1714
      %v1781 = vadd.f32 %v1585, %v1719
      %v1782 = vadd.f32 %v1586, %v1724
      %v1783 = vadd.f32 %v1587, %v1729
      %v1784 = vadd.f32 %v1588, %v1734
      %v1785 = vadd.f32 %v1589, %v1739
      %v1786 = vadd.f32 %v1590, %v1744
      %v1787 = vadd.f32 %v1591, %v1749
      %v1788 = vadd.f32 %v1592, %v1754
      %v1789 = vadd.f32 %v1593, %v1759
      %v1790 = vadd.f32 %v1594, %v1764
      %v1791 = vadd.f32 %v1595, %v1769
      %v1792 = vadd.f32 %v1596, %v1774
      %s1793 = sadd.s32 %s221, 34
      %s1794 = scalar_lea.vmem %s210, %s1793
      %v1795 = vld [vmem:[%s1794] sm:$0xff]
      %v1796 = vld [vmem:[%s1794 + $0x8] sm:$0xff]
      %v1797 = vld [vmem:[%s1794 + $0x10] sm:$0xff]
      %v1798 = vld [vmem:[%s1794 + $0x18] sm:$0xff]
      %v1799 = vld [vmem:[%s1794 + $0x20] sm:$0xff]
      %v1800 = vld [vmem:[%s1794 + $0x28] sm:$0xff]
      %v1801 = vld [vmem:[%s1794 + $0x30] sm:$0xff]
      %v1802 = vld [vmem:[%s1794 + $0x38] sm:$0xff]
      %v1803 = vld [vmem:[%s1794 + $0x40] sm:$0xff]
      %v1804 = vld [vmem:[%s1794 + $0x48] sm:$0xff]
      %v1805 = vld [vmem:[%s1794 + $0x50] sm:$0xff]
      %v1806 = vld [vmem:[%s1794 + $0x58] sm:$0xff]
      %v1807 = vld [vmem:[%s1794 + $0x60] sm:$0xff]
      %v1808 = vld [vmem:[%s1794 + $0x68] sm:$0xff]
      %v1809 = vld [vmem:[%s1794 + $0x70] sm:$0xff]
      %v1810 = vld [vmem:[%s1794 + $0x78] sm:$0x3f]
      %s1811 = scalar_lea.vmem %s1, 1024
      %v1812 = vld [vmem:[%s1811] sm:$0xff]
      %v1813 = vld [vmem:[%s1811 + $0x8] sm:$0xff]
      %v1814 = vld [vmem:[%s1811 + $0x10] sm:$0xff]
      %v1815 = vld [vmem:[%s1811 + $0x18] sm:$0xff]
      %v1816 = vld [vmem:[%s1811 + $0x20] sm:$0xff]
      %v1817 = vld [vmem:[%s1811 + $0x28] sm:$0xff]
      %v1818 = vld [vmem:[%s1811 + $0x30] sm:$0xff]
      %v1819 = vld [vmem:[%s1811 + $0x38] sm:$0xff]
      %v1820 = vld [vmem:[%s1811 + $0x40] sm:$0xff]
      %v1821 = vld [vmem:[%s1811 + $0x48] sm:$0xff]
      %v1822 = vld [vmem:[%s1811 + $0x50] sm:$0xff]
      %v1823 = vld [vmem:[%s1811 + $0x58] sm:$0xff]
      %v1824 = vld [vmem:[%s1811 + $0x60] sm:$0xff]
      %v1825 = vld [vmem:[%s1811 + $0x68] sm:$0xff]
      %v1826 = vld [vmem:[%s1811 + $0x70] sm:$0xff]
      %v1827 = vld [vmem:[%s1811 + $0x78] sm:$0xff]
      %1828 = vmatprep.subr.mxu0 0.0
      %1829 = vmatpush1.msra.mxu0 %v1812
      %1830 = vmatprep.subr.mxu0 0.0
      %1831 = vmatpush1.msra.mxu0 %v1813
      %1832 = vmatprep.subr.mxu0 0.0
      %1833 = vmatpush1.msra.mxu0 %v1814
      %1834 = vmatprep.subr.mxu0 0.0
      %1835 = vmatpush1.msra.mxu0 %v1815
      %1836 = vmatprep.subr.mxu0 0.0
      %1837 = vmatpush1.msra.mxu0 %v1816
      %1838 = vmatprep.subr.mxu0 0.0
      %1839 = vmatpush1.msra.mxu0 %v1817
      %1840 = vmatprep.subr.mxu0 0.0
      %1841 = vmatpush1.msra.mxu0 %v1818
      %1842 = vmatprep.subr.mxu0 0.0
      %1843 = vmatpush1.msra.mxu0 %v1819
      %1844 = vmatprep.subr.mxu0 0.0
      %1845 = vmatpush1.msra.mxu0 %v1820
      %1846 = vmatprep.subr.mxu0 0.0
      %1847 = vmatpush1.msra.mxu0 %v1821
      %1848 = vmatprep.subr.mxu0 0.0
      %1849 = vmatpush1.msra.mxu0 %v1822
      %1850 = vmatprep.subr.mxu0 0.0
      %1851 = vmatpush1.msra.mxu0 %v1823
      %1852 = vmatprep.subr.mxu0 0.0
      %1853 = vmatpush1.msra.mxu0 %v1824
      %1854 = vmatprep.subr.mxu0 0.0
      %1855 = vmatpush1.msra.mxu0 %v1825
      %1856 = vmatprep.subr.mxu0 0.0
      %1857 = vmatpush1.msra.mxu0 %v1826
      %1858 = vmatprep.subr.mxu0 0.0
      %1859 = vmatpush1.msra.mxu0 %v1827
      %1860 = vmatprep.subr.mxu0 0.0
      %1861 = vmatpush1.msra.mxu0 0.0
      %1862 = vmatprep.subr.mxu0 0.0
      %1863 = vmatpush1.msra.mxu0 0.0
      %1864 = vmatprep.subr.mxu0 0.0
      %1865 = vmatpush1.msra.mxu0 0.0
      %1866 = vmatprep.subr.mxu0 0.0
      %1867 = vmatpush1.msra.mxu0 0.0
      %1868 = vmatprep.subr.mxu0 0.0
      %1869 = vmatpush1.msra.mxu0 0.0
      %1870 = vmatprep.subr.mxu0 0.0
      %1871 = vmatpush1.msra.mxu0 0.0
      %1872 = vmatprep.subr.mxu0 0.0
      %1873 = vmatpush1.msra.mxu0 0.0
      %1874 = vmatprep.subr.mxu0 0.0
      %1875 = vmatpush1.msra.mxu0 0.0
      %1876 = vmatprep.subr.mxu0 0.0
      %1877 = vmatpush1.msra.mxu0 0.0
      %1878 = vmatprep.subr.mxu0 0.0
      %1879 = vmatpush1.msra.mxu0 0.0
      %1880 = vmatprep.subr.mxu0 0.0
      %1881 = vmatpush1.msra.mxu0 0.0
      %1882 = vmatprep.subr.mxu0 0.0
      %1883 = vmatpush1.msra.mxu0 0.0
      %1884 = vmatprep.subr.mxu0 0.0
      %1885 = vmatpush1.msra.mxu0 0.0
      %1886 = vmatprep.subr.mxu0 0.0
      %1887 = vmatpush1.msra.mxu0 0.0
      %1888 = vmatprep.subr.mxu0 0.0
      %1889 = vmatpush1.msra.mxu0 0.0
      %1890 = vmatprep.subr.mxu0 0.0
      %1891 = vmatpush1.msra.mxu0 0.0
      %1892 = vmatprep.mubr.f32.mxu0 0.0
      %1893 = vmatmul.mubr.f32.gmra.mrb[0].mxu0 %v1795
      %v1894 = vpop.f32.mrb[0].mxu0
      %v1895 = vadd.f32 0.0, %v1894
      %v1896 = vpop.f32.mrb[0].mxu0
      %1897 = vmatprep.mubr.f32.mxu0 0.0
      %1898 = vmatmul.mubr.f32.gmra.mrb[0].mxu0 %v1796
      %v1899 = vpop.f32.mrb[0].mxu0
      %v1900 = vadd.f32 0.0, %v1899
      %v1901 = vpop.f32.mrb[0].mxu0
      %1902 = vmatprep.mubr.f32.mxu0 0.0
      %1903 = vmatmul.mubr.f32.gmra.mrb[0].mxu0 %v1797
      %v1904 = vpop.f32.mrb[0].mxu0
      %v1905 = vadd.f32 0.0, %v1904
      %v1906 = vpop.f32.mrb[0].mxu0
      %1907 = vmatprep.mubr.f32.mxu0 0.0
      %1908 = vmatmul.mubr.f32.gmra.mrb[0].mxu0 %v1798
      %v1909 = vpop.f32.mrb[0].mxu0
      %v1910 = vadd.f32 0.0, %v1909
      %v1911 = vpop.f32.mrb[0].mxu0
      %1912 = vmatprep.mubr.f32.mxu0 0.0
      %1913 = vmatmul.mubr.f32.gmra.mrb[0].mxu0 %v1799
      %v1914 = vpop.f32.mrb[0].mxu0
      %v1915 = vadd.f32 0.0, %v1914
      %v1916 = vpop.f32.mrb[0].mxu0
      %1917 = vmatprep.mubr.f32.mxu0 0.0
      %1918 = vmatmul.mubr.f32.gmra.mrb[0].mxu0 %v1800
      %v1919 = vpop.f32.mrb[0].mxu0
      %v1920 = vadd.f32 0.0, %v1919
      %v1921 = vpop.f32.mrb[0].mxu0
      %1922 = vmatprep.mubr.f32.mxu0 0.0
      %1923 = vmatmul.mubr.f32.gmra.mrb[0].mxu0 %v1801
      %v1924 = vpop.f32.mrb[0].mxu0
      %v1925 = vadd.f32 0.0, %v1924
      %v1926 = vpop.f32.mrb[0].mxu0
      %1927 = vmatprep.mubr.f32.mxu0 0.0
      %1928 = vmatmul.mubr.f32.gmra.mrb[0].mxu0 %v1802
      %v1929 = vpop.f32.mrb[0].mxu0
      %v1930 = vadd.f32 0.0, %v1929
      %v1931 = vpop.f32.mrb[0].mxu0
      %1932 = vmatprep.mubr.f32.mxu0 0.0
      %1933 = vmatmul.mubr.f32.gmra.mrb[0].mxu0 %v1803
      %v1934 = vpop.f32.mrb[0].mxu0
      %v1935 = vadd.f32 0.0, %v1934
      %v1936 = vpop.f32.mrb[0].mxu0
      %1937 = vmatprep.mubr.f32.mxu0 0.0
      %1938 = vmatmul.mubr.f32.gmra.mrb[0].mxu0 %v1804
      %v1939 = vpop.f32.mrb[0].mxu0
      %v1940 = vadd.f32 0.0, %v1939
      %v1941 = vpop.f32.mrb[0].mxu0
      %1942 = vmatprep.mubr.f32.mxu0 0.0
      %1943 = vmatmul.mubr.f32.gmra.mrb[0].mxu0 %v1805
      %v1944 = vpop.f32.mrb[0].mxu0
      %v1945 = vadd.f32 0.0, %v1944
      %v1946 = vpop.f32.mrb[0].mxu0
      %1947 = vmatprep.mubr.f32.mxu0 0.0
      %1948 = vmatmul.mubr.f32.gmra.mrb[0].mxu0 %v1806
      %v1949 = vpop.f32.mrb[0].mxu0
      %v1950 = vadd.f32 0.0, %v1949
      %v1951 = vpop.f32.mrb[0].mxu0
      %1952 = vmatprep.mubr.f32.mxu0 0.0
      %1953 = vmatmul.mubr.f32.gmra.mrb[0].mxu0 %v1807
      %v1954 = vpop.f32.mrb[0].mxu0
      %v1955 = vadd.f32 0.0, %v1954
      %v1956 = vpop.f32.mrb[0].mxu0
      %1957 = vmatprep.mubr.f32.mxu0 0.0
      %1958 = vmatmul.mubr.f32.gmra.mrb[0].mxu0 %v1808
      %v1959 = vpop.f32.mrb[0].mxu0
      %v1960 = vadd.f32 0.0, %v1959
      %v1961 = vpop.f32.mrb[0].mxu0
      %1962 = vmatprep.mubr.f32.mxu0 0.0
      %1963 = vmatmul.mubr.f32.gmra.mrb[0].mxu0 %v1809
      %v1964 = vpop.f32.mrb[0].mxu0
      %v1965 = vadd.f32 0.0, %v1964
      %v1966 = vpop.f32.mrb[0].mxu0
      %1967 = vmatprep.mubr.f32.mxu0 0.0
      %1968 = vmatmul.mubr.f32.gmra.mrb[0].mxu0 %v1810
      %v1969 = vpop.f32.mrb[0].mxu0
      %v1970 = vadd.f32 0.0, %v1969
      %v1971 = vpop.f32.mrb[0].mxu0
      %1972 = vdwg.mxu0
      %v1973 = vadd.f32 %v1777, %v1895
      %v1974 = vadd.f32 %v1778, %v1900
      %v1975 = vadd.f32 %v1779, %v1905
      %v1976 = vadd.f32 %v1780, %v1910
      %v1977 = vadd.f32 %v1781, %v1915
      %v1978 = vadd.f32 %v1782, %v1920
      %v1979 = vadd.f32 %v1783, %v1925
      %v1980 = vadd.f32 %v1784, %v1930
      %v1981 = vadd.f32 %v1785, %v1935
      %v1982 = vadd.f32 %v1786, %v1940
      %v1983 = vadd.f32 %v1787, %v1945
      %v1984 = vadd.f32 %v1788, %v1950
      %v1985 = vadd.f32 %v1789, %v1955
      %v1986 = vadd.f32 %v1790, %v1960
      %v1987 = vadd.f32 %v1791, %v1965
      %v1988 = vadd.f32 %v1792, %v1970
      %1989 = vst [vmem:[#allocation2] sm:$0xff] %v1973
      %1990 = vst [vmem:[#allocation2 + $0x8] sm:$0xff] %v1974
      %1991 = vst [vmem:[#allocation2 + $0x10] sm:$0xff] %v1975
      %1992 = vst [vmem:[#allocation2 + $0x18] sm:$0xff] %v1976
      %1993 = vst [vmem:[#allocation2 + $0x20] sm:$0xff] %v1977
      %1994 = vst [vmem:[#allocation2 + $0x28] sm:$0xff] %v1978
      %1995 = vst [vmem:[#allocation2 + $0x30] sm:$0xff] %v1979
      %1996 = vst [vmem:[#allocation2 + $0x38] sm:$0xff] %v1980
      %1997 = vst [vmem:[#allocation2 + $0x40] sm:$0xff] %v1981
      %1998 = vst [vmem:[#allocation2 + $0x48] sm:$0xff] %v1982
      %1999 = vst [vmem:[#allocation2 + $0x50] sm:$0xff] %v1983
      %2000 = vst [vmem:[#allocation2 + $0x58] sm:$0xff] %v1984
      %2001 = vst [vmem:[#allocation2 + $0x60] sm:$0xff] %v1985
      %2002 = vst [vmem:[#allocation2 + $0x68] sm:$0xff] %v1986
      %2003 = vst [vmem:[#allocation2 + $0x70] sm:$0xff] %v1987
      %2004 = vst [vmem:[#allocation2 + $0x78] sm:$0x3f] %v1988
      %2005 = vst [vmem:[#allocation2 + $0x7e] sm:$0x3] 0.0
      %v2006 = vld [vmem:[%s3 + $0x1] sm:$0x1]
      %v2007 = vlaneseq
      %v2008 = vshrl.u32 %v2007, 7
      %v2009 = vsub.s32 0, %v2008
      %v2010 = vrot.slane %v2006, %v2009
      %v2011 = vld [vmem:[#allocation2] sm:$0xff]
      %v2012 = vld [vmem:[#allocation2 + $0x8] sm:$0xff]
      %v2013 = vld [vmem:[#allocation2 + $0x10] sm:$0xff]
      %v2014 = vld [vmem:[#allocation2 + $0x18] sm:$0xff]
      %v2015 = vld [vmem:[#allocation2 + $0x20] sm:$0xff]
      %v2016 = vld [vmem:[#allocation2 + $0x28] sm:$0xff]
      %v2017 = vld [vmem:[#allocation2 + $0x30] sm:$0xff]
      %v2018 = vld [vmem:[#allocation2 + $0x38] sm:$0xff]
      %v2019 = vld [vmem:[#allocation2 + $0x40] sm:$0xff]
      %v2020 = vld [vmem:[#allocation2 + $0x48] sm:$0xff]
      %v2021 = vld [vmem:[#allocation2 + $0x50] sm:$0xff]
      %v2022 = vld [vmem:[#allocation2 + $0x58] sm:$0x3f]
      %v2023 = vld [vmem:[%s2] sm:$0xff]
      %v2024 = vld [vmem:[%s2 + $0x8] sm:$0xff]
      %v2025 = vld [vmem:[%s2 + $0x10] sm:$0xff]
      %v2026 = vld [vmem:[%s2 + $0x18] sm:$0xff]
      %v2027 = vld [vmem:[%s2 + $0x20] sm:$0xff]
      %v2028 = vld [vmem:[%s2 + $0x28] sm:$0xff]
      %v2029 = vld [vmem:[%s2 + $0x30] sm:$0xff]
      %v2030 = vld [vmem:[%s2 + $0x38] sm:$0xff]
      %v2031 = vld [vmem:[%s2 + $0x40] sm:$0xff]
      %v2032 = vld [vmem:[%s2 + $0x48] sm:$0xff]
      %v2033 = vld [vmem:[%s2 + $0x50] sm:$0xff]
      %v2034 = vld [vmem:[%s2 + $0x58] sm:$0xff]
      %v2035 = vld [vmem:[%s2 + $0x60] sm:$0xff]
      %v2036 = vld [vmem:[%s2 + $0x68] sm:$0xff]
      %v2037 = vld [vmem:[%s2 + $0x70] sm:$0xff]
      %v2038 = vld [vmem:[%s2 + $0x78] sm:$0xff]
      %2039 = vmatprep.subr.mxu0 0.0
      %2040 = vmatpush1.msra.mxu0 %v2023
      %2041 = vmatprep.subr.mxu0 0.0
      %2042 = vmatpush1.msra.mxu0 %v2024
      %2043 = vmatprep.subr.mxu0 0.0
      %2044 = vmatpush1.msra.mxu0 %v2025
      %2045 = vmatprep.subr.mxu0 0.0
      %2046 = vmatpush1.msra.mxu0 %v2026
      %2047 = vmatprep.subr.mxu0 0.0
      %2048 = vmatpush1.msra.mxu0 %v2027
      %2049 = vmatprep.subr.mxu0 0.0
      %2050 = vmatpush1.msra.mxu0 %v2028
      %2051 = vmatprep.subr.mxu0 0.0
      %2052 = vmatpush1.msra.mxu0 %v2029
      %2053 = vmatprep.subr.mxu0 0.0
      %2054 = vmatpush1.msra.mxu0 %v2030
      %2055 = vmatprep.subr.mxu0 0.0
      %2056 = vmatpush1.msra.mxu0 %v2031
      %2057 = vmatprep.subr.mxu0 0.0
      %2058 = vmatpush1.msra.mxu0 %v2032
      %2059 = vmatprep.subr.mxu0 0.0
      %2060 = vmatpush1.msra.mxu0 %v2033
      %2061 = vmatprep.subr.mxu0 0.0
      %2062 = vmatpush1.msra.mxu0 %v2034
      %2063 = vmatprep.subr.mxu0 0.0
      %2064 = vmatpush1.msra.mxu0 %v2035
      %2065 = vmatprep.subr.mxu0 0.0
      %2066 = vmatpush1.msra.mxu0 %v2036
      %2067 = vmatprep.subr.mxu0 0.0
      %2068 = vmatpush1.msra.mxu0 %v2037
      %2069 = vmatprep.subr.mxu0 0.0
      %2070 = vmatpush1.msra.mxu0 %v2038
      %2071 = vmatprep.subr.mxu0 0.0
      %2072 = vmatpush1.msra.mxu0 0.0
      %2073 = vmatprep.subr.mxu0 0.0
      %2074 = vmatpush1.msra.mxu0 0.0
      %2075 = vmatprep.subr.mxu0 0.0
      %2076 = vmatpush1.msra.mxu0 0.0
      %2077 = vmatprep.subr.mxu0 0.0
      %2078 = vmatpush1.msra.mxu0 0.0
      %2079 = vmatprep.subr.mxu0 0.0
      %2080 = vmatpush1.msra.mxu0 0.0
      %2081 = vmatprep.subr.mxu0 0.0
      %2082 = vmatpush1.msra.mxu0 0.0
      %2083 = vmatprep.subr.mxu0 0.0
      %2084 = vmatpush1.msra.mxu0 0.0
      %2085 = vmatprep.subr.mxu0 0.0
      %2086 = vmatpush1.msra.mxu0 0.0
      %2087 = vmatprep.subr.mxu0 0.0
      %2088 = vmatpush1.msra.mxu0 0.0
      %2089 = vmatprep.subr.mxu0 0.0
      %2090 = vmatpush1.msra.mxu0 0.0
      %2091 = vmatprep.subr.mxu0 0.0
      %2092 = vmatpush1.msra.mxu0 0.0
      %2093 = vmatprep.subr.mxu0 0.0
      %2094 = vmatpush1.msra.mxu0 0.0
      %2095 = vmatprep.subr.mxu0 0.0
      %2096 = vmatpush1.msra.mxu0 0.0
      %2097 = vmatprep.subr.mxu0 0.0
      %2098 = vmatpush1.msra.mxu0 0.0
      %2099 = vmatprep.subr.mxu0 0.0
      %2100 = vmatpush1.msra.mxu0 0.0
      %2101 = vmatprep.subr.mxu0 0.0
      %2102 = vmatpush1.msra.mxu0 0.0
      %2103 = vmatprep.mubr.f32.mxu0 0.0
      %2104 = vmatmul.mubr.f32.gmra.mrb[0].mxu0 %v2011
      %v2105 = vpop.f32.mrb[0].mxu0
      %v2106 = vadd.f32 0.0, %v2105
      %v2107 = vpop.f32.mrb[0].mxu0
      %2108 = vmatprep.mubr.f32.mxu0 0.0
      %2109 = vmatmul.mubr.f32.gmra.mrb[0].mxu0 %v2012
      %v2110 = vpop.f32.mrb[0].mxu0
      %v2111 = vadd.f32 0.0, %v2110
      %v2112 = vpop.f32.mrb[0].mxu0
      %2113 = vmatprep.mubr.f32.mxu0 0.0
      %2114 = vmatmul.mubr.f32.gmra.mrb[0].mxu0 %v2013
      %v2115 = vpop.f32.mrb[0].mxu0
      %v2116 = vadd.f32 0.0, %v2115
      %v2117 = vpop.f32.mrb[0].mxu0
      %2118 = vmatprep.mubr.f32.mxu0 0.0
      %2119 = vmatmul.mubr.f32.gmra.mrb[0].mxu0 %v2014
      %v2120 = vpop.f32.mrb[0].mxu0
      %v2121 = vadd.f32 0.0, %v2120
      %v2122 = vpop.f32.mrb[0].mxu0
      %2123 = vmatprep.mubr.f32.mxu0 0.0
      %2124 = vmatmul.mubr.f32.gmra.mrb[0].mxu0 %v2015
      %v2125 = vpop.f32.mrb[0].mxu0
      %v2126 = vadd.f32 0.0, %v2125
      %v2127 = vpop.f32.mrb[0].mxu0
      %2128 = vmatprep.mubr.f32.mxu0 0.0
      %2129 = vmatmul.mubr.f32.gmra.mrb[0].mxu0 %v2016
      %v2130 = vpop.f32.mrb[0].mxu0
      %v2131 = vadd.f32 0.0, %v2130
      %v2132 = vpop.f32.mrb[0].mxu0
      %2133 = vmatprep.mubr.f32.mxu0 0.0
      %2134 = vmatmul.mubr.f32.gmra.mrb[0].mxu0 %v2017
      %v2135 = vpop.f32.mrb[0].mxu0
      %v2136 = vadd.f32 0.0, %v2135
      %v2137 = vpop.f32.mrb[0].mxu0
      %2138 = vmatprep.mubr.f32.mxu0 0.0
      %2139 = vmatmul.mubr.f32.gmra.mrb[0].mxu0 %v2018
      %v2140 = vpop.f32.mrb[0].mxu0
      %v2141 = vadd.f32 0.0, %v2140
      %v2142 = vpop.f32.mrb[0].mxu0
      %2143 = vmatprep.mubr.f32.mxu0 0.0
      %2144 = vmatmul.mubr.f32.gmra.mrb[0].mxu0 %v2019
      %v2145 = vpop.f32.mrb[0].mxu0
      %v2146 = vadd.f32 0.0, %v2145
      %v2147 = vpop.f32.mrb[0].mxu0
      %2148 = vmatprep.mubr.f32.mxu0 0.0
      %2149 = vmatmul.mubr.f32.gmra.mrb[0].mxu0 %v2020
      %v2150 = vpop.f32.mrb[0].mxu0
      %v2151 = vadd.f32 0.0, %v2150
      %v2152 = vpop.f32.mrb[0].mxu0
      %2153 = vmatprep.mubr.f32.mxu0 0.0
      %2154 = vmatmul.mubr.f32.gmra.mrb[0].mxu0 %v2021
      %v2155 = vpop.f32.mrb[0].mxu0
      %v2156 = vadd.f32 0.0, %v2155
      %v2157 = vpop.f32.mrb[0].mxu0
      %2158 = vmatprep.mubr.f32.mxu0 0.0
      %2159 = vmatmul.mubr.f32.gmra.mrb[0].mxu0 %v2022
      %v2160 = vpop.f32.mrb[0].mxu0
      %v2161 = vadd.f32 0.0, %v2160
      %v2162 = vpop.f32.mrb[0].mxu0
      %2163 = vdwg.mxu0
      %v2164 = vadd.f32 %v2010, %v2106
      %v2165 = vadd.f32 %v2010, %v2111
      %v2166 = vadd.f32 %v2010, %v2116
      %v2167 = vadd.f32 %v2010, %v2121
      %v2168 = vadd.f32 %v2010, %v2126
      %v2169 = vadd.f32 %v2010, %v2131
      %v2170 = vadd.f32 %v2010, %v2136
      %v2171 = vadd.f32 %v2010, %v2141
      %v2172 = vadd.f32 %v2010, %v2146
      %v2173 = vadd.f32 %v2010, %v2151
      %v2174 = vadd.f32 %v2010, %v2156
      %v2175 = vadd.f32 %v2010, %v2161
      %v2176 = vld [vmem:[#allocation2 + $0x1] sm:$0xff]
      %v2177 = vld [vmem:[#allocation2 + $0x9] sm:$0xff]
      %v2178 = vld [vmem:[#allocation2 + $0x11] sm:$0xff]
      %v2179 = vld [vmem:[#allocation2 + $0x19] sm:$0xff]
      %v2180 = vld [vmem:[#allocation2 + $0x21] sm:$0xff]
      %v2181 = vld [vmem:[#allocation2 + $0x29] sm:$0xff]
      %v2182 = vld [vmem:[#allocation2 + $0x31] sm:$0xff]
      %v2183 = vld [vmem:[#allocation2 + $0x39] sm:$0xff]
      %v2184 = vld [vmem:[#allocation2 + $0x41] sm:$0xff]
      %v2185 = vld [vmem:[#allocation2 + $0x49] sm:$0xff]
      %v2186 = vld [vmem:[#allocation2 + $0x51] sm:$0xff]
      %v2187 = vld [vmem:[#allocation2 + $0x59] sm:$0x3f]
      %s2188 = scalar_lea.vmem %s2, 128
      %v2189 = vld [vmem:[%s2188] sm:$0xff]
      %v2190 = vld [vmem:[%s2188 + $0x8] sm:$0xff]
      %v2191 = vld [vmem:[%s2188 + $0x10] sm:$0xff]
      %v2192 = vld [vmem:[%s2188 + $0x18] sm:$0xff]
      %v2193 = vld [vmem:[%s2188 + $0x20] sm:$0xff]
      %v2194 = vld [vmem:[%s2188 + $0x28] sm:$0xff]
      %v2195 = vld [vmem:[%s2188 + $0x30] sm:$0xff]
      %v2196 = vld [vmem:[%s2188 + $0x38] sm:$0xff]
      %v2197 = vld [vmem:[%s2188 + $0x40] sm:$0xff]
      %v2198 = vld [vmem:[%s2188 + $0x48] sm:$0xff]
      %v2199 = vld [vmem:[%s2188 + $0x50] sm:$0xff]
      %v2200 = vld [vmem:[%s2188 + $0x58] sm:$0xff]
      %v2201 = vld [vmem:[%s2188 + $0x60] sm:$0xff]
      %v2202 = vld [vmem:[%s2188 + $0x68] sm:$0xff]
      %v2203 = vld [vmem:[%s2188 + $0x70] sm:$0xff]
      %v2204 = vld [vmem:[%s2188 + $0x78] sm:$0xff]
      %2205 = vmatprep.subr.mxu0 0.0
      %2206 = vmatpush1.msra.mxu0 %v2189
      %2207 = vmatprep.subr.mxu0 0.0
      %2208 = vmatpush1.msra.mxu0 %v2190
      %2209 = vmatprep.subr.mxu0 0.0
      %2210 = vmatpush1.msra.mxu0 %v2191
      %2211 = vmatprep.subr.mxu0 0.0
      %2212 = vmatpush1.msra.mxu0 %v2192
      %2213 = vmatprep.subr.mxu0 0.0
      %2214 = vmatpush1.msra.mxu0 %v2193
      %2215 = vmatprep.subr.mxu0 0.0
      %2216 = vmatpush1.msra.mxu0 %v2194
      %2217 = vmatprep.subr.mxu0 0.0
      %2218 = vmatpush1.msra.mxu0 %v2195
      %2219 = vmatprep.subr.mxu0 0.0
      %2220 = vmatpush1.msra.mxu0 %v2196
      %2221 = vmatprep.subr.mxu0 0.0
      %2222 = vmatpush1.msra.mxu0 %v2197
      %2223 = vmatprep.subr.mxu0 0.0
      %2224 = vmatpush1.msra.mxu0 %v2198
      %2225 = vmatprep.subr.mxu0 0.0
      %2226 = vmatpush1.msra.mxu0 %v2199
      %2227 = vmatprep.subr.mxu0 0.0
      %2228 = vmatpush1.msra.mxu0 %v2200
      %2229 = vmatprep.subr.mxu0 0.0
      %2230 = vmatpush1.msra.mxu0 %v2201
      %2231 = vmatprep.subr.mxu0 0.0
      %2232 = vmatpush1.msra.mxu0 %v2202
      %2233 = vmatprep.subr.mxu0 0.0
      %2234 = vmatpush1.msra.mxu0 %v2203
      %2235 = vmatprep.subr.mxu0 0.0
      %2236 = vmatpush1.msra.mxu0 %v2204
      %2237 = vmatprep.subr.mxu0 0.0
      %2238 = vmatpush1.msra.mxu0 0.0
      %2239 = vmatprep.subr.mxu0 0.0
      %2240 = vmatpush1.msra.mxu0 0.0
      %2241 = vmatprep.subr.mxu0 0.0
      %2242 = vmatpush1.msra.mxu0 0.0
      %2243 = vmatprep.subr.mxu0 0.0
      %2244 = vmatpush1.msra.mxu0 0.0
      %2245 = vmatprep.subr.mxu0 0.0
      %2246 = vmatpush1.msra.mxu0 0.0
      %2247 = vmatprep.subr.mxu0 0.0
      %2248 = vmatpush1.msra.mxu0 0.0
      %2249 = vmatprep.subr.mxu0 0.0
      %2250 = vmatpush1.msra.mxu0 0.0
      %2251 = vmatprep.subr.mxu0 0.0
      %2252 = vmatpush1.msra.mxu0 0.0
      %2253 = vmatprep.subr.mxu0 0.0
      %2254 = vmatpush1.msra.mxu0 0.0
      %2255 = vmatprep.subr.mxu0 0.0
      %2256 = vmatpush1.msra.mxu0 0.0
      %2257 = vmatprep.subr.mxu0 0.0
      %2258 = vmatpush1.msra.mxu0 0.0
      %2259 = vmatprep.subr.mxu0 0.0
      %2260 = vmatpush1.msra.mxu0 0.0
      %2261 = vmatprep.subr.mxu0 0.0
      %2262 = vmatpush1.msra.mxu0 0.0
      %2263 = vmatprep.subr.mxu0 0.0
      %2264 = vmatpush1.msra.mxu0 0.0
      %2265 = vmatprep.subr.mxu0 0.0
      %2266 = vmatpush1.msra.mxu0 0.0
      %2267 = vmatprep.subr.mxu0 0.0
      %2268 = vmatpush1.msra.mxu0 0.0
      %2269 = vmatprep.mubr.f32.mxu0 0.0
      %2270 = vmatmul.mubr.f32.gmra.mrb[0].mxu0 %v2176
      %v2271 = vpop.f32.mrb[0].mxu0
      %v2272 = vadd.f32 0.0, %v2271
      %v2273 = vpop.f32.mrb[0].mxu0
      %2274 = vmatprep.mubr.f32.mxu0 0.0
      %2275 = vmatmul.mubr.f32.gmra.mrb[0].mxu0 %v2177
      %v2276 = vpop.f32.mrb[0].mxu0
      %v2277 = vadd.f32 0.0, %v2276
      %v2278 = vpop.f32.mrb[0].mxu0
      %2279 = vmatprep.mubr.f32.mxu0 0.0
      %2280 = vmatmul.mubr.f32.gmra.mrb[0].mxu0 %v2178
      %v2281 = vpop.f32.mrb[0].mxu0
      %v2282 = vadd.f32 0.0, %v2281
      %v2283 = vpop.f32.mrb[0].mxu0
      %2284 = vmatprep.mubr.f32.mxu0 0.0
      %2285 = vmatmul.mubr.f32.gmra.mrb[0].mxu0 %v2179
      %v2286 = vpop.f32.mrb[0].mxu0
      %v2287 = vadd.f32 0.0, %v2286
      %v2288 = vpop.f32.mrb[0].mxu0
      %2289 = vmatprep.mubr.f32.mxu0 0.0
      %2290 = vmatmul.mubr.f32.gmra.mrb[0].mxu0 %v2180
      %v2291 = vpop.f32.mrb[0].mxu0
      %v2292 = vadd.f32 0.0, %v2291
      %v2293 = vpop.f32.mrb[0].mxu0
      %2294 = vmatprep.mubr.f32.mxu0 0.0
      %2295 = vmatmul.mubr.f32.gmra.mrb[0].mxu0 %v2181
      %v2296 = vpop.f32.mrb[0].mxu0
      %v2297 = vadd.f32 0.0, %v2296
      %v2298 = vpop.f32.mrb[0].mxu0
      %2299 = vmatprep.mubr.f32.mxu0 0.0
      %2300 = vmatmul.mubr.f32.gmra.mrb[0].mxu0 %v2182
      %v2301 = vpop.f32.mrb[0].mxu0
      %v2302 = vadd.f32 0.0, %v2301
      %v2303 = vpop.f32.mrb[0].mxu0
      %2304 = vmatprep.mubr.f32.mxu0 0.0
      %2305 = vmatmul.mubr.f32.gmra.mrb[0].mxu0 %v2183
      %v2306 = vpop.f32.mrb[0].mxu0
      %v2307 = vadd.f32 0.0, %v2306
      %v2308 = vpop.f32.mrb[0].mxu0
      %2309 = vmatprep.mubr.f32.mxu0 0.0
      %2310 = vmatmul.mubr.f32.gmra.mrb[0].mxu0 %v2184
      %v2311 = vpop.f32.mrb[0].mxu0
      %v2312 = vadd.f32 0.0, %v2311
      %v2313 = vpop.f32.mrb[0].mxu0
      %2314 = vmatprep.mubr.f32.mxu0 0.0
      %2315 = vmatmul.mubr.f32.gmra.mrb[0].mxu0 %v2185
      %v2316 = vpop.f32.mrb[0].mxu0
      %v2317 = vadd.f32 0.0, %v2316
      %v2318 = vpop.f32.mrb[0].mxu0
      %2319 = vmatprep.mubr.f32.mxu0 0.0
      %2320 = vmatmul.mubr.f32.gmra.mrb[0].mxu0 %v2186
      %v2321 = vpop.f32.mrb[0].mxu0
      %v2322 = vadd.f32 0.0, %v2321
      %v2323 = vpop.f32.mrb[0].mxu0
      %2324 = vmatprep.mubr.f32.mxu0 0.0
      %2325 = vmatmul.mubr.f32.gmra.mrb[0].mxu0 %v2187
      %v2326 = vpop.f32.mrb[0].mxu0
      %v2327 = vadd.f32 0.0, %v2326
      %v2328 = vpop.f32.mrb[0].mxu0
      %2329 = vdwg.mxu0
      %v2330 = vadd.f32 %v2164, %v2272
      %v2331 = vadd.f32 %v2165, %v2277
      %v2332 = vadd.f32 %v2166, %v2282
      %v2333 = vadd.f32 %v2167, %v2287
      %v2334 = vadd.f32 %v2168, %v2292
      %v2335 = vadd.f32 %v2169, %v2297
      %v2336 = vadd.f32 %v2170, %v2302
      %v2337 = vadd.f32 %v2171, %v2307
      %v2338 = vadd.f32 %v2172, %v2312
      %v2339 = vadd.f32 %v2173, %v2317
      %v2340 = vadd.f32 %v2174, %v2322
      %v2341 = vadd.f32 %v2175, %v2327
      %v2342 = vld [vmem:[#allocation2 + $0x2] sm:$0xff]
      %v2343 = vld [vmem:[#allocation2 + $0xa] sm:$0xff]
      %v2344 = vld [vmem:[#allocation2 + $0x12] sm:$0xff]
      %v2345 = vld [vmem:[#allocation2 + $0x1a] sm:$0xff]
      %v2346 = vld [vmem:[#allocation2 + $0x22] sm:$0xff]
      %v2347 = vld [vmem:[#allocation2 + $0x2a] sm:$0xff]
      %v2348 = vld [vmem:[#allocation2 + $0x32] sm:$0xff]
      %v2349 = vld [vmem:[#allocation2 + $0x3a] sm:$0xff]
      %v2350 = vld [vmem:[#allocation2 + $0x42] sm:$0xff]
      %v2351 = vld [vmem:[#allocation2 + $0x4a] sm:$0xff]
      %v2352 = vld [vmem:[#allocation2 + $0x52] sm:$0xff]
      %v2353 = vld [vmem:[#allocation2 + $0x5a] sm:$0x3f]
      %s2354 = scalar_lea.vmem %s2, 256
      %v2355 = vld [vmem:[%s2354] sm:$0xff]
      %v2356 = vld [vmem:[%s2354 + $0x8] sm:$0xff]
      %v2357 = vld [vmem:[%s2354 + $0x10] sm:$0xff]
      %v2358 = vld [vmem:[%s2354 + $0x18] sm:$0xff]
      %v2359 = vld [vmem:[%s2354 + $0x20] sm:$0xff]
      %v2360 = vld [vmem:[%s2354 + $0x28] sm:$0xff]
      %v2361 = vld [vmem:[%s2354 + $0x30] sm:$0xff]
      %v2362 = vld [vmem:[%s2354 + $0x38] sm:$0xff]
      %v2363 = vld [vmem:[%s2354 + $0x40] sm:$0xff]
      %v2364 = vld [vmem:[%s2354 + $0x48] sm:$0xff]
      %v2365 = vld [vmem:[%s2354 + $0x50] sm:$0xff]
      %v2366 = vld [vmem:[%s2354 + $0x58] sm:$0xff]
      %v2367 = vld [vmem:[%s2354 + $0x60] sm:$0xff]
      %v2368 = vld [vmem:[%s2354 + $0x68] sm:$0xff]
      %v2369 = vld [vmem:[%s2354 + $0x70] sm:$0xff]
      %v2370 = vld [vmem:[%s2354 + $0x78] sm:$0xff]
      %2371 = vmatprep.subr.mxu0 0.0
      %2372 = vmatpush1.msra.mxu0 %v2355
      %2373 = vmatprep.subr.mxu0 0.0
      %2374 = vmatpush1.msra.mxu0 %v2356
      %2375 = vmatprep.subr.mxu0 0.0
      %2376 = vmatpush1.msra.mxu0 %v2357
      %2377 = vmatprep.subr.mxu0 0.0
      %2378 = vmatpush1.msra.mxu0 %v2358
      %2379 = vmatprep.subr.mxu0 0.0
      %2380 = vmatpush1.msra.mxu0 %v2359
      %2381 = vmatprep.subr.mxu0 0.0
      %2382 = vmatpush1.msra.mxu0 %v2360
      %2383 = vmatprep.subr.mxu0 0.0
      %2384 = vmatpush1.msra.mxu0 %v2361
      %2385 = vmatprep.subr.mxu0 0.0
      %2386 = vmatpush1.msra.mxu0 %v2362
      %2387 = vmatprep.subr.mxu0 0.0
      %2388 = vmatpush1.msra.mxu0 %v2363
      %2389 = vmatprep.subr.mxu0 0.0
      %2390 = vmatpush1.msra.mxu0 %v2364
      %2391 = vmatprep.subr.mxu0 0.0
      %2392 = vmatpush1.msra.mxu0 %v2365
      %2393 = vmatprep.subr.mxu0 0.0
      %2394 = vmatpush1.msra.mxu0 %v2366
      %2395 = vmatprep.subr.mxu0 0.0
      %2396 = vmatpush1.msra.mxu0 %v2367
      %2397 = vmatprep.subr.mxu0 0.0
      %2398 = vmatpush1.msra.mxu0 %v2368
      %2399 = vmatprep.subr.mxu0 0.0
      %2400 = vmatpush1.msra.mxu0 %v2369
      %2401 = vmatprep.subr.mxu0 0.0
      %2402 = vmatpush1.msra.mxu0 %v2370
      %2403 = vmatprep.subr.mxu0 0.0
      %2404 = vmatpush1.msra.mxu0 0.0
      %2405 = vmatprep.subr.mxu0 0.0
      %2406 = vmatpush1.msra.mxu0 0.0
      %2407 = vmatprep.subr.mxu0 0.0
      %2408 = vmatpush1.msra.mxu0 0.0
      %2409 = vmatprep.subr.mxu0 0.0
      %2410 = vmatpush1.msra.mxu0 0.0
      %2411 = vmatprep.subr.mxu0 0.0
      %2412 = vmatpush1.msra.mxu0 0.0
      %2413 = vmatprep.subr.mxu0 0.0
      %2414 = vmatpush1.msra.mxu0 0.0
      %2415 = vmatprep.subr.mxu0 0.0
      %2416 = vmatpush1.msra.mxu0 0.0
      %2417 = vmatprep.subr.mxu0 0.0
      %2418 = vmatpush1.msra.mxu0 0.0
      %2419 = vmatprep.subr.mxu0 0.0
      %2420 = vmatpush1.msra.mxu0 0.0
      %2421 = vmatprep.subr.mxu0 0.0
      %2422 = vmatpush1.msra.mxu0 0.0
      %2423 = vmatprep.subr.mxu0 0.0
      %2424 = vmatpush1.msra.mxu0 0.0
      %2425 = vmatprep.subr.mxu0 0.0
      %2426 = vmatpush1.msra.mxu0 0.0
      %2427 = vmatprep.subr.mxu0 0.0
      %2428 = vmatpush1.msra.mxu0 0.0
      %2429 = vmatprep.subr.mxu0 0.0
      %2430 = vmatpush1.msra.mxu0 0.0
      %2431 = vmatprep.subr.mxu0 0.0
      %2432 = vmatpush1.msra.mxu0 0.0
      %2433 = vmatprep.subr.mxu0 0.0
      %2434 = vmatpush1.msra.mxu0 0.0
      %2435 = vmatprep.mubr.f32.mxu0 0.0
      %2436 = vmatmul.mubr.f32.gmra.mrb[0].mxu0 %v2342
      %v2437 = vpop.f32.mrb[0].mxu0
      %v2438 = vadd.f32 0.0, %v2437
      %v2439 = vpop.f32.mrb[0].mxu0
      %2440 = vmatprep.mubr.f32.mxu0 0.0
      %2441 = vmatmul.mubr.f32.gmra.mrb[0].mxu0 %v2343
      %v2442 = vpop.f32.mrb[0].mxu0
      %v2443 = vadd.f32 0.0, %v2442
      %v2444 = vpop.f32.mrb[0].mxu0
      %2445 = vmatprep.mubr.f32.mxu0 0.0
      %2446 = vmatmul.mubr.f32.gmra.mrb[0].mxu0 %v2344
      %v2447 = vpop.f32.mrb[0].mxu0
      %v2448 = vadd.f32 0.0, %v2447
      %v2449 = vpop.f32.mrb[0].mxu0
      %2450 = vmatprep.mubr.f32.mxu0 0.0
      %2451 = vmatmul.mubr.f32.gmra.mrb[0].mxu0 %v2345
      %v2452 = vpop.f32.mrb[0].mxu0
      %v2453 = vadd.f32 0.0, %v2452
      %v2454 = vpop.f32.mrb[0].mxu0
      %2455 = vmatprep.mubr.f32.mxu0 0.0
      %2456 = vmatmul.mubr.f32.gmra.mrb[0].mxu0 %v2346
      %v2457 = vpop.f32.mrb[0].mxu0
      %v2458 = vadd.f32 0.0, %v2457
      %v2459 = vpop.f32.mrb[0].mxu0
      %2460 = vmatprep.mubr.f32.mxu0 0.0
      %2461 = vmatmul.mubr.f32.gmra.mrb[0].mxu0 %v2347
      %v2462 = vpop.f32.mrb[0].mxu0
      %v2463 = vadd.f32 0.0, %v2462
      %v2464 = vpop.f32.mrb[0].mxu0
      %2465 = vmatprep.mubr.f32.mxu0 0.0
      %2466 = vmatmul.mubr.f32.gmra.mrb[0].mxu0 %v2348
      %v2467 = vpop.f32.mrb[0].mxu0
      %v2468 = vadd.f32 0.0, %v2467
      %v2469 = vpop.f32.mrb[0].mxu0
      %2470 = vmatprep.mubr.f32.mxu0 0.0
      %2471 = vmatmul.mubr.f32.gmra.mrb[0].mxu0 %v2349
      %v2472 = vpop.f32.mrb[0].mxu0
      %v2473 = vadd.f32 0.0, %v2472
      %v2474 = vpop.f32.mrb[0].mxu0
      %2475 = vmatprep.mubr.f32.mxu0 0.0
      %2476 = vmatmul.mubr.f32.gmra.mrb[0].mxu0 %v2350
      %v2477 = vpop.f32.mrb[0].mxu0
      %v2478 = vadd.f32 0.0, %v2477
      %v2479 = vpop.f32.mrb[0].mxu0
      %2480 = vmatprep.mubr.f32.mxu0 0.0
      %2481 = vmatmul.mubr.f32.gmra.mrb[0].mxu0 %v2351
      %v2482 = vpop.f32.mrb[0].mxu0
      %v2483 = vadd.f32 0.0, %v2482
      %v2484 = vpop.f32.mrb[0].mxu0
      %2485 = vmatprep.mubr.f32.mxu0 0.0
      %2486 = vmatmul.mubr.f32.gmra.mrb[0].mxu0 %v2352
      %v2487 = vpop.f32.mrb[0].mxu0
      %v2488 = vadd.f32 0.0, %v2487
      %v2489 = vpop.f32.mrb[0].mxu0
      %2490 = vmatprep.mubr.f32.mxu0 0.0
      %2491 = vmatmul.mubr.f32.gmra.mrb[0].mxu0 %v2353
      %v2492 = vpop.f32.mrb[0].mxu0
      %v2493 = vadd.f32 0.0, %v2492
      %v2494 = vpop.f32.mrb[0].mxu0
      %2495 = vdwg.mxu0
      %v2496 = vadd.f32 %v2330, %v2438
      %v2497 = vadd.f32 %v2331, %v2443
      %v2498 = vadd.f32 %v2332, %v2448
      %v2499 = vadd.f32 %v2333, %v2453
      %v2500 = vadd.f32 %v2334, %v2458
      %v2501 = vadd.f32 %v2335, %v2463
      %v2502 = vadd.f32 %v2336, %v2468
      %v2503 = vadd.f32 %v2337, %v2473
      %v2504 = vadd.f32 %v2338, %v2478
      %v2505 = vadd.f32 %v2339, %v2483
      %v2506 = vadd.f32 %v2340, %v2488
      %v2507 = vadd.f32 %v2341, %v2493
      %v2508 = vld [vmem:[#allocation2 + $0x10] sm:$0xff]
      %v2509 = vld [vmem:[#allocation2 + $0x18] sm:$0xff]
      %v2510 = vld [vmem:[#allocation2 + $0x20] sm:$0xff]
      %v2511 = vld [vmem:[#allocation2 + $0x28] sm:$0xff]
      %v2512 = vld [vmem:[#allocation2 + $0x30] sm:$0xff]
      %v2513 = vld [vmem:[#allocation2 + $0x38] sm:$0xff]
      %v2514 = vld [vmem:[#allocation2 + $0x40] sm:$0xff]
      %v2515 = vld [vmem:[#allocation2 + $0x48] sm:$0xff]
      %v2516 = vld [vmem:[#allocation2 + $0x50] sm:$0xff]
      %v2517 = vld [vmem:[#allocation2 + $0x58] sm:$0xff]
      %v2518 = vld [vmem:[#allocation2 + $0x60] sm:$0xff]
      %v2519 = vld [vmem:[#allocation2 + $0x68] sm:$0x3f]
      %s2520 = scalar_lea.vmem %s2, 384
      %v2521 = vld [vmem:[%s2520] sm:$0xff]
      %v2522 = vld [vmem:[%s2520 + $0x8] sm:$0xff]
      %v2523 = vld [vmem:[%s2520 + $0x10] sm:$0xff]
      %v2524 = vld [vmem:[%s2520 + $0x18] sm:$0xff]
      %v2525 = vld [vmem:[%s2520 + $0x20] sm:$0xff]
      %v2526 = vld [vmem:[%s2520 + $0x28] sm:$0xff]
      %v2527 = vld [vmem:[%s2520 + $0x30] sm:$0xff]
      %v2528 = vld [vmem:[%s2520 + $0x38] sm:$0xff]
      %v2529 = vld [vmem:[%s2520 + $0x40] sm:$0xff]
      %v2530 = vld [vmem:[%s2520 + $0x48] sm:$0xff]
      %v2531 = vld [vmem:[%s2520 + $0x50] sm:$0xff]
      %v2532 = vld [vmem:[%s2520 + $0x58] sm:$0xff]
      %v2533 = vld [vmem:[%s2520 + $0x60] sm:$0xff]
      %v2534 = vld [vmem:[%s2520 + $0x68] sm:$0xff]
      %v2535 = vld [vmem:[%s2520 + $0x70] sm:$0xff]
      %v2536 = vld [vmem:[%s2520 + $0x78] sm:$0xff]
      %2537 = vmatprep.subr.mxu0 0.0
      %2538 = vmatpush1.msra.mxu0 %v2521
      %2539 = vmatprep.subr.mxu0 0.0
      %2540 = vmatpush1.msra.mxu0 %v2522
      %2541 = vmatprep.subr.mxu0 0.0
      %2542 = vmatpush1.msra.mxu0 %v2523
      %2543 = vmatprep.subr.mxu0 0.0
      %2544 = vmatpush1.msra.mxu0 %v2524
      %2545 = vmatprep.subr.mxu0 0.0
      %2546 = vmatpush1.msra.mxu0 %v2525
      %2547 = vmatprep.subr.mxu0 0.0
      %2548 = vmatpush1.msra.mxu0 %v2526
      %2549 = vmatprep.subr.mxu0 0.0
      %2550 = vmatpush1.msra.mxu0 %v2527
      %2551 = vmatprep.subr.mxu0 0.0
      %2552 = vmatpush1.msra.mxu0 %v2528
      %2553 = vmatprep.subr.mxu0 0.0
      %2554 = vmatpush1.msra.mxu0 %v2529
      %2555 = vmatprep.subr.mxu0 0.0
      %2556 = vmatpush1.msra.mxu0 %v2530
      %2557 = vmatprep.subr.mxu0 0.0
      %2558 = vmatpush1.msra.mxu0 %v2531
      %2559 = vmatprep.subr.mxu0 0.0
      %2560 = vmatpush1.msra.mxu0 %v2532
      %2561 = vmatprep.subr.mxu0 0.0
      %2562 = vmatpush1.msra.mxu0 %v2533
      %2563 = vmatprep.subr.mxu0 0.0
      %2564 = vmatpush1.msra.mxu0 %v2534
      %2565 = vmatprep.subr.mxu0 0.0
      %2566 = vmatpush1.msra.mxu0 %v2535
      %2567 = vmatprep.subr.mxu0 0.0
      %2568 = vmatpush1.msra.mxu0 %v2536
      %2569 = vmatprep.subr.mxu0 0.0
      %2570 = vmatpush1.msra.mxu0 0.0
      %2571 = vmatprep.subr.mxu0 0.0
      %2572 = vmatpush1.msra.mxu0 0.0
      %2573 = vmatprep.subr.mxu0 0.0
      %2574 = vmatpush1.msra.mxu0 0.0
      %2575 = vmatprep.subr.mxu0 0.0
      %2576 = vmatpush1.msra.mxu0 0.0
      %2577 = vmatprep.subr.mxu0 0.0
      %2578 = vmatpush1.msra.mxu0 0.0
      %2579 = vmatprep.subr.mxu0 0.0
      %2580 = vmatpush1.msra.mxu0 0.0
      %2581 = vmatprep.subr.mxu0 0.0
      %2582 = vmatpush1.msra.mxu0 0.0
      %2583 = vmatprep.subr.mxu0 0.0
      %2584 = vmatpush1.msra.mxu0 0.0
      %2585 = vmatprep.subr.mxu0 0.0
      %2586 = vmatpush1.msra.mxu0 0.0
      %2587 = vmatprep.subr.mxu0 0.0
      %2588 = vmatpush1.msra.mxu0 0.0
      %2589 = vmatprep.subr.mxu0 0.0
      %2590 = vmatpush1.msra.mxu0 0.0
      %2591 = vmatprep.subr.mxu0 0.0
      %2592 = vmatpush1.msra.mxu0 0.0
      %2593 = vmatprep.subr.mxu0 0.0
      %2594 = vmatpush1.msra.mxu0 0.0
      %2595 = vmatprep.subr.mxu0 0.0
      %2596 = vmatpush1.msra.mxu0 0.0
      %2597 = vmatprep.subr.mxu0 0.0
      %2598 = vmatpush1.msra.mxu0 0.0
      %2599 = vmatprep.subr.mxu0 0.0
      %2600 = vmatpush1.msra.mxu0 0.0
      %2601 = vmatprep.mubr.f32.mxu0 0.0
      %2602 = vmatmul.mubr.f32.gmra.mrb[0].mxu0 %v2508
      %v2603 = vpop.f32.mrb[0].mxu0
      %v2604 = vadd.f32 0.0, %v2603
      %v2605 = vpop.f32.mrb[0].mxu0
      %2606 = vmatprep.mubr.f32.mxu0 0.0
      %2607 = vmatmul.mubr.f32.gmra.mrb[0].mxu0 %v2509
      %v2608 = vpop.f32.mrb[0].mxu0
      %v2609 = vadd.f32 0.0, %v2608
      %v2610 = vpop.f32.mrb[0].mxu0
      %2611 = vmatprep.mubr.f32.mxu0 0.0
      %2612 = vmatmul.mubr.f32.gmra.mrb[0].mxu0 %v2510
      %v2613 = vpop.f32.mrb[0].mxu0
      %v2614 = vadd.f32 0.0, %v2613
      %v2615 = vpop.f32.mrb[0].mxu0
      %2616 = vmatprep.mubr.f32.mxu0 0.0
      %2617 = vmatmul.mubr.f32.gmra.mrb[0].mxu0 %v2511
      %v2618 = vpop.f32.mrb[0].mxu0
      %v2619 = vadd.f32 0.0, %v2618
      %v2620 = vpop.f32.mrb[0].mxu0
      %2621 = vmatprep.mubr.f32.mxu0 0.0
      %2622 = vmatmul.mubr.f32.gmra.mrb[0].mxu0 %v2512
      %v2623 = vpop.f32.mrb[0].mxu0
      %v2624 = vadd.f32 0.0, %v2623
      %v2625 = vpop.f32.mrb[0].mxu0
      %2626 = vmatprep.mubr.f32.mxu0 0.0
      %2627 = vmatmul.mubr.f32.gmra.mrb[0].mxu0 %v2513
      %v2628 = vpop.f32.mrb[0].mxu0
      %v2629 = vadd.f32 0.0, %v2628
      %v2630 = vpop.f32.mrb[0].mxu0
      %2631 = vmatprep.mubr.f32.mxu0 0.0
      %2632 = vmatmul.mubr.f32.gmra.mrb[0].mxu0 %v2514
      %v2633 = vpop.f32.mrb[0].mxu0
      %v2634 = vadd.f32 0.0, %v2633
      %v2635 = vpop.f32.mrb[0].mxu0
      %2636 = vmatprep.mubr.f32.mxu0 0.0
      %2637 = vmatmul.mubr.f32.gmra.mrb[0].mxu0 %v2515
      %v2638 = vpop.f32.mrb[0].mxu0
      %v2639 = vadd.f32 0.0, %v2638
      %v2640 = vpop.f32.mrb[0].mxu0
      %2641 = vmatprep.mubr.f32.mxu0 0.0
      %2642 = vmatmul.mubr.f32.gmra.mrb[0].mxu0 %v2516
      %v2643 = vpop.f32.mrb[0].mxu0
      %v2644 = vadd.f32 0.0, %v2643
      %v2645 = vpop.f32.mrb[0].mxu0
      %2646 = vmatprep.mubr.f32.mxu0 0.0
      %2647 = vmatmul.mubr.f32.gmra.mrb[0].mxu0 %v2517
      %v2648 = vpop.f32.mrb[0].mxu0
      %v2649 = vadd.f32 0.0, %v2648
      %v2650 = vpop.f32.mrb[0].mxu0
      %2651 = vmatprep.mubr.f32.mxu0 0.0
      %2652 = vmatmul.mubr.f32.gmra.mrb[0].mxu0 %v2518
      %v2653 = vpop.f32.mrb[0].mxu0
      %v2654 = vadd.f32 0.0, %v2653
      %v2655 = vpop.f32.mrb[0].mxu0
      %2656 = vmatprep.mubr.f32.mxu0 0.0
      %2657 = vmatmul.mubr.f32.gmra.mrb[0].mxu0 %v2519
      %v2658 = vpop.f32.mrb[0].mxu0
      %v2659 = vadd.f32 0.0, %v2658
      %v2660 = vpop.f32.mrb[0].mxu0
      %2661 = vdwg.mxu0
      %v2662 = vadd.f32 %v2496, %v2604
      %v2663 = vadd.f32 %v2497, %v2609
      %v2664 = vadd.f32 %v2498, %v2614
      %v2665 = vadd.f32 %v2499, %v2619
      %v2666 = vadd.f32 %v2500, %v2624
      %v2667 = vadd.f32 %v2501, %v2629
      %v2668 = vadd.f32 %v2502, %v2634
      %v2669 = vadd.f32 %v2503, %v2639
      %v2670 = vadd.f32 %v2504, %v2644
      %v2671 = vadd.f32 %v2505, %v2649
      %v2672 = vadd.f32 %v2506, %v2654
      %v2673 = vadd.f32 %v2507, %v2659
      %v2674 = vld [vmem:[#allocation2 + $0x11] sm:$0xff]
      %v2675 = vld [vmem:[#allocation2 + $0x19] sm:$0xff]
      %v2676 = vld [vmem:[#allocation2 + $0x21] sm:$0xff]
      %v2677 = vld [vmem:[#allocation2 + $0x29] sm:$0xff]
      %v2678 = vld [vmem:[#allocation2 + $0x31] sm:$0xff]
      %v2679 = vld [vmem:[#allocation2 + $0x39] sm:$0xff]
      %v2680 = vld [vmem:[#allocation2 + $0x41] sm:$0xff]
      %v2681 = vld [vmem:[#allocation2 + $0x49] sm:$0xff]
      %v2682 = vld [vmem:[#allocation2 + $0x51] sm:$0xff]
      %v2683 = vld [vmem:[#allocation2 + $0x59] sm:$0xff]
      %v2684 = vld [vmem:[#allocation2 + $0x61] sm:$0xff]
      %v2685 = vld [vmem:[#allocation2 + $0x69] sm:$0x3f]
      %s2686 = scalar_lea.vmem %s2, 512
      %v2687 = vld [vmem:[%s2686] sm:$0xff]
      %v2688 = vld [vmem:[%s2686 + $0x8] sm:$0xff]
      %v2689 = vld [vmem:[%s2686 + $0x10] sm:$0xff]
      %v2690 = vld [vmem:[%s2686 + $0x18] sm:$0xff]
      %v2691 = vld [vmem:[%s2686 + $0x20] sm:$0xff]
      %v2692 = vld [vmem:[%s2686 + $0x28] sm:$0xff]
      %v2693 = vld [vmem:[%s2686 + $0x30] sm:$0xff]
      %v2694 = vld [vmem:[%s2686 + $0x38] sm:$0xff]
      %v2695 = vld [vmem:[%s2686 + $0x40] sm:$0xff]
      %v2696 = vld [vmem:[%s2686 + $0x48] sm:$0xff]
      %v2697 = vld [vmem:[%s2686 + $0x50] sm:$0xff]
      %v2698 = vld [vmem:[%s2686 + $0x58] sm:$0xff]
      %v2699 = vld [vmem:[%s2686 + $0x60] sm:$0xff]
      %v2700 = vld [vmem:[%s2686 + $0x68] sm:$0xff]
      %v2701 = vld [vmem:[%s2686 + $0x70] sm:$0xff]
      %v2702 = vld [vmem:[%s2686 + $0x78] sm:$0xff]
      %2703 = vmatprep.subr.mxu0 0.0
      %2704 = vmatpush1.msra.mxu0 %v2687
      %2705 = vmatprep.subr.mxu0 0.0
      %2706 = vmatpush1.msra.mxu0 %v2688
      %2707 = vmatprep.subr.mxu0 0.0
      %2708 = vmatpush1.msra.mxu0 %v2689
      %2709 = vmatprep.subr.mxu0 0.0
      %2710 = vmatpush1.msra.mxu0 %v2690
      %2711 = vmatprep.subr.mxu0 0.0
      %2712 = vmatpush1.msra.mxu0 %v2691
      %2713 = vmatprep.subr.mxu0 0.0
      %2714 = vmatpush1.msra.mxu0 %v2692
      %2715 = vmatprep.subr.mxu0 0.0
      %2716 = vmatpush1.msra.mxu0 %v2693
      %2717 = vmatprep.subr.mxu0 0.0
      %2718 = vmatpush1.msra.mxu0 %v2694
      %2719 = vmatprep.subr.mxu0 0.0
      %2720 = vmatpush1.msra.mxu0 %v2695
      %2721 = vmatprep.subr.mxu0 0.0
      %2722 = vmatpush1.msra.mxu0 %v2696
      %2723 = vmatprep.subr.mxu0 0.0
      %2724 = vmatpush1.msra.mxu0 %v2697
      %2725 = vmatprep.subr.mxu0 0.0
      %2726 = vmatpush1.msra.mxu0 %v2698
      %2727 = vmatprep.subr.mxu0 0.0
      %2728 = vmatpush1.msra.mxu0 %v2699
      %2729 = vmatprep.subr.mxu0 0.0
      %2730 = vmatpush1.msra.mxu0 %v2700
      %2731 = vmatprep.subr.mxu0 0.0
      %2732 = vmatpush1.msra.mxu0 %v2701
      %2733 = vmatprep.subr.mxu0 0.0
      %2734 = vmatpush1.msra.mxu0 %v2702
      %2735 = vmatprep.subr.mxu0 0.0
      %2736 = vmatpush1.msra.mxu0 0.0
      %2737 = vmatprep.subr.mxu0 0.0
      %2738 = vmatpush1.msra.mxu0 0.0
      %2739 = vmatprep.subr.mxu0 0.0
      %2740 = vmatpush1.msra.mxu0 0.0
      %2741 = vmatprep.subr.mxu0 0.0
      %2742 = vmatpush1.msra.mxu0 0.0
      %2743 = vmatprep.subr.mxu0 0.0
      %2744 = vmatpush1.msra.mxu0 0.0
      %2745 = vmatprep.subr.mxu0 0.0
      %2746 = vmatpush1.msra.mxu0 0.0
      %2747 = vmatprep.subr.mxu0 0.0
      %2748 = vmatpush1.msra.mxu0 0.0
      %2749 = vmatprep.subr.mxu0 0.0
      %2750 = vmatpush1.msra.mxu0 0.0
      %2751 = vmatprep.subr.mxu0 0.0
      %2752 = vmatpush1.msra.mxu0 0.0
      %2753 = vmatprep.subr.mxu0 0.0
      %2754 = vmatpush1.msra.mxu0 0.0
      %2755 = vmatprep.subr.mxu0 0.0
      %2756 = vmatpush1.msra.mxu0 0.0
      %2757 = vmatprep.subr.mxu0 0.0
      %2758 = vmatpush1.msra.mxu0 0.0
      %2759 = vmatprep.subr.mxu0 0.0
      %2760 = vmatpush1.msra.mxu0 0.0
      %2761 = vmatprep.subr.mxu0 0.0
      %2762 = vmatpush1.msra.mxu0 0.0
      %2763 = vmatprep.subr.mxu0 0.0
      %2764 = vmatpush1.msra.mxu0 0.0
      %2765 = vmatprep.subr.mxu0 0.0
      %2766 = vmatpush1.msra.mxu0 0.0
      %2767 = vmatprep.mubr.f32.mxu0 0.0
      %2768 = vmatmul.mubr.f32.gmra.mrb[0].mxu0 %v2674
      %v2769 = vpop.f32.mrb[0].mxu0
      %v2770 = vadd.f32 0.0, %v2769
      %v2771 = vpop.f32.mrb[0].mxu0
      %2772 = vmatprep.mubr.f32.mxu0 0.0
      %2773 = vmatmul.mubr.f32.gmra.mrb[0].mxu0 %v2675
      %v2774 = vpop.f32.mrb[0].mxu0
      %v2775 = vadd.f32 0.0, %v2774
      %v2776 = vpop.f32.mrb[0].mxu0
      %2777 = vmatprep.mubr.f32.mxu0 0.0
      %2778 = vmatmul.mubr.f32.gmra.mrb[0].mxu0 %v2676
      %v2779 = vpop.f32.mrb[0].mxu0
      %v2780 = vadd.f32 0.0, %v2779
      %v2781 = vpop.f32.mrb[0].mxu0
      %2782 = vmatprep.mubr.f32.mxu0 0.0
      %2783 = vmatmul.mubr.f32.gmra.mrb[0].mxu0 %v2677
      %v2784 = vpop.f32.mrb[0].mxu0
      %v2785 = vadd.f32 0.0, %v2784
      %v2786 = vpop.f32.mrb[0].mxu0
      %2787 = vmatprep.mubr.f32.mxu0 0.0
      %2788 = vmatmul.mubr.f32.gmra.mrb[0].mxu0 %v2678
      %v2789 = vpop.f32.mrb[0].mxu0
      %v2790 = vadd.f32 0.0, %v2789
      %v2791 = vpop.f32.mrb[0].mxu0
      %2792 = vmatprep.mubr.f32.mxu0 0.0
      %2793 = vmatmul.mubr.f32.gmra.mrb[0].mxu0 %v2679
      %v2794 = vpop.f32.mrb[0].mxu0
      %v2795 = vadd.f32 0.0, %v2794
      %v2796 = vpop.f32.mrb[0].mxu0
      %2797 = vmatprep.mubr.f32.mxu0 0.0
      %2798 = vmatmul.mubr.f32.gmra.mrb[0].mxu0 %v2680
      %v2799 = vpop.f32.mrb[0].mxu0
      %v2800 = vadd.f32 0.0, %v2799
      %v2801 = vpop.f32.mrb[0].mxu0
      %2802 = vmatprep.mubr.f32.mxu0 0.0
      %2803 = vmatmul.mubr.f32.gmra.mrb[0].mxu0 %v2681
      %v2804 = vpop.f32.mrb[0].mxu0
      %v2805 = vadd.f32 0.0, %v2804
      %v2806 = vpop.f32.mrb[0].mxu0
      %2807 = vmatprep.mubr.f32.mxu0 0.0
      %2808 = vmatmul.mubr.f32.gmra.mrb[0].mxu0 %v2682
      %v2809 = vpop.f32.mrb[0].mxu0
      %v2810 = vadd.f32 0.0, %v2809
      %v2811 = vpop.f32.mrb[0].mxu0
      %2812 = vmatprep.mubr.f32.mxu0 0.0
      %2813 = vmatmul.mubr.f32.gmra.mrb[0].mxu0 %v2683
      %v2814 = vpop.f32.mrb[0].mxu0
      %v2815 = vadd.f32 0.0, %v2814
      %v2816 = vpop.f32.mrb[0].mxu0
      %2817 = vmatprep.mubr.f32.mxu0 0.0
      %2818 = vmatmul.mubr.f32.gmra.mrb[0].mxu0 %v2684
      %v2819 = vpop.f32.mrb[0].mxu0
      %v2820 = vadd.f32 0.0, %v2819
      %v2821 = vpop.f32.mrb[0].mxu0
      %2822 = vmatprep.mubr.f32.mxu0 0.0
      %2823 = vmatmul.mubr.f32.gmra.mrb[0].mxu0 %v2685
      %v2824 = vpop.f32.mrb[0].mxu0
      %v2825 = vadd.f32 0.0, %v2824
      %v2826 = vpop.f32.mrb[0].mxu0
      %2827 = vdwg.mxu0
      %v2828 = vadd.f32 %v2662, %v2770
      %v2829 = vadd.f32 %v2663, %v2775
      %v2830 = vadd.f32 %v2664, %v2780
      %v2831 = vadd.f32 %v2665, %v2785
      %v2832 = vadd.f32 %v2666, %v2790
      %v2833 = vadd.f32 %v2667, %v2795
      %v2834 = vadd.f32 %v2668, %v2800
      %v2835 = vadd.f32 %v2669, %v2805
      %v2836 = vadd.f32 %v2670, %v2810
      %v2837 = vadd.f32 %v2671, %v2815
      %v2838 = vadd.f32 %v2672, %v2820
      %v2839 = vadd.f32 %v2673, %v2825
      %v2840 = vld [vmem:[#allocation2 + $0x12] sm:$0xff]
      %v2841 = vld [vmem:[#allocation2 + $0x1a] sm:$0xff]
      %v2842 = vld [vmem:[#allocation2 + $0x22] sm:$0xff]
      %v2843 = vld [vmem:[#allocation2 + $0x2a] sm:$0xff]
      %v2844 = vld [vmem:[#allocation2 + $0x32] sm:$0xff]
      %v2845 = vld [vmem:[#allocation2 + $0x3a] sm:$0xff]
      %v2846 = vld [vmem:[#allocation2 + $0x42] sm:$0xff]
      %v2847 = vld [vmem:[#allocation2 + $0x4a] sm:$0xff]
      %v2848 = vld [vmem:[#allocation2 + $0x52] sm:$0xff]
      %v2849 = vld [vmem:[#allocation2 + $0x5a] sm:$0xff]
      %v2850 = vld [vmem:[#allocation2 + $0x62] sm:$0xff]
      %v2851 = vld [vmem:[#allocation2 + $0x6a] sm:$0x3f]
      %s2852 = scalar_lea.vmem %s2, 640
      %v2853 = vld [vmem:[%s2852] sm:$0xff]
      %v2854 = vld [vmem:[%s2852 + $0x8] sm:$0xff]
      %v2855 = vld [vmem:[%s2852 + $0x10] sm:$0xff]
      %v2856 = vld [vmem:[%s2852 + $0x18] sm:$0xff]
      %v2857 = vld [vmem:[%s2852 + $0x20] sm:$0xff]
      %v2858 = vld [vmem:[%s2852 + $0x28] sm:$0xff]
      %v2859 = vld [vmem:[%s2852 + $0x30] sm:$0xff]
      %v2860 = vld [vmem:[%s2852 + $0x38] sm:$0xff]
      %v2861 = vld [vmem:[%s2852 + $0x40] sm:$0xff]
      %v2862 = vld [vmem:[%s2852 + $0x48] sm:$0xff]
      %v2863 = vld [vmem:[%s2852 + $0x50] sm:$0xff]
      %v2864 = vld [vmem:[%s2852 + $0x58] sm:$0xff]
      %v2865 = vld [vmem:[%s2852 + $0x60] sm:$0xff]
      %v2866 = vld [vmem:[%s2852 + $0x68] sm:$0xff]
      %v2867 = vld [vmem:[%s2852 + $0x70] sm:$0xff]
      %v2868 = vld [vmem:[%s2852 + $0x78] sm:$0xff]
      %2869 = vmatprep.subr.mxu0 0.0
      %2870 = vmatpush1.msra.mxu0 %v2853
      %2871 = vmatprep.subr.mxu0 0.0
      %2872 = vmatpush1.msra.mxu0 %v2854
      %2873 = vmatprep.subr.mxu0 0.0
      %2874 = vmatpush1.msra.mxu0 %v2855
      %2875 = vmatprep.subr.mxu0 0.0
      %2876 = vmatpush1.msra.mxu0 %v2856
      %2877 = vmatprep.subr.mxu0 0.0
      %2878 = vmatpush1.msra.mxu0 %v2857
      %2879 = vmatprep.subr.mxu0 0.0
      %2880 = vmatpush1.msra.mxu0 %v2858
      %2881 = vmatprep.subr.mxu0 0.0
      %2882 = vmatpush1.msra.mxu0 %v2859
      %2883 = vmatprep.subr.mxu0 0.0
      %2884 = vmatpush1.msra.mxu0 %v2860
      %2885 = vmatprep.subr.mxu0 0.0
      %2886 = vmatpush1.msra.mxu0 %v2861
      %2887 = vmatprep.subr.mxu0 0.0
      %2888 = vmatpush1.msra.mxu0 %v2862
      %2889 = vmatprep.subr.mxu0 0.0
      %2890 = vmatpush1.msra.mxu0 %v2863
      %2891 = vmatprep.subr.mxu0 0.0
      %2892 = vmatpush1.msra.mxu0 %v2864
      %2893 = vmatprep.subr.mxu0 0.0
      %2894 = vmatpush1.msra.mxu0 %v2865
      %2895 = vmatprep.subr.mxu0 0.0
      %2896 = vmatpush1.msra.mxu0 %v2866
      %2897 = vmatprep.subr.mxu0 0.0
      %2898 = vmatpush1.msra.mxu0 %v2867
      %2899 = vmatprep.subr.mxu0 0.0
      %2900 = vmatpush1.msra.mxu0 %v2868
      %2901 = vmatprep.subr.mxu0 0.0
      %2902 = vmatpush1.msra.mxu0 0.0
      %2903 = vmatprep.subr.mxu0 0.0
      %2904 = vmatpush1.msra.mxu0 0.0
      %2905 = vmatprep.subr.mxu0 0.0
      %2906 = vmatpush1.msra.mxu0 0.0
      %2907 = vmatprep.subr.mxu0 0.0
      %2908 = vmatpush1.msra.mxu0 0.0
      %2909 = vmatprep.subr.mxu0 0.0
      %2910 = vmatpush1.msra.mxu0 0.0
      %2911 = vmatprep.subr.mxu0 0.0
      %2912 = vmatpush1.msra.mxu0 0.0
      %2913 = vmatprep.subr.mxu0 0.0
      %2914 = vmatpush1.msra.mxu0 0.0
      %2915 = vmatprep.subr.mxu0 0.0
      %2916 = vmatpush1.msra.mxu0 0.0
      %2917 = vmatprep.subr.mxu0 0.0
      %2918 = vmatpush1.msra.mxu0 0.0
      %2919 = vmatprep.subr.mxu0 0.0
      %2920 = vmatpush1.msra.mxu0 0.0
      %2921 = vmatprep.subr.mxu0 0.0
      %2922 = vmatpush1.msra.mxu0 0.0
      %2923 = vmatprep.subr.mxu0 0.0
      %2924 = vmatpush1.msra.mxu0 0.0
      %2925 = vmatprep.subr.mxu0 0.0
      %2926 = vmatpush1.msra.mxu0 0.0
      %2927 = vmatprep.subr.mxu0 0.0
      %2928 = vmatpush1.msra.mxu0 0.0
      %2929 = vmatprep.subr.mxu0 0.0
      %2930 = vmatpush1.msra.mxu0 0.0
      %2931 = vmatprep.subr.mxu0 0.0
      %2932 = vmatpush1.msra.mxu0 0.0
      %2933 = vmatprep.mubr.f32.mxu0 0.0
      %2934 = vmatmul.mubr.f32.gmra.mrb[0].mxu0 %v2840
      %v2935 = vpop.f32.mrb[0].mxu0
      %v2936 = vadd.f32 0.0, %v2935
      %v2937 = vpop.f32.mrb[0].mxu0
      %2938 = vmatprep.mubr.f32.mxu0 0.0
      %2939 = vmatmul.mubr.f32.gmra.mrb[0].mxu0 %v2841
      %v2940 = vpop.f32.mrb[0].mxu0
      %v2941 = vadd.f32 0.0, %v2940
      %v2942 = vpop.f32.mrb[0].mxu0
      %2943 = vmatprep.mubr.f32.mxu0 0.0
      %2944 = vmatmul.mubr.f32.gmra.mrb[0].mxu0 %v2842
      %v2945 = vpop.f32.mrb[0].mxu0
      %v2946 = vadd.f32 0.0, %v2945
      %v2947 = vpop.f32.mrb[0].mxu0
      %2948 = vmatprep.mubr.f32.mxu0 0.0
      %2949 = vmatmul.mubr.f32.gmra.mrb[0].mxu0 %v2843
      %v2950 = vpop.f32.mrb[0].mxu0
      %v2951 = vadd.f32 0.0, %v2950
      %v2952 = vpop.f32.mrb[0].mxu0
      %2953 = vmatprep.mubr.f32.mxu0 0.0
      %2954 = vmatmul.mubr.f32.gmra.mrb[0].mxu0 %v2844
      %v2955 = vpop.f32.mrb[0].mxu0
      %v2956 = vadd.f32 0.0, %v2955
      %v2957 = vpop.f32.mrb[0].mxu0
      %2958 = vmatprep.mubr.f32.mxu0 0.0
      %2959 = vmatmul.mubr.f32.gmra.mrb[0].mxu0 %v2845
      %v2960 = vpop.f32.mrb[0].mxu0
      %v2961 = vadd.f32 0.0, %v2960
      %v2962 = vpop.f32.mrb[0].mxu0
      %2963 = vmatprep.mubr.f32.mxu0 0.0
      %2964 = vmatmul.mubr.f32.gmra.mrb[0].mxu0 %v2846
      %v2965 = vpop.f32.mrb[0].mxu0
      %v2966 = vadd.f32 0.0, %v2965
      %v2967 = vpop.f32.mrb[0].mxu0
      %2968 = vmatprep.mubr.f32.mxu0 0.0
      %2969 = vmatmul.mubr.f32.gmra.mrb[0].mxu0 %v2847
      %v2970 = vpop.f32.mrb[0].mxu0
      %v2971 = vadd.f32 0.0, %v2970
      %v2972 = vpop.f32.mrb[0].mxu0
      %2973 = vmatprep.mubr.f32.mxu0 0.0
      %2974 = vmatmul.mubr.f32.gmra.mrb[0].mxu0 %v2848
      %v2975 = vpop.f32.mrb[0].mxu0
      %v2976 = vadd.f32 0.0, %v2975
      %v2977 = vpop.f32.mrb[0].mxu0
      %2978 = vmatprep.mubr.f32.mxu0 0.0
      %2979 = vmatmul.mubr.f32.gmra.mrb[0].mxu0 %v2849
      %v2980 = vpop.f32.mrb[0].mxu0
      %v2981 = vadd.f32 0.0, %v2980
      %v2982 = vpop.f32.mrb[0].mxu0
      %2983 = vmatprep.mubr.f32.mxu0 0.0
      %2984 = vmatmul.mubr.f32.gmra.mrb[0].mxu0 %v2850
      %v2985 = vpop.f32.mrb[0].mxu0
      %v2986 = vadd.f32 0.0, %v2985
      %v2987 = vpop.f32.mrb[0].mxu0
      %2988 = vmatprep.mubr.f32.mxu0 0.0
      %2989 = vmatmul.mubr.f32.gmra.mrb[0].mxu0 %v2851
      %v2990 = vpop.f32.mrb[0].mxu0
      %v2991 = vadd.f32 0.0, %v2990
      %v2992 = vpop.f32.mrb[0].mxu0
      %2993 = vdwg.mxu0
      %v2994 = vadd.f32 %v2828, %v2936
      %v2995 = vadd.f32 %v2829, %v2941
      %v2996 = vadd.f32 %v2830, %v2946
      %v2997 = vadd.f32 %v2831, %v2951
      %v2998 = vadd.f32 %v2832, %v2956
      %v2999 = vadd.f32 %v2833, %v2961
      %v3000 = vadd.f32 %v2834, %v2966
      %v3001 = vadd.f32 %v2835, %v2971
      %v3002 = vadd.f32 %v2836, %v2976
      %v3003 = vadd.f32 %v2837, %v2981
      %v3004 = vadd.f32 %v2838, %v2986
      %v3005 = vadd.f32 %v2839, %v2991
      %v3006 = vld [vmem:[#allocation2 + $0x20] sm:$0xff]
      %v3007 = vld [vmem:[#allocation2 + $0x28] sm:$0xff]
      %v3008 = vld [vmem:[#allocation2 + $0x30] sm:$0xff]
      %v3009 = vld [vmem:[#allocation2 + $0x38] sm:$0xff]
      %v3010 = vld [vmem:[#allocation2 + $0x40] sm:$0xff]
      %v3011 = vld [vmem:[#allocation2 + $0x48] sm:$0xff]
      %v3012 = vld [vmem:[#allocation2 + $0x50] sm:$0xff]
      %v3013 = vld [vmem:[#allocation2 + $0x58] sm:$0xff]
      %v3014 = vld [vmem:[#allocation2 + $0x60] sm:$0xff]
      %v3015 = vld [vmem:[#allocation2 + $0x68] sm:$0xff]
      %v3016 = vld [vmem:[#allocation2 + $0x70] sm:$0xff]
      %v3017 = vld [vmem:[#allocation2 + $0x78] sm:$0x3f]
      %s3018 = scalar_lea.vmem %s2, 768
      %v3019 = vld [vmem:[%s3018] sm:$0xff]
      %v3020 = vld [vmem:[%s3018 + $0x8] sm:$0xff]
      %v3021 = vld [vmem:[%s3018 + $0x10] sm:$0xff]
      %v3022 = vld [vmem:[%s3018 + $0x18] sm:$0xff]
      %v3023 = vld [vmem:[%s3018 + $0x20] sm:$0xff]
      %v3024 = vld [vmem:[%s3018 + $0x28] sm:$0xff]
      %v3025 = vld [vmem:[%s3018 + $0x30] sm:$0xff]
      %v3026 = vld [vmem:[%s3018 + $0x38] sm:$0xff]
      %v3027 = vld [vmem:[%s3018 + $0x40] sm:$0xff]
      %v3028 = vld [vmem:[%s3018 + $0x48] sm:$0xff]
      %v3029 = vld [vmem:[%s3018 + $0x50] sm:$0xff]
      %v3030 = vld [vmem:[%s3018 + $0x58] sm:$0xff]
      %v3031 = vld [vmem:[%s3018 + $0x60] sm:$0xff]
      %v3032 = vld [vmem:[%s3018 + $0x68] sm:$0xff]
      %v3033 = vld [vmem:[%s3018 + $0x70] sm:$0xff]
      %v3034 = vld [vmem:[%s3018 + $0x78] sm:$0xff]
      %3035 = vmatprep.subr.mxu0 0.0
      %3036 = vmatpush1.msra.mxu0 %v3019
      %3037 = vmatprep.subr.mxu0 0.0
      %3038 = vmatpush1.msra.mxu0 %v3020
      %3039 = vmatprep.subr.mxu0 0.0
      %3040 = vmatpush1.msra.mxu0 %v3021
      %3041 = vmatprep.subr.mxu0 0.0
      %3042 = vmatpush1.msra.mxu0 %v3022
      %3043 = vmatprep.subr.mxu0 0.0
      %3044 = vmatpush1.msra.mxu0 %v3023
      %3045 = vmatprep.subr.mxu0 0.0
      %3046 = vmatpush1.msra.mxu0 %v3024
      %3047 = vmatprep.subr.mxu0 0.0
      %3048 = vmatpush1.msra.mxu0 %v3025
      %3049 = vmatprep.subr.mxu0 0.0
      %3050 = vmatpush1.msra.mxu0 %v3026
      %3051 = vmatprep.subr.mxu0 0.0
      %3052 = vmatpush1.msra.mxu0 %v3027
      %3053 = vmatprep.subr.mxu0 0.0
      %3054 = vmatpush1.msra.mxu0 %v3028
      %3055 = vmatprep.subr.mxu0 0.0
      %3056 = vmatpush1.msra.mxu0 %v3029
      %3057 = vmatprep.subr.mxu0 0.0
      %3058 = vmatpush1.msra.mxu0 %v3030
      %3059 = vmatprep.subr.mxu0 0.0
      %3060 = vmatpush1.msra.mxu0 %v3031
      %3061 = vmatprep.subr.mxu0 0.0
      %3062 = vmatpush1.msra.mxu0 %v3032
      %3063 = vmatprep.subr.mxu0 0.0
      %3064 = vmatpush1.msra.mxu0 %v3033
      %3065 = vmatprep.subr.mxu0 0.0
      %3066 = vmatpush1.msra.mxu0 %v3034
      %3067 = vmatprep.subr.mxu0 0.0
      %3068 = vmatpush1.msra.mxu0 0.0
      %3069 = vmatprep.subr.mxu0 0.0
      %3070 = vmatpush1.msra.mxu0 0.0
      %3071 = vmatprep.subr.mxu0 0.0
      %3072 = vmatpush1.msra.mxu0 0.0
      %3073 = vmatprep.subr.mxu0 0.0
      %3074 = vmatpush1.msra.mxu0 0.0
      %3075 = vmatprep.subr.mxu0 0.0
      %3076 = vmatpush1.msra.mxu0 0.0
      %3077 = vmatprep.subr.mxu0 0.0
      %3078 = vmatpush1.msra.mxu0 0.0
      %3079 = vmatprep.subr.mxu0 0.0
      %3080 = vmatpush1.msra.mxu0 0.0
      %3081 = vmatprep.subr.mxu0 0.0
      %3082 = vmatpush1.msra.mxu0 0.0
      %3083 = vmatprep.subr.mxu0 0.0
      %3084 = vmatpush1.msra.mxu0 0.0
      %3085 = vmatprep.subr.mxu0 0.0
      %3086 = vmatpush1.msra.mxu0 0.0
      %3087 = vmatprep.subr.mxu0 0.0
      %3088 = vmatpush1.msra.mxu0 0.0
      %3089 = vmatprep.subr.mxu0 0.0
      %3090 = vmatpush1.msra.mxu0 0.0
      %3091 = vmatprep.subr.mxu0 0.0
      %3092 = vmatpush1.msra.mxu0 0.0
      %3093 = vmatprep.subr.mxu0 0.0
      %3094 = vmatpush1.msra.mxu0 0.0
      %3095 = vmatprep.subr.mxu0 0.0
      %3096 = vmatpush1.msra.mxu0 0.0
      %3097 = vmatprep.subr.mxu0 0.0
      %3098 = vmatpush1.msra.mxu0 0.0
      %3099 = vmatprep.mubr.f32.mxu0 0.0
      %3100 = vmatmul.mubr.f32.gmra.mrb[0].mxu0 %v3006
      %v3101 = vpop.f32.mrb[0].mxu0
      %v3102 = vadd.f32 0.0, %v3101
      %v3103 = vpop.f32.mrb[0].mxu0
      %3104 = vmatprep.mubr.f32.mxu0 0.0
      %3105 = vmatmul.mubr.f32.gmra.mrb[0].mxu0 %v3007
      %v3106 = vpop.f32.mrb[0].mxu0
      %v3107 = vadd.f32 0.0, %v3106
      %v3108 = vpop.f32.mrb[0].mxu0
      %3109 = vmatprep.mubr.f32.mxu0 0.0
      %3110 = vmatmul.mubr.f32.gmra.mrb[0].mxu0 %v3008
      %v3111 = vpop.f32.mrb[0].mxu0
      %v3112 = vadd.f32 0.0, %v3111
      %v3113 = vpop.f32.mrb[0].mxu0
      %3114 = vmatprep.mubr.f32.mxu0 0.0
      %3115 = vmatmul.mubr.f32.gmra.mrb[0].mxu0 %v3009
      %v3116 = vpop.f32.mrb[0].mxu0
      %v3117 = vadd.f32 0.0, %v3116
      %v3118 = vpop.f32.mrb[0].mxu0
      %3119 = vmatprep.mubr.f32.mxu0 0.0
      %3120 = vmatmul.mubr.f32.gmra.mrb[0].mxu0 %v3010
      %v3121 = vpop.f32.mrb[0].mxu0
      %v3122 = vadd.f32 0.0, %v3121
      %v3123 = vpop.f32.mrb[0].mxu0
      %3124 = vmatprep.mubr.f32.mxu0 0.0
      %3125 = vmatmul.mubr.f32.gmra.mrb[0].mxu0 %v3011
      %v3126 = vpop.f32.mrb[0].mxu0
      %v3127 = vadd.f32 0.0, %v3126
      %v3128 = vpop.f32.mrb[0].mxu0
      %3129 = vmatprep.mubr.f32.mxu0 0.0
      %3130 = vmatmul.mubr.f32.gmra.mrb[0].mxu0 %v3012
      %v3131 = vpop.f32.mrb[0].mxu0
      %v3132 = vadd.f32 0.0, %v3131
      %v3133 = vpop.f32.mrb[0].mxu0
      %3134 = vmatprep.mubr.f32.mxu0 0.0
      %3135 = vmatmul.mubr.f32.gmra.mrb[0].mxu0 %v3013
      %v3136 = vpop.f32.mrb[0].mxu0
      %v3137 = vadd.f32 0.0, %v3136
      %v3138 = vpop.f32.mrb[0].mxu0
      %3139 = vmatprep.mubr.f32.mxu0 0.0
      %3140 = vmatmul.mubr.f32.gmra.mrb[0].mxu0 %v3014
      %v3141 = vpop.f32.mrb[0].mxu0
      %v3142 = vadd.f32 0.0, %v3141
      %v3143 = vpop.f32.mrb[0].mxu0
      %3144 = vmatprep.mubr.f32.mxu0 0.0
      %3145 = vmatmul.mubr.f32.gmra.mrb[0].mxu0 %v3015
      %v3146 = vpop.f32.mrb[0].mxu0
      %v3147 = vadd.f32 0.0, %v3146
      %v3148 = vpop.f32.mrb[0].mxu0
      %3149 = vmatprep.mubr.f32.mxu0 0.0
      %3150 = vmatmul.mubr.f32.gmra.mrb[0].mxu0 %v3016
      %v3151 = vpop.f32.mrb[0].mxu0
      %v3152 = vadd.f32 0.0, %v3151
      %v3153 = vpop.f32.mrb[0].mxu0
      %3154 = vmatprep.mubr.f32.mxu0 0.0
      %3155 = vmatmul.mubr.f32.gmra.mrb[0].mxu0 %v3017
      %v3156 = vpop.f32.mrb[0].mxu0
      %v3157 = vadd.f32 0.0, %v3156
      %v3158 = vpop.f32.mrb[0].mxu0
      %3159 = vdwg.mxu0
      %v3160 = vadd.f32 %v2994, %v3102
      %v3161 = vadd.f32 %v2995, %v3107
      %v3162 = vadd.f32 %v2996, %v3112
      %v3163 = vadd.f32 %v2997, %v3117
      %v3164 = vadd.f32 %v2998, %v3122
      %v3165 = vadd.f32 %v2999, %v3127
      %v3166 = vadd.f32 %v3000, %v3132
      %v3167 = vadd.f32 %v3001, %v3137
      %v3168 = vadd.f32 %v3002, %v3142
      %v3169 = vadd.f32 %v3003, %v3147
      %v3170 = vadd.f32 %v3004, %v3152
      %v3171 = vadd.f32 %v3005, %v3157
      %v3172 = vld [vmem:[#allocation2 + $0x21] sm:$0xff]
      %v3173 = vld [vmem:[#allocation2 + $0x29] sm:$0xff]
      %v3174 = vld [vmem:[#allocation2 + $0x31] sm:$0xff]
      %v3175 = vld [vmem:[#allocation2 + $0x39] sm:$0xff]
      %v3176 = vld [vmem:[#allocation2 + $0x41] sm:$0xff]
      %v3177 = vld [vmem:[#allocation2 + $0x49] sm:$0xff]
      %v3178 = vld [vmem:[#allocation2 + $0x51] sm:$0xff]
      %v3179 = vld [vmem:[#allocation2 + $0x59] sm:$0xff]
      %v3180 = vld [vmem:[#allocation2 + $0x61] sm:$0xff]
      %v3181 = vld [vmem:[#allocation2 + $0x69] sm:$0xff]
      %v3182 = vld [vmem:[#allocation2 + $0x71] sm:$0xff]
      %v3183 = vld [vmem:[#allocation2 + $0x79] sm:$0x3f]
      %s3184 = scalar_lea.vmem %s2, 896
      %v3185 = vld [vmem:[%s3184] sm:$0xff]
      %v3186 = vld [vmem:[%s3184 + $0x8] sm:$0xff]
      %v3187 = vld [vmem:[%s3184 + $0x10] sm:$0xff]
      %v3188 = vld [vmem:[%s3184 + $0x18] sm:$0xff]
      %v3189 = vld [vmem:[%s3184 + $0x20] sm:$0xff]
      %v3190 = vld [vmem:[%s3184 + $0x28] sm:$0xff]
      %v3191 = vld [vmem:[%s3184 + $0x30] sm:$0xff]
      %v3192 = vld [vmem:[%s3184 + $0x38] sm:$0xff]
      %v3193 = vld [vmem:[%s3184 + $0x40] sm:$0xff]
      %v3194 = vld [vmem:[%s3184 + $0x48] sm:$0xff]
      %v3195 = vld [vmem:[%s3184 + $0x50] sm:$0xff]
      %v3196 = vld [vmem:[%s3184 + $0x58] sm:$0xff]
      %v3197 = vld [vmem:[%s3184 + $0x60] sm:$0xff]
      %v3198 = vld [vmem:[%s3184 + $0x68] sm:$0xff]
      %v3199 = vld [vmem:[%s3184 + $0x70] sm:$0xff]
      %v3200 = vld [vmem:[%s3184 + $0x78] sm:$0xff]
      %3201 = vmatprep.subr.mxu0 0.0
      %3202 = vmatpush1.msra.mxu0 %v3185
      %3203 = vmatprep.subr.mxu0 0.0
      %3204 = vmatpush1.msra.mxu0 %v3186
      %3205 = vmatprep.subr.mxu0 0.0
      %3206 = vmatpush1.msra.mxu0 %v3187
      %3207 = vmatprep.subr.mxu0 0.0
      %3208 = vmatpush1.msra.mxu0 %v3188
      %3209 = vmatprep.subr.mxu0 0.0
      %3210 = vmatpush1.msra.mxu0 %v3189
      %3211 = vmatprep.subr.mxu0 0.0
      %3212 = vmatpush1.msra.mxu0 %v3190
      %3213 = vmatprep.subr.mxu0 0.0
      %3214 = vmatpush1.msra.mxu0 %v3191
      %3215 = vmatprep.subr.mxu0 0.0
      %3216 = vmatpush1.msra.mxu0 %v3192
      %3217 = vmatprep.subr.mxu0 0.0
      %3218 = vmatpush1.msra.mxu0 %v3193
      %3219 = vmatprep.subr.mxu0 0.0
      %3220 = vmatpush1.msra.mxu0 %v3194
      %3221 = vmatprep.subr.mxu0 0.0
      %3222 = vmatpush1.msra.mxu0 %v3195
      %3223 = vmatprep.subr.mxu0 0.0
      %3224 = vmatpush1.msra.mxu0 %v3196
      %3225 = vmatprep.subr.mxu0 0.0
      %3226 = vmatpush1.msra.mxu0 %v3197
      %3227 = vmatprep.subr.mxu0 0.0
      %3228 = vmatpush1.msra.mxu0 %v3198
      %3229 = vmatprep.subr.mxu0 0.0
      %3230 = vmatpush1.msra.mxu0 %v3199
      %3231 = vmatprep.subr.mxu0 0.0
      %3232 = vmatpush1.msra.mxu0 %v3200
      %3233 = vmatprep.subr.mxu0 0.0
      %3234 = vmatpush1.msra.mxu0 0.0
      %3235 = vmatprep.subr.mxu0 0.0
      %3236 = vmatpush1.msra.mxu0 0.0
      %3237 = vmatprep.subr.mxu0 0.0
      %3238 = vmatpush1.msra.mxu0 0.0
      %3239 = vmatprep.subr.mxu0 0.0
      %3240 = vmatpush1.msra.mxu0 0.0
      %3241 = vmatprep.subr.mxu0 0.0
      %3242 = vmatpush1.msra.mxu0 0.0
      %3243 = vmatprep.subr.mxu0 0.0
      %3244 = vmatpush1.msra.mxu0 0.0
      %3245 = vmatprep.subr.mxu0 0.0
      %3246 = vmatpush1.msra.mxu0 0.0
      %3247 = vmatprep.subr.mxu0 0.0
      %3248 = vmatpush1.msra.mxu0 0.0
      %3249 = vmatprep.subr.mxu0 0.0
      %3250 = vmatpush1.msra.mxu0 0.0
      %3251 = vmatprep.subr.mxu0 0.0
      %3252 = vmatpush1.msra.mxu0 0.0
      %3253 = vmatprep.subr.mxu0 0.0
      %3254 = vmatpush1.msra.mxu0 0.0
      %3255 = vmatprep.subr.mxu0 0.0
      %3256 = vmatpush1.msra.mxu0 0.0
      %3257 = vmatprep.subr.mxu0 0.0
      %3258 = vmatpush1.msra.mxu0 0.0
      %3259 = vmatprep.subr.mxu0 0.0
      %3260 = vmatpush1.msra.mxu0 0.0
      %3261 = vmatprep.subr.mxu0 0.0
      %3262 = vmatpush1.msra.mxu0 0.0
      %3263 = vmatprep.subr.mxu0 0.0
      %3264 = vmatpush1.msra.mxu0 0.0
      %3265 = vmatprep.mubr.f32.mxu0 0.0
      %3266 = vmatmul.mubr.f32.gmra.mrb[0].mxu0 %v3172
      %v3267 = vpop.f32.mrb[0].mxu0
      %v3268 = vadd.f32 0.0, %v3267
      %v3269 = vpop.f32.mrb[0].mxu0
      %3270 = vmatprep.mubr.f32.mxu0 0.0
      %3271 = vmatmul.mubr.f32.gmra.mrb[0].mxu0 %v3173
      %v3272 = vpop.f32.mrb[0].mxu0
      %v3273 = vadd.f32 0.0, %v3272
      %v3274 = vpop.f32.mrb[0].mxu0
      %3275 = vmatprep.mubr.f32.mxu0 0.0
      %3276 = vmatmul.mubr.f32.gmra.mrb[0].mxu0 %v3174
      %v3277 = vpop.f32.mrb[0].mxu0
      %v3278 = vadd.f32 0.0, %v3277
      %v3279 = vpop.f32.mrb[0].mxu0
      %3280 = vmatprep.mubr.f32.mxu0 0.0
      %3281 = vmatmul.mubr.f32.gmra.mrb[0].mxu0 %v3175
      %v3282 = vpop.f32.mrb[0].mxu0
      %v3283 = vadd.f32 0.0, %v3282
      %v3284 = vpop.f32.mrb[0].mxu0
      %3285 = vmatprep.mubr.f32.mxu0 0.0
      %3286 = vmatmul.mubr.f32.gmra.mrb[0].mxu0 %v3176
      %v3287 = vpop.f32.mrb[0].mxu0
      %v3288 = vadd.f32 0.0, %v3287
      %v3289 = vpop.f32.mrb[0].mxu0
      %3290 = vmatprep.mubr.f32.mxu0 0.0
      %3291 = vmatmul.mubr.f32.gmra.mrb[0].mxu0 %v3177
      %v3292 = vpop.f32.mrb[0].mxu0
      %v3293 = vadd.f32 0.0, %v3292
      %v3294 = vpop.f32.mrb[0].mxu0
      %3295 = vmatprep.mubr.f32.mxu0 0.0
      %3296 = vmatmul.mubr.f32.gmra.mrb[0].mxu0 %v3178
      %v3297 = vpop.f32.mrb[0].mxu0
      %v3298 = vadd.f32 0.0, %v3297
      %v3299 = vpop.f32.mrb[0].mxu0
      %3300 = vmatprep.mubr.f32.mxu0 0.0
      %3301 = vmatmul.mubr.f32.gmra.mrb[0].mxu0 %v3179
      %v3302 = vpop.f32.mrb[0].mxu0
      %v3303 = vadd.f32 0.0, %v3302
      %v3304 = vpop.f32.mrb[0].mxu0
      %3305 = vmatprep.mubr.f32.mxu0 0.0
      %3306 = vmatmul.mubr.f32.gmra.mrb[0].mxu0 %v3180
      %v3307 = vpop.f32.mrb[0].mxu0
      %v3308 = vadd.f32 0.0, %v3307
      %v3309 = vpop.f32.mrb[0].mxu0
      %3310 = vmatprep.mubr.f32.mxu0 0.0
      %3311 = vmatmul.mubr.f32.gmra.mrb[0].mxu0 %v3181
      %v3312 = vpop.f32.mrb[0].mxu0
      %v3313 = vadd.f32 0.0, %v3312
      %v3314 = vpop.f32.mrb[0].mxu0
      %3315 = vmatprep.mubr.f32.mxu0 0.0
      %3316 = vmatmul.mubr.f32.gmra.mrb[0].mxu0 %v3182
      %v3317 = vpop.f32.mrb[0].mxu0
      %v3318 = vadd.f32 0.0, %v3317
      %v3319 = vpop.f32.mrb[0].mxu0
      %3320 = vmatprep.mubr.f32.mxu0 0.0
      %3321 = vmatmul.mubr.f32.gmra.mrb[0].mxu0 %v3183
      %v3322 = vpop.f32.mrb[0].mxu0
      %v3323 = vadd.f32 0.0, %v3322
      %v3324 = vpop.f32.mrb[0].mxu0
      %3325 = vdwg.mxu0
      %v3326 = vadd.f32 %v3160, %v3268
      %v3327 = vadd.f32 %v3161, %v3273
      %v3328 = vadd.f32 %v3162, %v3278
      %v3329 = vadd.f32 %v3163, %v3283
      %v3330 = vadd.f32 %v3164, %v3288
      %v3331 = vadd.f32 %v3165, %v3293
      %v3332 = vadd.f32 %v3166, %v3298
      %v3333 = vadd.f32 %v3167, %v3303
      %v3334 = vadd.f32 %v3168, %v3308
      %v3335 = vadd.f32 %v3169, %v3313
      %v3336 = vadd.f32 %v3170, %v3318
      %v3337 = vadd.f32 %v3171, %v3323
      %v3338 = vld [vmem:[#allocation2 + $0x22] sm:$0xff]
      %v3339 = vld [vmem:[#allocation2 + $0x2a] sm:$0xff]
      %v3340 = vld [vmem:[#allocation2 + $0x32] sm:$0xff]
      %v3341 = vld [vmem:[#allocation2 + $0x3a] sm:$0xff]
      %v3342 = vld [vmem:[#allocation2 + $0x42] sm:$0xff]
      %v3343 = vld [vmem:[#allocation2 + $0x4a] sm:$0xff]
      %v3344 = vld [vmem:[#allocation2 + $0x52] sm:$0xff]
      %v3345 = vld [vmem:[#allocation2 + $0x5a] sm:$0xff]
      %v3346 = vld [vmem:[#allocation2 + $0x62] sm:$0xff]
      %v3347 = vld [vmem:[#allocation2 + $0x6a] sm:$0xff]
      %v3348 = vld [vmem:[#allocation2 + $0x72] sm:$0xff]
      %v3349 = vld [vmem:[#allocation2 + $0x7a] sm:$0x3f]
      %s3350 = scalar_lea.vmem %s2, 1024
      %v3351 = vld [vmem:[%s3350] sm:$0xff]
      %v3352 = vld [vmem:[%s3350 + $0x8] sm:$0xff]
      %v3353 = vld [vmem:[%s3350 + $0x10] sm:$0xff]
      %v3354 = vld [vmem:[%s3350 + $0x18] sm:$0xff]
      %v3355 = vld [vmem:[%s3350 + $0x20] sm:$0xff]
      %v3356 = vld [vmem:[%s3350 + $0x28] sm:$0xff]
      %v3357 = vld [vmem:[%s3350 + $0x30] sm:$0xff]
      %v3358 = vld [vmem:[%s3350 + $0x38] sm:$0xff]
      %v3359 = vld [vmem:[%s3350 + $0x40] sm:$0xff]
      %v3360 = vld [vmem:[%s3350 + $0x48] sm:$0xff]
      %v3361 = vld [vmem:[%s3350 + $0x50] sm:$0xff]
      %v3362 = vld [vmem:[%s3350 + $0x58] sm:$0xff]
      %v3363 = vld [vmem:[%s3350 + $0x60] sm:$0xff]
      %v3364 = vld [vmem:[%s3350 + $0x68] sm:$0xff]
      %v3365 = vld [vmem:[%s3350 + $0x70] sm:$0xff]
      %v3366 = vld [vmem:[%s3350 + $0x78] sm:$0xff]
      %3367 = vmatprep.subr.mxu0 0.0
      %3368 = vmatpush1.msra.mxu0 %v3351
      %3369 = vmatprep.subr.mxu0 0.0
      %3370 = vmatpush1.msra.mxu0 %v3352
      %3371 = vmatprep.subr.mxu0 0.0
      %3372 = vmatpush1.msra.mxu0 %v3353
      %3373 = vmatprep.subr.mxu0 0.0
      %3374 = vmatpush1.msra.mxu0 %v3354
      %3375 = vmatprep.subr.mxu0 0.0
      %3376 = vmatpush1.msra.mxu0 %v3355
      %3377 = vmatprep.subr.mxu0 0.0
      %3378 = vmatpush1.msra.mxu0 %v3356
      %3379 = vmatprep.subr.mxu0 0.0
      %3380 = vmatpush1.msra.mxu0 %v3357
      %3381 = vmatprep.subr.mxu0 0.0
      %3382 = vmatpush1.msra.mxu0 %v3358
      %3383 = vmatprep.subr.mxu0 0.0
      %3384 = vmatpush1.msra.mxu0 %v3359
      %3385 = vmatprep.subr.mxu0 0.0
      %3386 = vmatpush1.msra.mxu0 %v3360
      %3387 = vmatprep.subr.mxu0 0.0
      %3388 = vmatpush1.msra.mxu0 %v3361
      %3389 = vmatprep.subr.mxu0 0.0
      %3390 = vmatpush1.msra.mxu0 %v3362
      %3391 = vmatprep.subr.mxu0 0.0
      %3392 = vmatpush1.msra.mxu0 %v3363
      %3393 = vmatprep.subr.mxu0 0.0
      %3394 = vmatpush1.msra.mxu0 %v3364
      %3395 = vmatprep.subr.mxu0 0.0
      %3396 = vmatpush1.msra.mxu0 %v3365
      %3397 = vmatprep.subr.mxu0 0.0
      %3398 = vmatpush1.msra.mxu0 %v3366
      %3399 = vmatprep.subr.mxu0 0.0
      %3400 = vmatpush1.msra.mxu0 0.0
      %3401 = vmatprep.subr.mxu0 0.0
      %3402 = vmatpush1.msra.mxu0 0.0
      %3403 = vmatprep.subr.mxu0 0.0
      %3404 = vmatpush1.msra.mxu0 0.0
      %3405 = vmatprep.subr.mxu0 0.0
      %3406 = vmatpush1.msra.mxu0 0.0
      %3407 = vmatprep.subr.mxu0 0.0
      %3408 = vmatpush1.msra.mxu0 0.0
      %3409 = vmatprep.subr.mxu0 0.0
      %3410 = vmatpush1.msra.mxu0 0.0
      %3411 = vmatprep.subr.mxu0 0.0
      %3412 = vmatpush1.msra.mxu0 0.0
      %3413 = vmatprep.subr.mxu0 0.0
      %3414 = vmatpush1.msra.mxu0 0.0
      %3415 = vmatprep.subr.mxu0 0.0
      %3416 = vmatpush1.msra.mxu0 0.0
      %3417 = vmatprep.subr.mxu0 0.0
      %3418 = vmatpush1.msra.mxu0 0.0
      %3419 = vmatprep.subr.mxu0 0.0
      %3420 = vmatpush1.msra.mxu0 0.0
      %3421 = vmatprep.subr.mxu0 0.0
      %3422 = vmatpush1.msra.mxu0 0.0
      %3423 = vmatprep.subr.mxu0 0.0
      %3424 = vmatpush1.msra.mxu0 0.0
      %3425 = vmatprep.subr.mxu0 0.0
      %3426 = vmatpush1.msra.mxu0 0.0
      %3427 = vmatprep.subr.mxu0 0.0
      %3428 = vmatpush1.msra.mxu0 0.0
      %3429 = vmatprep.subr.mxu0 0.0
      %3430 = vmatpush1.msra.mxu0 0.0
      %3431 = vmatprep.mubr.f32.mxu0 0.0
      %3432 = vmatmul.mubr.f32.gmra.mrb[0].mxu0 %v3338
      %v3433 = vpop.f32.mrb[0].mxu0
      %v3434 = vadd.f32 0.0, %v3433
      %v3435 = vpop.f32.mrb[0].mxu0
      %3436 = vmatprep.mubr.f32.mxu0 0.0
      %3437 = vmatmul.mubr.f32.gmra.mrb[0].mxu0 %v3339
      %v3438 = vpop.f32.mrb[0].mxu0
      %v3439 = vadd.f32 0.0, %v3438
      %v3440 = vpop.f32.mrb[0].mxu0
      %3441 = vmatprep.mubr.f32.mxu0 0.0
      %3442 = vmatmul.mubr.f32.gmra.mrb[0].mxu0 %v3340
      %v3443 = vpop.f32.mrb[0].mxu0
      %v3444 = vadd.f32 0.0, %v3443
      %v3445 = vpop.f32.mrb[0].mxu0
      %3446 = vmatprep.mubr.f32.mxu0 0.0
      %3447 = vmatmul.mubr.f32.gmra.mrb[0].mxu0 %v3341
      %v3448 = vpop.f32.mrb[0].mxu0
      %v3449 = vadd.f32 0.0, %v3448
      %v3450 = vpop.f32.mrb[0].mxu0
      %3451 = vmatprep.mubr.f32.mxu0 0.0
      %3452 = vmatmul.mubr.f32.gmra.mrb[0].mxu0 %v3342
      %v3453 = vpop.f32.mrb[0].mxu0
      %v3454 = vadd.f32 0.0, %v3453
      %v3455 = vpop.f32.mrb[0].mxu0
      %3456 = vmatprep.mubr.f32.mxu0 0.0
      %3457 = vmatmul.mubr.f32.gmra.mrb[0].mxu0 %v3343
      %v3458 = vpop.f32.mrb[0].mxu0
      %v3459 = vadd.f32 0.0, %v3458
      %v3460 = vpop.f32.mrb[0].mxu0
      %3461 = vmatprep.mubr.f32.mxu0 0.0
      %3462 = vmatmul.mubr.f32.gmra.mrb[0].mxu0 %v3344
      %v3463 = vpop.f32.mrb[0].mxu0
      %v3464 = vadd.f32 0.0, %v3463
      %v3465 = vpop.f32.mrb[0].mxu0
      %3466 = vmatprep.mubr.f32.mxu0 0.0
      %3467 = vmatmul.mubr.f32.gmra.mrb[0].mxu0 %v3345
      %v3468 = vpop.f32.mrb[0].mxu0
      %v3469 = vadd.f32 0.0, %v3468
      %v3470 = vpop.f32.mrb[0].mxu0
      %3471 = vmatprep.mubr.f32.mxu0 0.0
      %3472 = vmatmul.mubr.f32.gmra.mrb[0].mxu0 %v3346
      %v3473 = vpop.f32.mrb[0].mxu0
      %v3474 = vadd.f32 0.0, %v3473
      %v3475 = vpop.f32.mrb[0].mxu0
      %3476 = vmatprep.mubr.f32.mxu0 0.0
      %3477 = vmatmul.mubr.f32.gmra.mrb[0].mxu0 %v3347
      %v3478 = vpop.f32.mrb[0].mxu0
      %v3479 = vadd.f32 0.0, %v3478
      %v3480 = vpop.f32.mrb[0].mxu0
      %3481 = vmatprep.mubr.f32.mxu0 0.0
      %3482 = vmatmul.mubr.f32.gmra.mrb[0].mxu0 %v3348
      %v3483 = vpop.f32.mrb[0].mxu0
      %v3484 = vadd.f32 0.0, %v3483
      %v3485 = vpop.f32.mrb[0].mxu0
      %3486 = vmatprep.mubr.f32.mxu0 0.0
      %3487 = vmatmul.mubr.f32.gmra.mrb[0].mxu0 %v3349
      %v3488 = vpop.f32.mrb[0].mxu0
      %v3489 = vadd.f32 0.0, %v3488
      %v3490 = vpop.f32.mrb[0].mxu0
      %3491 = vdwg.mxu0
      %v3492 = vadd.f32 %v3326, %v3434
      %v3493 = vadd.f32 %v3327, %v3439
      %v3494 = vadd.f32 %v3328, %v3444
      %v3495 = vadd.f32 %v3329, %v3449
      %v3496 = vadd.f32 %v3330, %v3454
      %v3497 = vadd.f32 %v3331, %v3459
      %v3498 = vadd.f32 %v3332, %v3464
      %v3499 = vadd.f32 %v3333, %v3469
      %v3500 = vadd.f32 %v3334, %v3474
      %v3501 = vadd.f32 %v3335, %v3479
      %v3502 = vadd.f32 %v3336, %v3484
      %v3503 = vadd.f32 %v3337, %v3489
      %3504 = vst [vmem:[%s219] sm:$0xff] %v3492
      %3505 = vst [vmem:[%s219 + $0x8] sm:$0xff] %v3493
      %3506 = vst [vmem:[%s219 + $0x10] sm:$0xff] %v3494
      %3507 = vst [vmem:[%s219 + $0x18] sm:$0xff] %v3495
      %3508 = vst [vmem:[%s219 + $0x20] sm:$0xff] %v3496
      %3509 = vst [vmem:[%s219 + $0x28] sm:$0xff] %v3497
      %3510 = vst [vmem:[%s219 + $0x30] sm:$0xff] %v3498
      %3511 = vst [vmem:[%s219 + $0x38] sm:$0xff] %v3499
      %3512 = vst [vmem:[%s219 + $0x40] sm:$0xff] %v3500
      %3513 = vst [vmem:[%s219 + $0x48] sm:$0xff] %v3501
      %3514 = vst [vmem:[%s219 + $0x50] sm:$0xff] %v3502
      %3515 = vst [vmem:[%s219 + $0x58] sm:$0x3f] %v3503
      %3516 = vst [vmem:[%s219 + $0x5e] sm:$0x3] 0.0
      %s3517 = smul.u32 12, %s20
      %p3518 = scmp.lt.s32.totalorder %s19, 1
      %s3519 = scalar_select %p3518, %s19, 1
      %p3520 = scmp.lt.s32.totalorder %s3517, 23
      %s3521 = scalar_select %p3520, %s3517, 23
      %s3522 = smul.addr %s3519, 24
      %s3523 = sadd.s32 %s3521, %s3522
      %s3524 = smul.addr %s3523, 8
      %s3525 = scalar_lea.vmem %s4, %s3524
      // Predicated region
      $region37: #{up_path_forward.1} parent=35 // pred_check
        %p3526 = pneg %p136
      $region38: #{up_path_forward.1} parent=35 // pred_check_branch
        %3528 = sbr.rel (%p3526) target = $region40
      $region39: #{up_path_forward.1} parent=35 // pred_region
        %s3529 = smul.u32 12, %s20
      $region40: #{up_path_forward.1} parent=35 // pred_fallthru
        _
    $region36: #{up_path_forward.1} parent=5 // pred_fallthru
      _
    %p3530 = scmp.le.s32.totalorder 2, %s10
    // Predicated region
    $region41: #{up_path_forward.1} parent=5 // pred_check
      %p3531 = pneg %p3530
    $region42: #{up_path_forward.1} parent=5 // pred_check_branch
      %3533 = sbr.rel (%p3531) target = $region44
    $region43: #{up_path_forward.1} parent=5 // pred_region
      %s3534 = ssub.s32 %s10, 2
      // Predicated region
      $region45: #{up_path_forward.1} parent=43 // pred_check
        %p3535 = pneg %p142
      $region46: #{up_path_forward.1} parent=43 // pred_check_branch
        %3537 = sbr.rel (%p3535) target = $region48
      $region47: #{up_path_forward.1} parent=43 // pred_region
        %s3538 = smul.u32 12, %s22
        %p3539 = scmp.lt.s32.totalorder %s21, 1
        %s3540 = scalar_select %p3539, %s21, 1
        %p3541 = scmp.lt.s32.totalorder %s3538, 23
        %s3542 = scalar_select %p3541, %s3538, 23
        %s3543 = smul.addr %s3540, 24
        %s3544 = sadd.s32 %s3542, %s3543
        %s3545 = smul.addr %s3544, 8
        %s3546 = scalar_lea.vmem %s4, %s3545
      $region48: #{up_path_forward.1} parent=43 // pred_fallthru
        _
    $region44: #{up_path_forward.1} parent=5 // pred_fallthru
      _
  $region6: #{up_path_forward.1} parent=0 // loop_footer
    %s14 = sadd.s32 1, %s10
  $region7: #{up_path_forward.1} parent=0 // loop_footer_branch
    %9 = sbr.rel target = $region3
  $region8: #{up_path_forward.1} parent=0 // loop_exit
    _

</llo_original>
